<compile_context>
chip_gen: v6e
topology: v6e:2x2x1
jax: 0.10.0
libtpu: 0.0.40
codegen_flags: <defaults>
</compile_context>

<pallas_src>
import jax
import jax.numpy as jnp
from jax.experimental import pallas as pl
from jax.experimental.pallas import tpu as pltpu

_LANE = 128


def _round_up(x, m):
    return ((x + m - 1) // m) * m


# ---------------------------------------------------------------------------
# Kernel
# ---------------------------------------------------------------------------
def dnn_kernel(x_ref, w1_ref, b1_ref, w2_ref, b2_ref, o_ref):
    # Full-precision f32 matmul when params are f32; single-pass bf16 otherwise.
    prec = (jax.lax.Precision.HIGHEST
            if jnp.dtype(w1_ref.dtype) == jnp.float32 else jax.lax.Precision.DEFAULT)

    # hidden = relu(x @ W1 + b1)   -> (tb, Ep), lane-dense (Ep % 128 == 0)
    x = x_ref[...].astype(w1_ref.dtype)
    h = jnp.dot(x, w1_ref[...], preferred_element_type=jnp.float32, precision=prec)
    h = jnp.maximum(h + b1_ref[...], 0.0)

    # logits = h @ W2 + b2         -> (tb, O) (unpadded output classes)
    logits = jnp.dot(h.astype(w2_ref.dtype), w2_ref[...],
                     preferred_element_type=jnp.float32, precision=prec)
    logits = logits + b2_ref[...]

    # Numerically stable log_softmax along the last axis.
    m = jnp.max(logits, axis=-1, keepdims=True)
    shifted = logits - m
    lse = jnp.log(jnp.sum(jnp.exp(shifted), axis=-1, keepdims=True))
    o_ref[...] = (shifted - lse).astype(o_ref.dtype)


# ---------------------------------------------------------------------------
# Parameter preparation (one-time, outside the hot path)
# ---------------------------------------------------------------------------
def prepare_params(w1, b1, w2, b2, param_dtype=jnp.float32):
    """Convert PyTorch Linear layout to kernel layout.

    Inputs (PyTorch layout): w1 (E, I), b1 (E,), w2 (O, E), b2 (O,).
    Returns w1k (I, Ep), b1k (1, Ep), w2k (Ep, O), b2k (1, O), with the hidden
    dim E padded to Ep (multiple of 128). Padded hidden units carry zero
    weight/bias (relu -> 0, zero rows in W2 -> contribute nothing). Weights may
    be stored in bf16 (param_dtype); biases stay f32.
    """
    E, I = w1.shape
    O, E2 = w2.shape
    assert E2 == E
    Ep = _round_up(E, _LANE)

    w1k = jnp.zeros((I, Ep), param_dtype).at[:, :E].set(w1.T.astype(param_dtype))
    b1k = jnp.zeros((1, Ep), jnp.float32).at[:, :E].set(b1.astype(jnp.float32))
    w2k = jnp.zeros((Ep, O), param_dtype).at[:E, :].set(w2.T.astype(param_dtype))
    b2k = b2.astype(jnp.float32).reshape(1, O)
    return w1k, b1k, w2k, b2k


# ---------------------------------------------------------------------------
# Tile / VMEM sizing helpers
# ---------------------------------------------------------------------------
def _vmem_budget_bytes():
    cap = 64 * 1024 * 1024  # conservative fallback: v7x per-TensorCore VMEM
    try:
        cap = int(pltpu.get_tpu_info().vmem_capacity_bytes)
    except Exception:
        pass
    # 3/4 of capacity: 48 MiB on v7x, 96 MiB on v5e/v6e.
    return min(cap * 3 // 4, 96 * 1024 * 1024)


def _tile_vmem_bytes(tb, I, Ep, O, x_item, p_item):
    tiles = 2 * tb * (I + O) * x_item                       # double-buffered x + out tiles
    params = 2 * (I * Ep + Ep * O) * p_item + 2 * (Ep + O) * 4  # resident params (2 bufs)
    interm = 2 * tb * (Ep + O) * 4                          # f32 hidden/logits + headroom
    return tiles + params + interm


def _choose_tile_b(B, I, Ep, O, x_item, p_item, budget, tile_b=None):
    if tile_b is None:
        # Aim for ~8 grid steps (3-4+ per TC on v7x), clamp to [256, 2048] rows.
        target = max(_round_up(pl.cdiv(B, 8), 8), 8)
        tile_b = min(2048, max(256, target))
    tb = min(tile_b, B)
    if tb < B:
        tb = min(_round_up(tb, 8), B)  # (8, 128) sublane rule for partial blocks
    # Shrink if the tile would blow the VMEM budget (with 2x headroom).
    while tb > 8 and 2 * _tile_vmem_bytes(tb, I, Ep, O, x_item, p_item) > budget:
        tb = max(8, _round_up(tb // 2, 8))
    return tb


# ---------------------------------------------------------------------------
# Forward wrapper
# ---------------------------------------------------------------------------
def dnn_forward(x, w1k, b1k, w2k, b2k, *, tile_b=None):
    """x: (B, I); params already in kernel layout (see prepare_params)."""
    B, I = x.shape
    Ep = w1k.shape[1]
    O = w2k.shape[1]

    x_item = jnp.dtype(x.dtype).itemsize
    p_item = jnp.dtype(w1k.dtype).itemsize
    budget = _vmem_budget_bytes()
    tb = _choose_tile_b(B, I, Ep, O, x_item, p_item, budget, tile_b)
    grid = (pl.cdiv(B, tb),)

    vmem_est = _tile_vmem_bytes(tb, I, Ep, O, x_item, p_item)
    vmem_limit = int(min(max(2 * vmem_est, 16 * 1024 * 1024), budget))

    cost = pl.CostEstimate(
        flops=2 * B * (I * Ep + Ep * O),
        transcendentals=B * (O + 1),                 # exp per logit + log per row
        bytes_accessed=(B * (I + O)) * x_item
        + (I * Ep + Ep * O) * p_item + (Ep + O) * 4,
    )

    out = pl.pallas_call(
        dnn_kernel,
        out_shape=jax.ShapeDtypeStruct((B, O), x.dtype),
        grid_spec=pltpu.PrefetchScalarGridSpec(
            num_scalar_prefetch=0,
            grid=grid,
            in_specs=[
                pl.BlockSpec((tb, I), lambda i: (i, 0)),   # x tiles stream over batch
                pl.BlockSpec((I, Ep), lambda i: (0, 0)),   # params VMEM-resident
                pl.BlockSpec((1, Ep), lambda i: (0, 0)),
                pl.BlockSpec((Ep, O), lambda i: (0, 0)),
                pl.BlockSpec((1, O), lambda i: (0, 0)),
            ],
            out_specs=pl.BlockSpec((tb, O), lambda i: (i, 0)),  # unpadded writeback
        ),
        compiler_params=pltpu.CompilerParams(
            dimension_semantics=("parallel",),  # dual-TC sharding on v7x
            vmem_limit_bytes=vmem_limit,
        ),
        cost_estimate=cost,
    )(x, w1k, b1k, w2k, b2k)
    return out


def init_linear_params(key, out_features, in_features, dtype=jnp.float32):
    """Deterministic PyTorch-style init: U(-k, k), k = 1/sqrt(in_features)."""
    k = 1.0 / jnp.sqrt(jnp.asarray(in_features, dtype))
    wkey, bkey = jax.random.split(key)
    w = jax.random.uniform(wkey, (out_features, in_features), dtype, -k, k)
    b = jax.random.uniform(bkey, (out_features,), dtype, -k, k)
    return w, b


if __name__ == "__main__":
    # Small shapes consistent with the module (batch kept modest for the demo).
    batch, input_dim, encoding_dim, output_dim = 256, 32, 64, 16

    root = jax.random.PRNGKey(0)
    kx, k1, k2 = jax.random.split(root, 3)

    x = jax.random.normal(kx, (batch, input_dim), jnp.float32)
    w1, b1 = init_linear_params(k1, encoding_dim, input_dim)
    w2, b2 = init_linear_params(k2, output_dim, encoding_dim)

    # Pure-JAX reference (same math as the PyTorch forward).
    h_ref = jnp.maximum(x @ w1.T + b1, 0.0)
    ref = jax.nn.log_softmax(h_ref @ w2.T + b2, axis=-1)

    # f32 params: exact-semantics path (tight tolerance).
    p_f32 = prepare_params(w1, b1, w2, b2, param_dtype=jnp.float32)
    out_f32 = jax.block_until_ready(dnn_forward(x, *p_f32))
    assert out_f32.shape == ref.shape, f"shape mismatch {out_f32.shape} vs {ref.shape}"
    assert jnp.allclose(out_f32, ref, atol=2e-5, rtol=2e-5), "f32 path mismatch vs reference"

    # bf16 weights: memory-bound fast path (f32 accumulate + f32 log_softmax).
    p_bf16 = prepare_params(w1, b1, w2, b2, param_dtype=jnp.bfloat16)
    out_bf16 = jax.block_until_ready(dnn_forward(x, *p_bf16))
    assert out_bf16.shape == ref.shape
    assert jnp.allclose(out_bf16, ref, atol=5e-2, rtol=5e-2), "bf16 path mismatch vs reference"

    print("KERNEL_OK")
</pallas_src>

<mosaic_0001>
module attributes {stable_mosaic.version = 11 : i64} {
  func.func @dnn_kernel(%arg0: i32, %arg1: memref<256x32xf32, #tpu.memory_space<vmem>>, %arg2: memref<32x128xf32, #tpu.memory_space<vmem>>, %arg3: memref<1x128xf32, #tpu.memory_space<vmem>>, %arg4: memref<128x16xf32, #tpu.memory_space<vmem>>, %arg5: memref<1x16xf32, #tpu.memory_space<vmem>>, %arg6: memref<256x16xf32, #tpu.memory_space<vmem>>) attributes {dimension_semantics = [#tpu.dimension_semantics<parallel>], iteration_bounds = array<i64: 1>, scalar_prefetch = 0 : i64, scratch_operands = 0 : i64, tpu.core_type = #tpu.core_type<tc>, window_params = [{transform_indices = @transform_0, window_bounds = array<i64: 256, 32>}, {pipeline_mode = #tpu.pipeline_mode<synchronous>, transform_indices = @transform_1, window_bounds = array<i64: 32, 128>}, {pipeline_mode = #tpu.pipeline_mode<synchronous>, transform_indices = @transform_2, window_bounds = array<i64: 1, 128>}, {pipeline_mode = #tpu.pipeline_mode<synchronous>, transform_indices = @transform_3, window_bounds = array<i64: 128, 16>}, {pipeline_mode = #tpu.pipeline_mode<synchronous>, transform_indices = @transform_4, window_bounds = array<i64: 1, 16>}, {transform_indices = @transform_5, window_bounds = array<i64: 256, 16>}]} {
    %c0 = arith.constant 0 : index
    %c0_0 = arith.constant 0 : index
    %0 = vector.load %arg1[%c0, %c0_0] : memref<256x32xf32, #tpu.memory_space<vmem>>, vector<256x32xf32>
    %c0_1 = arith.constant 0 : index
    %c0_2 = arith.constant 0 : index
    %1 = vector.load %arg2[%c0_1, %c0_2] : memref<32x128xf32, #tpu.memory_space<vmem>>, vector<32x128xf32>
    %cst = arith.constant dense<0.000000e+00> : vector<256x128xf32>
    %2 = tpu.matmul %0, %1, %cst {dimension_numbers = #tpu.dot_dimension_numbers<[1], [0], [0], [1], [0, 0, 1, 1], [], []>, precision = #tpu.contract_precision<fp32>} : vector<256x32xf32>, vector<32x128xf32>, vector<256x128xf32> -> vector<256x128xf32>
    %c0_3 = arith.constant 0 : index
    %c0_4 = arith.constant 0 : index
    %3 = vector.load %arg3[%c0_3, %c0_4] : memref<1x128xf32, #tpu.memory_space<vmem>>, vector<1x128xf32>
    %4 = vector.broadcast %3 : vector<1x128xf32> to vector<256x128xf32>
    %5 = arith.addf %2, %4 : vector<256x128xf32>
    %cst_5 = arith.constant 0.000000e+00 : f32
    %6 = vector.broadcast %cst_5 : f32 to vector<256x128xf32>
    %7 = arith.maximumf %5, %6 : vector<256x128xf32>
    %c0_6 = arith.constant 0 : index
    %c0_7 = arith.constant 0 : index
    %8 = vector.load %arg4[%c0_6, %c0_7] : memref<128x16xf32, #tpu.memory_space<vmem>>, vector<128x16xf32>
    %cst_8 = arith.constant dense<0.000000e+00> : vector<256x16xf32>
    %9 = tpu.matmul %7, %8, %cst_8 {dimension_numbers = #tpu.dot_dimension_numbers<[1], [0], [0], [1], [0, 0, 1, 1], [], []>, precision = #tpu.contract_precision<fp32>} : vector<256x128xf32>, vector<128x16xf32>, vector<256x16xf32> -> vector<256x16xf32>
    %c0_9 = arith.constant 0 : index
    %c0_10 = arith.constant 0 : index
    %10 = vector.load %arg5[%c0_9, %c0_10] : memref<1x16xf32, #tpu.memory_space<vmem>>, vector<1x16xf32>
    %11 = vector.broadcast %10 : vector<1x16xf32> to vector<256x16xf32>
    %12 = arith.addf %9, %11 : vector<256x16xf32>
    %cst_11 = arith.constant dense<0xFF800000> : vector<256xf32>
    %13 = vector.multi_reduction <maximumf>, %12, %cst_11 [1] : vector<256x16xf32> to vector<256xf32>
    %14 = vector.shape_cast %13 : vector<256xf32> to vector<256x1xf32>
    %15 = vector.broadcast %14 : vector<256x1xf32> to vector<256x16xf32>
    %16 = arith.subf %12, %15 : vector<256x16xf32>
    %17 = math.exp %16 : vector<256x16xf32>
    %cst_12 = arith.constant dense<0.000000e+00> : vector<256xf32>
    %18 = vector.multi_reduction <add>, %17, %cst_12 [1] : vector<256x16xf32> to vector<256xf32>
    %19 = vector.shape_cast %18 : vector<256xf32> to vector<256x1xf32>
    %20 = math.log %19 : vector<256x1xf32>
    %21 = vector.broadcast %20 : vector<256x1xf32> to vector<256x16xf32>
    %22 = arith.subf %16, %21 : vector<256x16xf32>
    %c0_13 = arith.constant 0 : index
    %c0_14 = arith.constant 0 : index
    %23 = vector.load %arg6[%c0_13, %c0_14] : memref<256x16xf32, #tpu.memory_space<vmem>>, vector<256x16xf32>
    tpu.vector_store %arg6[%c0_13, %c0_14], %22 {strides = array<i32>} : memref<256x16xf32, #tpu.memory_space<vmem>>, vector<256x16xf32>,
    return
  }
  func.func @transform_0(%arg0: i32) -> (i32, i32) {
    %c0_i32 = arith.constant 0 : i32
    %c0_i32_0 = arith.constant 0 : i32
    return %arg0, %c0_i32 : i32, i32
  }
  func.func @transform_1(%arg0: i32) -> (i32, i32) {
    %c0_i32 = arith.constant 0 : i32
    %c0_i32_0 = arith.constant 0 : i32
    %c0_i32_1 = arith.constant 0 : i32
    return %c0_i32, %c0_i32_0 : i32, i32
  }
  func.func @transform_2(%arg0: i32) -> (i32, i32) {
    %c0_i32 = arith.constant 0 : i32
    %c0_i32_0 = arith.constant 0 : i32
    %c0_i32_1 = arith.constant 0 : i32
    return %c0_i32, %c0_i32_0 : i32, i32
  }
  func.func @transform_3(%arg0: i32) -> (i32, i32) {
    %c0_i32 = arith.constant 0 : i32
    %c0_i32_0 = arith.constant 0 : i32
    %c0_i32_1 = arith.constant 0 : i32
    return %c0_i32, %c0_i32_0 : i32, i32
  }
  func.func @transform_4(%arg0: i32) -> (i32, i32) {
    %c0_i32 = arith.constant 0 : i32
    %c0_i32_0 = arith.constant 0 : i32
    %c0_i32_1 = arith.constant 0 : i32
    return %c0_i32, %c0_i32_0 : i32, i32
  }
  func.func @transform_5(%arg0: i32) -> (i32, i32) {
    %c0_i32 = arith.constant 0 : i32
    %c0_i32_0 = arith.constant 0 : i32
    return %arg0, %c0_i32 : i32, i32
  }
}

</mosaic_0001>

<llo_original>
// kernel: tpu_custom_call.1
$region0: #{tpu_custom_call.1}
  #allocation0 [shape = 'u32[]', space=smem, size = 0x4, offset = 0x4, fixed_abs, tag = 'smem constant byte address 0x4 - core index']
  #allocation1 [shape = 'u32[144,128]{1,0:T(1,128)}', space=vmem, size = 0x12000, scoped, tag = 'internal scratch']
  %s0 = inlined_call_operand.vmem [shape: f32[256,32], index: 0, kind: input, shape index: {}]
  %s1 = inlined_call_operand.vmem [shape: f32[32,128], index: 1, kind: input, shape index: {}]
  %s2 = inlined_call_operand.vmem [shape: f32[1,128], index: 2, kind: input, shape index: {}]
  %s3 = inlined_call_operand.vmem [shape: f32[128,16], index: 3, kind: input, shape index: {}]
  %s4 = inlined_call_operand.vmem [shape: f32[1,16], index: 4, kind: input, shape index: {}]
  %s5 = inlined_call_operand.vmem [shape: f32[256,16], index: 5, kind: output, shape index: {}]
  %s6 = sld [smem:[#allocation0]]
  $region30: #{tpu_custom_call.1} parent=0
    _
  %s8 = ssub.s32 1, %s6
  %s9 = scalar_select 0, %s8, %s6
  // Predicated region
  $region2: #{tpu_custom_call.1} parent=0 // pred_check
    _
  $region3: #{tpu_custom_call.1} parent=0 // pred_check_branch
    %11 = sbr.rel (0) target = $region5
  $region4: #{tpu_custom_call.1} parent=0 // pred_region
    _
  $region5: #{tpu_custom_call.1} parent=0 // pred_fallthru
    _
  // Predicated region
  $region6: #{tpu_custom_call.1} parent=0 // pred_check
    _
  $region7: #{tpu_custom_call.1} parent=0 // pred_check_branch
    %13 = sbr.rel (0) target = $region9
  $region8: #{tpu_custom_call.1} parent=0 // pred_region
    _
  $region9: #{tpu_custom_call.1} parent=0 // pred_fallthru
    _
  // Predicated region
  $region10: #{tpu_custom_call.1} parent=0 // pred_check
    _
  $region11: #{tpu_custom_call.1} parent=0 // pred_check_branch
    %15 = sbr.rel (0) target = $region13
  $region12: #{tpu_custom_call.1} parent=0 // pred_region
    _
  $region13: #{tpu_custom_call.1} parent=0 // pred_fallthru
    _
  // Predicated region
  $region14: #{tpu_custom_call.1} parent=0 // pred_check
    _
  $region15: #{tpu_custom_call.1} parent=0 // pred_check_branch
    %17 = sbr.rel (0) target = $region17
  $region16: #{tpu_custom_call.1} parent=0 // pred_region
    _
  $region17: #{tpu_custom_call.1} parent=0 // pred_fallthru
    _
  // Predicated region
  $region18: #{tpu_custom_call.1} parent=0 // pred_check
    _
  $region19: #{tpu_custom_call.1} parent=0 // pred_check_branch
    %19 = sbr.rel (0) target = $region21
  $region20: #{tpu_custom_call.1} parent=0 // pred_region
    _
  $region21: #{tpu_custom_call.1} parent=0 // pred_fallthru
    _
  %v20 = vld [vmem:[%s0] sm:$0xff]
  %v21 = vld [vmem:[%s0 + $0x8] sm:$0xff]
  %v22 = vld [vmem:[%s0 + $0x10] sm:$0xff]
  %v23 = vld [vmem:[%s0 + $0x18] sm:$0xff]
  %v24 = vld [vmem:[%s0 + $0x20] sm:$0xff]
  %v25 = vld [vmem:[%s0 + $0x28] sm:$0xff]
  %v26 = vld [vmem:[%s0 + $0x30] sm:$0xff]
  %v27 = vld [vmem:[%s0 + $0x38] sm:$0xff]
  %v28 = vld [vmem:[%s0 + $0x40] sm:$0xff]
  %v29 = vld [vmem:[%s0 + $0x48] sm:$0xff]
  %v30 = vld [vmem:[%s0 + $0x50] sm:$0xff]
  %v31 = vld [vmem:[%s0 + $0x58] sm:$0xff]
  %v32 = vld [vmem:[%s0 + $0x60] sm:$0xff]
  %v33 = vld [vmem:[%s0 + $0x68] sm:$0xff]
  %v34 = vld [vmem:[%s0 + $0x70] sm:$0xff]
  %v35 = vld [vmem:[%s0 + $0x78] sm:$0xff]
  %v36 = vld [vmem:[%s0 + $0x80] sm:$0xff]
  %v37 = vld [vmem:[%s0 + $0x88] sm:$0xff]
  %v38 = vld [vmem:[%s0 + $0x90] sm:$0xff]
  %v39 = vld [vmem:[%s0 + $0x98] sm:$0xff]
  %v40 = vld [vmem:[%s0 + $0xa0] sm:$0xff]
  %v41 = vld [vmem:[%s0 + $0xa8] sm:$0xff]
  %v42 = vld [vmem:[%s0 + $0xb0] sm:$0xff]
  %v43 = vld [vmem:[%s0 + $0xb8] sm:$0xff]
  %v44 = vld [vmem:[%s0 + $0xc0] sm:$0xff]
  %v45 = vld [vmem:[%s0 + $0xc8] sm:$0xff]
  %v46 = vld [vmem:[%s0 + $0xd0] sm:$0xff]
  %v47 = vld [vmem:[%s0 + $0xd8] sm:$0xff]
  %v48 = vld [vmem:[%s0 + $0xe0] sm:$0xff]
  %v49 = vld [vmem:[%s0 + $0xe8] sm:$0xff]
  %v50 = vld [vmem:[%s0 + $0xf0] sm:$0xff]
  %v51 = vld [vmem:[%s0 + $0xf8] sm:$0xff]
  %v52 = vld [vmem:[%s1] sm:$0xff]
  %v53 = vld [vmem:[%s1 + $0x8] sm:$0xff]
  %v54 = vld [vmem:[%s1 + $0x10] sm:$0xff]
  %v55 = vld [vmem:[%s1 + $0x18] sm:$0xff]
  %v56 = vld [vmem:[%s2] sm:$0x1]
  %v58 = vlaneseq
  %v59 = vshrl.u32 %v58, 7
  %v60 = vsub.s32 0, %v59
  %v61 = vrot.slane %v56, %v60
  %vm63 = vcmask 261120
  %v65 = vsel %vm63, %v20, 0
  %v68 = vsel %vm63, %v21, 0
  %v71 = vsel %vm63, %v22, 0
  %v74 = vsel %vm63, %v23, 0
  %v77 = vsel %vm63, %v24, 0
  %v80 = vsel %vm63, %v25, 0
  %v83 = vsel %vm63, %v26, 0
  %v86 = vsel %vm63, %v27, 0
  %v89 = vsel %vm63, %v28, 0
  %v92 = vsel %vm63, %v29, 0
  %v95 = vsel %vm63, %v30, 0
  %v98 = vsel %vm63, %v31, 0
  %v101 = vsel %vm63, %v32, 0
  %v104 = vsel %vm63, %v33, 0
  %v107 = vsel %vm63, %v34, 0
  %v110 = vsel %vm63, %v35, 0
  %v113 = vsel %vm63, %v36, 0
  %v116 = vsel %vm63, %v37, 0
  %v119 = vsel %vm63, %v38, 0
  %v122 = vsel %vm63, %v39, 0
  %v125 = vsel %vm63, %v40, 0
  %v128 = vsel %vm63, %v41, 0
  %v131 = vsel %vm63, %v42, 0
  %v134 = vsel %vm63, %v43, 0
  %v137 = vsel %vm63, %v44, 0
  %v140 = vsel %vm63, %v45, 0
  %v143 = vsel %vm63, %v46, 0
  %v146 = vsel %vm63, %v47, 0
  %v149 = vsel %vm63, %v48, 0
  %v152 = vsel %vm63, %v49, 0
  %v155 = vsel %vm63, %v50, 0
  %v158 = vsel %vm63, %v51, 0
  %160 = vmatprep.subr.mxu0 0.0
  %161 = vmatpush1.msra.mxu0 0.0
  %162 = vmatprep.subr.mxu0 0.0
  %163 = vmatpush1.msra.mxu0 0.0
  %164 = vmatprep.subr.mxu0 0.0
  %165 = vmatpush1.msra.mxu0 0.0
  %166 = vmatprep.subr.mxu0 0.0
  %167 = vmatpush1.msra.mxu0 0.0
  %168 = vmatprep.subr.mxu0 0.0
  %169 = vmatpush1.msra.mxu0 0.0
  %170 = vmatprep.subr.mxu0 0.0
  %171 = vmatpush1.msra.mxu0 0.0
  %172 = vmatprep.subr.mxu0 0.0
  %173 = vmatpush1.msra.mxu0 0.0
  %174 = vmatprep.subr.mxu0 0.0
  %175 = vmatpush1.msra.mxu0 0.0
  %176 = vmatprep.subr.mxu0 0.0
  %177 = vmatpush1.msra.mxu0 0.0
  %178 = vmatprep.subr.mxu0 0.0
  %179 = vmatpush1.msra.mxu0 0.0
  %180 = vmatprep.subr.mxu0 0.0
  %181 = vmatpush1.msra.mxu0 0.0
  %182 = vmatprep.subr.mxu0 0.0
  %183 = vmatpush1.msra.mxu0 0.0
  %184 = vmatprep.subr.mxu0 0.0
  %v185 = vand.u32 %v55, 4294901760
  %186 = vmatpush1.msra.mxu0 %v185
  %187 = vmatprep.subr.mxu0 0.0
  %v188 = vand.u32 %v54, 4294901760
  %189 = vmatpush1.msra.mxu0 %v188
  %190 = vmatprep.subr.mxu0 0.0
  %v191 = vand.u32 %v53, 4294901760
  %192 = vmatpush1.msra.mxu0 %v191
  %193 = vmatprep.subr.mxu0 0.0
  %v194 = vand.u32 %v52, 4294901760
  %195 = vmatpush1.msra.mxu0 %v194
  %196 = vmatprep.subr.mxu0 0.0
  %197 = vmatpush2.msra.mxu0 0.0
  %198 = vmatprep.subr.mxu0 0.0
  %199 = vmatpush2.msra.mxu0 0.0
  %200 = vmatprep.subr.mxu0 0.0
  %201 = vmatpush2.msra.mxu0 0.0
  %202 = vmatprep.subr.mxu0 0.0
  %203 = vmatpush2.msra.mxu0 0.0
  %204 = vmatprep.subr.mxu0 0.0
  %205 = vmatpush2.msra.mxu0 0.0
  %206 = vmatprep.subr.mxu0 0.0
  %207 = vmatpush2.msra.mxu0 0.0
  %208 = vmatprep.subr.mxu0 0.0
  %209 = vmatpush2.msra.mxu0 0.0
  %210 = vmatprep.subr.mxu0 0.0
  %211 = vmatpush2.msra.mxu0 0.0
  %212 = vmatprep.subr.mxu0 0.0
  %213 = vmatpush2.msra.mxu0 0.0
  %214 = vmatprep.subr.mxu0 0.0
  %215 = vmatpush2.msra.mxu0 0.0
  %216 = vmatprep.subr.mxu0 0.0
  %217 = vmatpush2.msra.mxu0 0.0
  %218 = vmatprep.subr.mxu0 0.0
  %219 = vmatpush2.msra.mxu0 0.0
  %220 = vmatprep.subr.mxu0 0.0
  %221 = vmatpush2.msra.mxu0 0.0
  %222 = vmatprep.subr.mxu0 0.0
  %223 = vmatpush2.msra.mxu0 0.0
  %224 = vmatprep.subr.mxu0 0.0
  %225 = vmatpush2.msra.mxu0 0.0
  %226 = vmatprep.subr.mxu0 0.0
  %227 = vmatpush2.msra.mxu0 0.0
  %228 = vmatprep.mubr.f32.mxu0 0.0
  %v229 = vand.u32 %v65, 4294901760
  %v230 = vsub.f32 %v65, %v229
  %v231 = vand.u32 %v230, 4294901760
  %v232 = vsub.f32 %v230, %v231
  %v233 = vand.u32 %v232, 4294901760
  %234 = vmatmul.mubr.f32.gmra.mxu0 %v233
  %v235 = vpop.f32.mrf.mxu0
  %v236 = vadd.f32 %v61, %v235
  %v237 = vpop.f32.mrf.mxu0
  %238 = vmatprep.mubr.f32.mxu0 0.0
  %v239 = vand.u32 %v68, 4294901760
  %v240 = vsub.f32 %v68, %v239
  %v241 = vand.u32 %v240, 4294901760
  %v242 = vsub.f32 %v240, %v241
  %v243 = vand.u32 %v242, 4294901760
  %244 = vmatmul.mubr.f32.gmra.mxu0 %v243
  %v245 = vpop.f32.mrf.mxu0
  %v246 = vadd.f32 %v61, %v245
  %v247 = vpop.f32.mrf.mxu0
  %248 = vmatprep.mubr.f32.mxu0 0.0
  %v249 = vand.u32 %v71, 4294901760
  %v250 = vsub.f32 %v71, %v249
  %v251 = vand.u32 %v250, 4294901760
  %v252 = vsub.f32 %v250, %v251
  %v253 = vand.u32 %v252, 4294901760
  %254 = vmatmul.mubr.f32.gmra.mxu0 %v253
  %v255 = vpop.f32.mrf.mxu0
  %v256 = vadd.f32 %v61, %v255
  %v257 = vpop.f32.mrf.mxu0
  %258 = vmatprep.mubr.f32.mxu0 0.0
  %v259 = vand.u32 %v74, 4294901760
  %v260 = vsub.f32 %v74, %v259
  %v261 = vand.u32 %v260, 4294901760
  %v262 = vsub.f32 %v260, %v261
  %v263 = vand.u32 %v262, 4294901760
  %264 = vmatmul.mubr.f32.gmra.mxu0 %v263
  %v265 = vpop.f32.mrf.mxu0
  %v266 = vadd.f32 %v61, %v265
  %v267 = vpop.f32.mrf.mxu0
  %268 = vmatprep.mubr.f32.mxu0 0.0
  %v269 = vand.u32 %v77, 4294901760
  %v270 = vsub.f32 %v77, %v269
  %v271 = vand.u32 %v270, 4294901760
  %v272 = vsub.f32 %v270, %v271
  %v273 = vand.u32 %v272, 4294901760
  %274 = vmatmul.mubr.f32.gmra.mxu0 %v273
  %v275 = vpop.f32.mrf.mxu0
  %v276 = vadd.f32 %v61, %v275
  %v277 = vpop.f32.mrf.mxu0
  %278 = vmatprep.mubr.f32.mxu0 0.0
  %v279 = vand.u32 %v80, 4294901760
  %v280 = vsub.f32 %v80, %v279
  %v281 = vand.u32 %v280, 4294901760
  %v282 = vsub.f32 %v280, %v281
  %v283 = vand.u32 %v282, 4294901760
  %284 = vmatmul.mubr.f32.gmra.mxu0 %v283
  %v285 = vpop.f32.mrf.mxu0
  %v286 = vadd.f32 %v61, %v285
  %v287 = vpop.f32.mrf.mxu0
  %288 = vmatprep.mubr.f32.mxu0 0.0
  %v289 = vand.u32 %v83, 4294901760
  %v290 = vsub.f32 %v83, %v289
  %v291 = vand.u32 %v290, 4294901760
  %v292 = vsub.f32 %v290, %v291
  %v293 = vand.u32 %v292, 4294901760
  %294 = vmatmul.mubr.f32.gmra.mxu0 %v293
  %v295 = vpop.f32.mrf.mxu0
  %v296 = vadd.f32 %v61, %v295
  %v297 = vpop.f32.mrf.mxu0
  %298 = vmatprep.mubr.f32.mxu0 0.0
  %v299 = vand.u32 %v86, 4294901760
  %v300 = vsub.f32 %v86, %v299
  %v301 = vand.u32 %v300, 4294901760
  %v302 = vsub.f32 %v300, %v301
  %v303 = vand.u32 %v302, 4294901760
  %304 = vmatmul.mubr.f32.gmra.mxu0 %v303
  %v305 = vpop.f32.mrf.mxu0
  %v306 = vadd.f32 %v61, %v305
  %v307 = vpop.f32.mrf.mxu0
  %308 = vmatprep.mubr.f32.mxu0 0.0
  %v309 = vand.u32 %v89, 4294901760
  %v310 = vsub.f32 %v89, %v309
  %v311 = vand.u32 %v310, 4294901760
  %v312 = vsub.f32 %v310, %v311
  %v313 = vand.u32 %v312, 4294901760
  %314 = vmatmul.mubr.f32.gmra.mxu0 %v313
  %v315 = vpop.f32.mrf.mxu0
  %v316 = vadd.f32 %v61, %v315
  %v317 = vpop.f32.mrf.mxu0
  %318 = vmatprep.mubr.f32.mxu0 0.0
  %v319 = vand.u32 %v92, 4294901760
  %v320 = vsub.f32 %v92, %v319
  %v321 = vand.u32 %v320, 4294901760
  %v322 = vsub.f32 %v320, %v321
  %v323 = vand.u32 %v322, 4294901760
  %324 = vmatmul.mubr.f32.gmra.mxu0 %v323
  %v325 = vpop.f32.mrf.mxu0
  %v326 = vadd.f32 %v61, %v325
  %v327 = vpop.f32.mrf.mxu0
  %328 = vmatprep.mubr.f32.mxu0 0.0
  %v329 = vand.u32 %v95, 4294901760
  %v330 = vsub.f32 %v95, %v329
  %v331 = vand.u32 %v330, 4294901760
  %v332 = vsub.f32 %v330, %v331
  %v333 = vand.u32 %v332, 4294901760
  %334 = vmatmul.mubr.f32.gmra.mxu0 %v333
  %v335 = vpop.f32.mrf.mxu0
  %v336 = vadd.f32 %v61, %v335
  %v337 = vpop.f32.mrf.mxu0
  %338 = vmatprep.mubr.f32.mxu0 0.0
  %v339 = vand.u32 %v98, 4294901760
  %v340 = vsub.f32 %v98, %v339
  %v341 = vand.u32 %v340, 4294901760
  %v342 = vsub.f32 %v340, %v341
  %v343 = vand.u32 %v342, 4294901760
  %344 = vmatmul.mubr.f32.gmra.mxu0 %v343
  %v345 = vpop.f32.mrf.mxu0
  %v346 = vadd.f32 %v61, %v345
  %v347 = vpop.f32.mrf.mxu0
  %348 = vmatprep.mubr.f32.mxu0 0.0
  %v349 = vand.u32 %v101, 4294901760
  %v350 = vsub.f32 %v101, %v349
  %v351 = vand.u32 %v350, 4294901760
  %v352 = vsub.f32 %v350, %v351
  %v353 = vand.u32 %v352, 4294901760
  %354 = vmatmul.mubr.f32.gmra.mxu0 %v353
  %v355 = vpop.f32.mrf.mxu0
  %v356 = vadd.f32 %v61, %v355
  %v357 = vpop.f32.mrf.mxu0
  %358 = vmatprep.mubr.f32.mxu0 0.0
  %v359 = vand.u32 %v104, 4294901760
  %v360 = vsub.f32 %v104, %v359
  %v361 = vand.u32 %v360, 4294901760
  %v362 = vsub.f32 %v360, %v361
  %v363 = vand.u32 %v362, 4294901760
  %364 = vmatmul.mubr.f32.gmra.mxu0 %v363
  %v365 = vpop.f32.mrf.mxu0
  %v366 = vadd.f32 %v61, %v365
  %v367 = vpop.f32.mrf.mxu0
  %368 = vmatprep.mubr.f32.mxu0 0.0
  %v369 = vand.u32 %v107, 4294901760
  %v370 = vsub.f32 %v107, %v369
  %v371 = vand.u32 %v370, 4294901760
  %v372 = vsub.f32 %v370, %v371
  %v373 = vand.u32 %v372, 4294901760
  %374 = vmatmul.mubr.f32.gmra.mxu0 %v373
  %v375 = vpop.f32.mrf.mxu0
  %v376 = vadd.f32 %v61, %v375
  %v377 = vpop.f32.mrf.mxu0
  %378 = vmatprep.mubr.f32.mxu0 0.0
  %v379 = vand.u32 %v110, 4294901760
  %v380 = vsub.f32 %v110, %v379
  %v381 = vand.u32 %v380, 4294901760
  %v382 = vsub.f32 %v380, %v381
  %v383 = vand.u32 %v382, 4294901760
  %384 = vmatmul.mubr.f32.gmra.mxu0 %v383
  %v385 = vpop.f32.mrf.mxu0
  %v386 = vadd.f32 %v61, %v385
  %v387 = vpop.f32.mrf.mxu0
  %388 = vmatprep.mubr.f32.mxu0 0.0
  %v389 = vand.u32 %v113, 4294901760
  %v390 = vsub.f32 %v113, %v389
  %v391 = vand.u32 %v390, 4294901760
  %v392 = vsub.f32 %v390, %v391
  %v393 = vand.u32 %v392, 4294901760
  %394 = vmatmul.mubr.f32.gmra.mxu0 %v393
  %v395 = vpop.f32.mrf.mxu0
  %v396 = vadd.f32 %v61, %v395
  %v397 = vpop.f32.mrf.mxu0
  %398 = vmatprep.mubr.f32.mxu0 0.0
  %v399 = vand.u32 %v116, 4294901760
  %v400 = vsub.f32 %v116, %v399
  %v401 = vand.u32 %v400, 4294901760
  %v402 = vsub.f32 %v400, %v401
  %v403 = vand.u32 %v402, 4294901760
  %404 = vmatmul.mubr.f32.gmra.mxu0 %v403
  %v405 = vpop.f32.mrf.mxu0
  %v406 = vadd.f32 %v61, %v405
  %v407 = vpop.f32.mrf.mxu0
  %408 = vmatprep.mubr.f32.mxu0 0.0
  %v409 = vand.u32 %v119, 4294901760
  %v410 = vsub.f32 %v119, %v409
  %v411 = vand.u32 %v410, 4294901760
  %v412 = vsub.f32 %v410, %v411
  %v413 = vand.u32 %v412, 4294901760
  %414 = vmatmul.mubr.f32.gmra.mxu0 %v413
  %v415 = vpop.f32.mrf.mxu0
  %v416 = vadd.f32 %v61, %v415
  %v417 = vpop.f32.mrf.mxu0
  %418 = vmatprep.mubr.f32.mxu0 0.0
  %v419 = vand.u32 %v122, 4294901760
  %v420 = vsub.f32 %v122, %v419
  %v421 = vand.u32 %v420, 4294901760
  %v422 = vsub.f32 %v420, %v421
  %v423 = vand.u32 %v422, 4294901760
  %424 = vmatmul.mubr.f32.gmra.mxu0 %v423
  %v425 = vpop.f32.mrf.mxu0
  %v426 = vadd.f32 %v61, %v425
  %v427 = vpop.f32.mrf.mxu0
  %428 = vmatprep.mubr.f32.mxu0 0.0
  %v429 = vand.u32 %v125, 4294901760
  %v430 = vsub.f32 %v125, %v429
  %v431 = vand.u32 %v430, 4294901760
  %v432 = vsub.f32 %v430, %v431
  %v433 = vand.u32 %v432, 4294901760
  %434 = vmatmul.mubr.f32.gmra.mxu0 %v433
  %v435 = vpop.f32.mrf.mxu0
  %v436 = vadd.f32 %v61, %v435
  %v437 = vpop.f32.mrf.mxu0
  %438 = vmatprep.mubr.f32.mxu0 0.0
  %v439 = vand.u32 %v128, 4294901760
  %v440 = vsub.f32 %v128, %v439
  %v441 = vand.u32 %v440, 4294901760
  %v442 = vsub.f32 %v440, %v441
  %v443 = vand.u32 %v442, 4294901760
  %444 = vmatmul.mubr.f32.gmra.mxu0 %v443
  %v445 = vpop.f32.mrf.mxu0
  %v446 = vadd.f32 %v61, %v445
  %v447 = vpop.f32.mrf.mxu0
  %448 = vmatprep.mubr.f32.mxu0 0.0
  %v449 = vand.u32 %v131, 4294901760
  %v450 = vsub.f32 %v131, %v449
  %v451 = vand.u32 %v450, 4294901760
  %v452 = vsub.f32 %v450, %v451
  %v453 = vand.u32 %v452, 4294901760
  %454 = vmatmul.mubr.f32.gmra.mxu0 %v453
  %v455 = vpop.f32.mrf.mxu0
  %v456 = vadd.f32 %v61, %v455
  %v457 = vpop.f32.mrf.mxu0
  %458 = vmatprep.mubr.f32.mxu0 0.0
  %v459 = vand.u32 %v134, 4294901760
  %v460 = vsub.f32 %v134, %v459
  %v461 = vand.u32 %v460, 4294901760
  %v462 = vsub.f32 %v460, %v461
  %v463 = vand.u32 %v462, 4294901760
  %464 = vmatmul.mubr.f32.gmra.mxu0 %v463
  %v465 = vpop.f32.mrf.mxu0
  %v466 = vadd.f32 %v61, %v465
  %v467 = vpop.f32.mrf.mxu0
  %468 = vmatprep.mubr.f32.mxu0 0.0
  %v469 = vand.u32 %v137, 4294901760
  %v470 = vsub.f32 %v137, %v469
  %v471 = vand.u32 %v470, 4294901760
  %v472 = vsub.f32 %v470, %v471
  %v473 = vand.u32 %v472, 4294901760
  %474 = vmatmul.mubr.f32.gmra.mxu0 %v473
  %v475 = vpop.f32.mrf.mxu0
  %v476 = vadd.f32 %v61, %v475
  %v477 = vpop.f32.mrf.mxu0
  %478 = vmatprep.mubr.f32.mxu0 0.0
  %v479 = vand.u32 %v140, 4294901760
  %v480 = vsub.f32 %v140, %v479
  %v481 = vand.u32 %v480, 4294901760
  %v482 = vsub.f32 %v480, %v481
  %v483 = vand.u32 %v482, 4294901760
  %484 = vmatmul.mubr.f32.gmra.mxu0 %v483
  %v485 = vpop.f32.mrf.mxu0
  %v486 = vadd.f32 %v61, %v485
  %v487 = vpop.f32.mrf.mxu0
  %488 = vmatprep.mubr.f32.mxu0 0.0
  %v489 = vand.u32 %v143, 4294901760
  %v490 = vsub.f32 %v143, %v489
  %v491 = vand.u32 %v490, 4294901760
  %v492 = vsub.f32 %v490, %v491
  %v493 = vand.u32 %v492, 4294901760
  %494 = vmatmul.mubr.f32.gmra.mxu0 %v493
  %v495 = vpop.f32.mrf.mxu0
  %v496 = vadd.f32 %v61, %v495
  %v497 = vpop.f32.mrf.mxu0
  %498 = vmatprep.mubr.f32.mxu0 0.0
  %v499 = vand.u32 %v146, 4294901760
  %v500 = vsub.f32 %v146, %v499
  %v501 = vand.u32 %v500, 4294901760
  %v502 = vsub.f32 %v500, %v501
  %v503 = vand.u32 %v502, 4294901760
  %504 = vmatmul.mubr.f32.gmra.mxu0 %v503
  %v505 = vpop.f32.mrf.mxu0
  %v506 = vadd.f32 %v61, %v505
  %v507 = vpop.f32.mrf.mxu0
  %508 = vmatprep.mubr.f32.mxu0 0.0
  %v509 = vand.u32 %v149, 4294901760
  %v510 = vsub.f32 %v149, %v509
  %v511 = vand.u32 %v510, 4294901760
  %v512 = vsub.f32 %v510, %v511
  %v513 = vand.u32 %v512, 4294901760
  %514 = vmatmul.mubr.f32.gmra.mxu0 %v513
  %v515 = vpop.f32.mrf.mxu0
  %v516 = vadd.f32 %v61, %v515
  %v517 = vpop.f32.mrf.mxu0
  %518 = vmatprep.mubr.f32.mxu0 0.0
  %v519 = vand.u32 %v152, 4294901760
  %v520 = vsub.f32 %v152, %v519
  %v521 = vand.u32 %v520, 4294901760
  %v522 = vsub.f32 %v520, %v521
  %v523 = vand.u32 %v522, 4294901760
  %524 = vmatmul.mubr.f32.gmra.mxu0 %v523
  %v525 = vpop.f32.mrf.mxu0
  %v526 = vadd.f32 %v61, %v525
  %v527 = vpop.f32.mrf.mxu0
  %528 = vmatprep.mubr.f32.mxu0 0.0
  %v529 = vand.u32 %v155, 4294901760
  %v530 = vsub.f32 %v155, %v529
  %v531 = vand.u32 %v530, 4294901760
  %v532 = vsub.f32 %v530, %v531
  %v533 = vand.u32 %v532, 4294901760
  %534 = vmatmul.mubr.f32.gmra.mxu0 %v533
  %v535 = vpop.f32.mrf.mxu0
  %v536 = vadd.f32 %v61, %v535
  %v537 = vpop.f32.mrf.mxu0
  %538 = vmatprep.mubr.f32.mxu0 0.0
  %v539 = vand.u32 %v158, 4294901760
  %v540 = vsub.f32 %v158, %v539
  %v541 = vand.u32 %v540, 4294901760
  %v542 = vsub.f32 %v540, %v541
  %v543 = vand.u32 %v542, 4294901760
  %544 = vmatmul.mubr.f32.gmra.mxu0 %v543
  %v545 = vpop.f32.mrf.mxu0
  %v546 = vadd.f32 %v61, %v545
  %v547 = vpop.f32.mrf.mxu0
  %548 = vdwg.mxu0
  %549 = vmatprep.subr.mxu0 0.0
  %550 = vmatpush1.msra.mxu0 0.0
  %551 = vmatprep.subr.mxu0 0.0
  %552 = vmatpush1.msra.mxu0 0.0
  %553 = vmatprep.subr.mxu0 0.0
  %554 = vmatpush1.msra.mxu0 0.0
  %555 = vmatprep.subr.mxu0 0.0
  %556 = vmatpush1.msra.mxu0 0.0
  %557 = vmatprep.subr.mxu0 0.0
  %558 = vmatpush1.msra.mxu0 0.0
  %559 = vmatprep.subr.mxu0 0.0
  %560 = vmatpush1.msra.mxu0 0.0
  %561 = vmatprep.subr.mxu0 0.0
  %562 = vmatpush1.msra.mxu0 0.0
  %563 = vmatprep.subr.mxu0 0.0
  %564 = vmatpush1.msra.mxu0 0.0
  %565 = vmatprep.subr.mxu0 0.0
  %566 = vmatpush1.msra.mxu0 0.0
  %567 = vmatprep.subr.mxu0 0.0
  %568 = vmatpush1.msra.mxu0 0.0
  %569 = vmatprep.subr.mxu0 0.0
  %570 = vmatpush1.msra.mxu0 0.0
  %571 = vmatprep.subr.mxu0 0.0
  %572 = vmatpush1.msra.mxu0 0.0
  %573 = vmatprep.subr.mxu0 0.0
  %v574 = vand.u32 %v55, 4294901760
  %v575 = vsub.f32 %v55, %v574
  %v576 = vand.u32 %v575, 4294901760
  %v577 = vsub.f32 %v575, %v576
  %v578 = vand.u32 %v577, 4294901760
  %579 = vmatpush1.msra.mxu0 %v578
  %580 = vmatprep.subr.mxu0 0.0
  %v581 = vand.u32 %v54, 4294901760
  %v582 = vsub.f32 %v54, %v581
  %v583 = vand.u32 %v582, 4294901760
  %v584 = vsub.f32 %v582, %v583
  %v585 = vand.u32 %v584, 4294901760
  %586 = vmatpush1.msra.mxu0 %v585
  %587 = vmatprep.subr.mxu0 0.0
  %v588 = vand.u32 %v53, 4294901760
  %v589 = vsub.f32 %v53, %v588
  %v590 = vand.u32 %v589, 4294901760
  %v591 = vsub.f32 %v589, %v590
  %v592 = vand.u32 %v591, 4294901760
  %593 = vmatpush1.msra.mxu0 %v592
  %594 = vmatprep.subr.mxu0 0.0
  %v595 = vand.u32 %v52, 4294901760
  %v596 = vsub.f32 %v52, %v595
  %v597 = vand.u32 %v596, 4294901760
  %v598 = vsub.f32 %v596, %v597
  %v599 = vand.u32 %v598, 4294901760
  %600 = vmatpush1.msra.mxu0 %v599
  %601 = vmatprep.subr.mxu0 0.0
  %602 = vmatpush2.msra.mxu0 0.0
  %603 = vmatprep.subr.mxu0 0.0
  %604 = vmatpush2.msra.mxu0 0.0
  %605 = vmatprep.subr.mxu0 0.0
  %606 = vmatpush2.msra.mxu0 0.0
  %607 = vmatprep.subr.mxu0 0.0
  %608 = vmatpush2.msra.mxu0 0.0
  %609 = vmatprep.subr.mxu0 0.0
  %610 = vmatpush2.msra.mxu0 0.0
  %611 = vmatprep.subr.mxu0 0.0
  %612 = vmatpush2.msra.mxu0 0.0
  %613 = vmatprep.subr.mxu0 0.0
  %614 = vmatpush2.msra.mxu0 0.0
  %615 = vmatprep.subr.mxu0 0.0
  %616 = vmatpush2.msra.mxu0 0.0
  %617 = vmatprep.subr.mxu0 0.0
  %618 = vmatpush2.msra.mxu0 0.0
  %619 = vmatprep.subr.mxu0 0.0
  %620 = vmatpush2.msra.mxu0 0.0
  %621 = vmatprep.subr.mxu0 0.0
  %622 = vmatpush2.msra.mxu0 0.0
  %623 = vmatprep.subr.mxu0 0.0
  %624 = vmatpush2.msra.mxu0 0.0
  %625 = vmatprep.subr.mxu0 0.0
  %626 = vmatpush2.msra.mxu0 0.0
  %627 = vmatprep.subr.mxu0 0.0
  %628 = vmatpush2.msra.mxu0 0.0
  %629 = vmatprep.subr.mxu0 0.0
  %630 = vmatpush2.msra.mxu0 0.0
  %631 = vmatprep.subr.mxu0 0.0
  %632 = vmatpush2.msra.mxu0 0.0
  %633 = vmatprep.mubr.f32.mxu0 0.0
  %v634 = vand.u32 %v65, 4294901760
  %635 = vmatmul.mubr.f32.gmra.mxu0 %v634
  %v636 = vpop.f32.mrf.mxu0
  %v637 = vadd.f32 %v236, %v636
  %v638 = vpop.f32.mrf.mxu0
  %639 = vmatprep.mubr.f32.mxu0 0.0
  %v640 = vand.u32 %v68, 4294901760
  %641 = vmatmul.mubr.f32.gmra.mxu0 %v640
  %v642 = vpop.f32.mrf.mxu0
  %v643 = vadd.f32 %v246, %v642
  %v644 = vpop.f32.mrf.mxu0
  %645 = vmatprep.mubr.f32.mxu0 0.0
  %v646 = vand.u32 %v71, 4294901760
  %647 = vmatmul.mubr.f32.gmra.mxu0 %v646
  %v648 = vpop.f32.mrf.mxu0
  %v649 = vadd.f32 %v256, %v648
  %v650 = vpop.f32.mrf.mxu0
  %651 = vmatprep.mubr.f32.mxu0 0.0
  %v652 = vand.u32 %v74, 4294901760
  %653 = vmatmul.mubr.f32.gmra.mxu0 %v652
  %v654 = vpop.f32.mrf.mxu0
  %v655 = vadd.f32 %v266, %v654
  %v656 = vpop.f32.mrf.mxu0
  %657 = vmatprep.mubr.f32.mxu0 0.0
  %v658 = vand.u32 %v77, 4294901760
  %659 = vmatmul.mubr.f32.gmra.mxu0 %v658
  %v660 = vpop.f32.mrf.mxu0
  %v661 = vadd.f32 %v276, %v660
  %v662 = vpop.f32.mrf.mxu0
  %663 = vmatprep.mubr.f32.mxu0 0.0
  %v664 = vand.u32 %v80, 4294901760
  %665 = vmatmul.mubr.f32.gmra.mxu0 %v664
  %v666 = vpop.f32.mrf.mxu0
  %v667 = vadd.f32 %v286, %v666
  %v668 = vpop.f32.mrf.mxu0
  %669 = vmatprep.mubr.f32.mxu0 0.0
  %v670 = vand.u32 %v83, 4294901760
  %671 = vmatmul.mubr.f32.gmra.mxu0 %v670
  %v672 = vpop.f32.mrf.mxu0
  %v673 = vadd.f32 %v296, %v672
  %v674 = vpop.f32.mrf.mxu0
  %675 = vmatprep.mubr.f32.mxu0 0.0
  %v676 = vand.u32 %v86, 4294901760
  %677 = vmatmul.mubr.f32.gmra.mxu0 %v676
  %v678 = vpop.f32.mrf.mxu0
  %v679 = vadd.f32 %v306, %v678
  %v680 = vpop.f32.mrf.mxu0
  %681 = vmatprep.mubr.f32.mxu0 0.0
  %v682 = vand.u32 %v89, 4294901760
  %683 = vmatmul.mubr.f32.gmra.mxu0 %v682
  %v684 = vpop.f32.mrf.mxu0
  %v685 = vadd.f32 %v316, %v684
  %v686 = vpop.f32.mrf.mxu0
  %687 = vmatprep.mubr.f32.mxu0 0.0
  %v688 = vand.u32 %v92, 4294901760
  %689 = vmatmul.mubr.f32.gmra.mxu0 %v688
  %v690 = vpop.f32.mrf.mxu0
  %v691 = vadd.f32 %v326, %v690
  %v692 = vpop.f32.mrf.mxu0
  %693 = vmatprep.mubr.f32.mxu0 0.0
  %v694 = vand.u32 %v95, 4294901760
  %695 = vmatmul.mubr.f32.gmra.mxu0 %v694
  %v696 = vpop.f32.mrf.mxu0
  %v697 = vadd.f32 %v336, %v696
  %v698 = vpop.f32.mrf.mxu0
  %699 = vmatprep.mubr.f32.mxu0 0.0
  %v700 = vand.u32 %v98, 4294901760
  %701 = vmatmul.mubr.f32.gmra.mxu0 %v700
  %v702 = vpop.f32.mrf.mxu0
  %v703 = vadd.f32 %v346, %v702
  %v704 = vpop.f32.mrf.mxu0
  %705 = vmatprep.mubr.f32.mxu0 0.0
  %v706 = vand.u32 %v101, 4294901760
  %707 = vmatmul.mubr.f32.gmra.mxu0 %v706
  %v708 = vpop.f32.mrf.mxu0
  %v709 = vadd.f32 %v356, %v708
  %v710 = vpop.f32.mrf.mxu0
  %711 = vmatprep.mubr.f32.mxu0 0.0
  %v712 = vand.u32 %v104, 4294901760
  %713 = vmatmul.mubr.f32.gmra.mxu0 %v712
  %v714 = vpop.f32.mrf.mxu0
  %v715 = vadd.f32 %v366, %v714
  %v716 = vpop.f32.mrf.mxu0
  %717 = vmatprep.mubr.f32.mxu0 0.0
  %v718 = vand.u32 %v107, 4294901760
  %719 = vmatmul.mubr.f32.gmra.mxu0 %v718
  %v720 = vpop.f32.mrf.mxu0
  %v721 = vadd.f32 %v376, %v720
  %v722 = vpop.f32.mrf.mxu0
  %723 = vmatprep.mubr.f32.mxu0 0.0
  %v724 = vand.u32 %v110, 4294901760
  %725 = vmatmul.mubr.f32.gmra.mxu0 %v724
  %v726 = vpop.f32.mrf.mxu0
  %v727 = vadd.f32 %v386, %v726
  %v728 = vpop.f32.mrf.mxu0
  %729 = vmatprep.mubr.f32.mxu0 0.0
  %v730 = vand.u32 %v113, 4294901760
  %731 = vmatmul.mubr.f32.gmra.mxu0 %v730
  %v732 = vpop.f32.mrf.mxu0
  %v733 = vadd.f32 %v396, %v732
  %v734 = vpop.f32.mrf.mxu0
  %735 = vmatprep.mubr.f32.mxu0 0.0
  %v736 = vand.u32 %v116, 4294901760
  %737 = vmatmul.mubr.f32.gmra.mxu0 %v736
  %v738 = vpop.f32.mrf.mxu0
  %v739 = vadd.f32 %v406, %v738
  %v740 = vpop.f32.mrf.mxu0
  %741 = vmatprep.mubr.f32.mxu0 0.0
  %v742 = vand.u32 %v119, 4294901760
  %743 = vmatmul.mubr.f32.gmra.mxu0 %v742
  %v744 = vpop.f32.mrf.mxu0
  %v745 = vadd.f32 %v416, %v744
  %v746 = vpop.f32.mrf.mxu0
  %747 = vmatprep.mubr.f32.mxu0 0.0
  %v748 = vand.u32 %v122, 4294901760
  %749 = vmatmul.mubr.f32.gmra.mxu0 %v748
  %v750 = vpop.f32.mrf.mxu0
  %v751 = vadd.f32 %v426, %v750
  %v752 = vpop.f32.mrf.mxu0
  %753 = vmatprep.mubr.f32.mxu0 0.0
  %v754 = vand.u32 %v125, 4294901760
  %755 = vmatmul.mubr.f32.gmra.mxu0 %v754
  %v756 = vpop.f32.mrf.mxu0
  %v757 = vadd.f32 %v436, %v756
  %v758 = vpop.f32.mrf.mxu0
  %759 = vmatprep.mubr.f32.mxu0 0.0
  %v760 = vand.u32 %v128, 4294901760
  %761 = vmatmul.mubr.f32.gmra.mxu0 %v760
  %v762 = vpop.f32.mrf.mxu0
  %v763 = vadd.f32 %v446, %v762
  %v764 = vpop.f32.mrf.mxu0
  %765 = vmatprep.mubr.f32.mxu0 0.0
  %v766 = vand.u32 %v131, 4294901760
  %767 = vmatmul.mubr.f32.gmra.mxu0 %v766
  %v768 = vpop.f32.mrf.mxu0
  %v769 = vadd.f32 %v456, %v768
  %v770 = vpop.f32.mrf.mxu0
  %771 = vmatprep.mubr.f32.mxu0 0.0
  %v772 = vand.u32 %v134, 4294901760
  %773 = vmatmul.mubr.f32.gmra.mxu0 %v772
  %v774 = vpop.f32.mrf.mxu0
  %v775 = vadd.f32 %v466, %v774
  %v776 = vpop.f32.mrf.mxu0
  %777 = vmatprep.mubr.f32.mxu0 0.0
  %v778 = vand.u32 %v137, 4294901760
  %779 = vmatmul.mubr.f32.gmra.mxu0 %v778
  %v780 = vpop.f32.mrf.mxu0
  %v781 = vadd.f32 %v476, %v780
  %v782 = vpop.f32.mrf.mxu0
  %783 = vmatprep.mubr.f32.mxu0 0.0
  %v784 = vand.u32 %v140, 4294901760
  %785 = vmatmul.mubr.f32.gmra.mxu0 %v784
  %v786 = vpop.f32.mrf.mxu0
  %v787 = vadd.f32 %v486, %v786
  %v788 = vpop.f32.mrf.mxu0
  %789 = vmatprep.mubr.f32.mxu0 0.0
  %v790 = vand.u32 %v143, 4294901760
  %791 = vmatmul.mubr.f32.gmra.mxu0 %v790
  %v792 = vpop.f32.mrf.mxu0
  %v793 = vadd.f32 %v496, %v792
  %v794 = vpop.f32.mrf.mxu0
  %795 = vmatprep.mubr.f32.mxu0 0.0
  %v796 = vand.u32 %v146, 4294901760
  %797 = vmatmul.mubr.f32.gmra.mxu0 %v796
  %v798 = vpop.f32.mrf.mxu0
  %v799 = vadd.f32 %v506, %v798
  %v800 = vpop.f32.mrf.mxu0
  %801 = vmatprep.mubr.f32.mxu0 0.0
  %v802 = vand.u32 %v149, 4294901760
  %803 = vmatmul.mubr.f32.gmra.mxu0 %v802
  %v804 = vpop.f32.mrf.mxu0
  %v805 = vadd.f32 %v516, %v804
  %v806 = vpop.f32.mrf.mxu0
  %807 = vmatprep.mubr.f32.mxu0 0.0
  %v808 = vand.u32 %v152, 4294901760
  %809 = vmatmul.mubr.f32.gmra.mxu0 %v808
  %v810 = vpop.f32.mrf.mxu0
  %v811 = vadd.f32 %v526, %v810
  %v812 = vpop.f32.mrf.mxu0
  %813 = vmatprep.mubr.f32.mxu0 0.0
  %v814 = vand.u32 %v155, 4294901760
  %815 = vmatmul.mubr.f32.gmra.mxu0 %v814
  %v816 = vpop.f32.mrf.mxu0
  %v817 = vadd.f32 %v536, %v816
  %v818 = vpop.f32.mrf.mxu0
  %819 = vmatprep.mubr.f32.mxu0 0.0
  %v820 = vand.u32 %v158, 4294901760
  %821 = vmatmul.mubr.f32.gmra.mxu0 %v820
  %v822 = vpop.f32.mrf.mxu0
  %v823 = vadd.f32 %v546, %v822
  %v824 = vpop.f32.mrf.mxu0
  %825 = vdwg.mxu0
  %826 = vmatprep.subr.mxu0 0.0
  %827 = vmatpush1.msra.mxu0 0.0
  %828 = vmatprep.subr.mxu0 0.0
  %829 = vmatpush1.msra.mxu0 0.0
  %830 = vmatprep.subr.mxu0 0.0
  %831 = vmatpush1.msra.mxu0 0.0
  %832 = vmatprep.subr.mxu0 0.0
  %833 = vmatpush1.msra.mxu0 0.0
  %834 = vmatprep.subr.mxu0 0.0
  %835 = vmatpush1.msra.mxu0 0.0
  %836 = vmatprep.subr.mxu0 0.0
  %837 = vmatpush1.msra.mxu0 0.0
  %838 = vmatprep.subr.mxu0 0.0
  %839 = vmatpush1.msra.mxu0 0.0
  %840 = vmatprep.subr.mxu0 0.0
  %841 = vmatpush1.msra.mxu0 0.0
  %842 = vmatprep.subr.mxu0 0.0
  %843 = vmatpush1.msra.mxu0 0.0
  %844 = vmatprep.subr.mxu0 0.0
  %845 = vmatpush1.msra.mxu0 0.0
  %846 = vmatprep.subr.mxu0 0.0
  %847 = vmatpush1.msra.mxu0 0.0
  %848 = vmatprep.subr.mxu0 0.0
  %849 = vmatpush1.msra.mxu0 0.0
  %850 = vmatprep.subr.mxu0 0.0
  %v851 = vand.u32 %v55, 4294901760
  %v852 = vsub.f32 %v55, %v851
  %853 = vmatpush1.msra.mxu0 %v852
  %854 = vmatprep.subr.mxu0 0.0
  %v855 = vand.u32 %v54, 4294901760
  %v856 = vsub.f32 %v54, %v855
  %857 = vmatpush1.msra.mxu0 %v856
  %858 = vmatprep.subr.mxu0 0.0
  %v859 = vand.u32 %v53, 4294901760
  %v860 = vsub.f32 %v53, %v859
  %861 = vmatpush1.msra.mxu0 %v860
  %862 = vmatprep.subr.mxu0 0.0
  %v863 = vand.u32 %v52, 4294901760
  %v864 = vsub.f32 %v52, %v863
  %865 = vmatpush1.msra.mxu0 %v864
  %866 = vmatprep.subr.mxu0 0.0
  %867 = vmatpush2.msra.mxu0 0.0
  %868 = vmatprep.subr.mxu0 0.0
  %869 = vmatpush2.msra.mxu0 0.0
  %870 = vmatprep.subr.mxu0 0.0
  %871 = vmatpush2.msra.mxu0 0.0
  %872 = vmatprep.subr.mxu0 0.0
  %873 = vmatpush2.msra.mxu0 0.0
  %874 = vmatprep.subr.mxu0 0.0
  %875 = vmatpush2.msra.mxu0 0.0
  %876 = vmatprep.subr.mxu0 0.0
  %877 = vmatpush2.msra.mxu0 0.0
  %878 = vmatprep.subr.mxu0 0.0
  %879 = vmatpush2.msra.mxu0 0.0
  %880 = vmatprep.subr.mxu0 0.0
  %881 = vmatpush2.msra.mxu0 0.0
  %882 = vmatprep.subr.mxu0 0.0
  %883 = vmatpush2.msra.mxu0 0.0
  %884 = vmatprep.subr.mxu0 0.0
  %885 = vmatpush2.msra.mxu0 0.0
  %886 = vmatprep.subr.mxu0 0.0
  %887 = vmatpush2.msra.mxu0 0.0
  %888 = vmatprep.subr.mxu0 0.0
  %889 = vmatpush2.msra.mxu0 0.0
  %890 = vmatprep.subr.mxu0 0.0
  %891 = vmatpush2.msra.mxu0 0.0
  %892 = vmatprep.subr.mxu0 0.0
  %893 = vmatpush2.msra.mxu0 0.0
  %894 = vmatprep.subr.mxu0 0.0
  %895 = vmatpush2.msra.mxu0 0.0
  %896 = vmatprep.subr.mxu0 0.0
  %897 = vmatpush2.msra.mxu0 0.0
  %898 = vmatprep.mubr.f32.mxu0 0.0
  %v899 = vand.u32 %v65, 4294901760
  %v900 = vsub.f32 %v65, %v899
  %901 = vmatmul.mubr.f32.gmra.mxu0 %v900
  %v902 = vpop.f32.mrf.mxu0
  %v903 = vadd.f32 %v637, %v902
  %v904 = vpop.f32.mrf.mxu0
  %905 = vmatprep.mubr.f32.mxu0 0.0
  %v906 = vand.u32 %v68, 4294901760
  %v907 = vsub.f32 %v68, %v906
  %908 = vmatmul.mubr.f32.gmra.mxu0 %v907
  %v909 = vpop.f32.mrf.mxu0
  %v910 = vadd.f32 %v643, %v909
  %v911 = vpop.f32.mrf.mxu0
  %912 = vmatprep.mubr.f32.mxu0 0.0
  %v913 = vand.u32 %v71, 4294901760
  %v914 = vsub.f32 %v71, %v913
  %915 = vmatmul.mubr.f32.gmra.mxu0 %v914
  %v916 = vpop.f32.mrf.mxu0
  %v917 = vadd.f32 %v649, %v916
  %v918 = vpop.f32.mrf.mxu0
  %919 = vmatprep.mubr.f32.mxu0 0.0
  %v920 = vand.u32 %v74, 4294901760
  %v921 = vsub.f32 %v74, %v920
  %922 = vmatmul.mubr.f32.gmra.mxu0 %v921
  %v923 = vpop.f32.mrf.mxu0
  %v924 = vadd.f32 %v655, %v923
  %v925 = vpop.f32.mrf.mxu0
  %926 = vmatprep.mubr.f32.mxu0 0.0
  %v927 = vand.u32 %v77, 4294901760
  %v928 = vsub.f32 %v77, %v927
  %929 = vmatmul.mubr.f32.gmra.mxu0 %v928
  %v930 = vpop.f32.mrf.mxu0
  %v931 = vadd.f32 %v661, %v930
  %v932 = vpop.f32.mrf.mxu0
  %933 = vmatprep.mubr.f32.mxu0 0.0
  %v934 = vand.u32 %v80, 4294901760
  %v935 = vsub.f32 %v80, %v934
  %936 = vmatmul.mubr.f32.gmra.mxu0 %v935
  %v937 = vpop.f32.mrf.mxu0
  %v938 = vadd.f32 %v667, %v937
  %v939 = vpop.f32.mrf.mxu0
  %940 = vmatprep.mubr.f32.mxu0 0.0
  %v941 = vand.u32 %v83, 4294901760
  %v942 = vsub.f32 %v83, %v941
  %943 = vmatmul.mubr.f32.gmra.mxu0 %v942
  %v944 = vpop.f32.mrf.mxu0
  %v945 = vadd.f32 %v673, %v944
  %v946 = vpop.f32.mrf.mxu0
  %947 = vmatprep.mubr.f32.mxu0 0.0
  %v948 = vand.u32 %v86, 4294901760
  %v949 = vsub.f32 %v86, %v948
  %950 = vmatmul.mubr.f32.gmra.mxu0 %v949
  %v951 = vpop.f32.mrf.mxu0
  %v952 = vadd.f32 %v679, %v951
  %v953 = vpop.f32.mrf.mxu0
  %954 = vmatprep.mubr.f32.mxu0 0.0
  %v955 = vand.u32 %v89, 4294901760
  %v956 = vsub.f32 %v89, %v955
  %957 = vmatmul.mubr.f32.gmra.mxu0 %v956
  %v958 = vpop.f32.mrf.mxu0
  %v959 = vadd.f32 %v685, %v958
  %v960 = vpop.f32.mrf.mxu0
  %961 = vmatprep.mubr.f32.mxu0 0.0
  %v962 = vand.u32 %v92, 4294901760
  %v963 = vsub.f32 %v92, %v962
  %964 = vmatmul.mubr.f32.gmra.mxu0 %v963
  %v965 = vpop.f32.mrf.mxu0
  %v966 = vadd.f32 %v691, %v965
  %v967 = vpop.f32.mrf.mxu0
  %968 = vmatprep.mubr.f32.mxu0 0.0
  %v969 = vand.u32 %v95, 4294901760
  %v970 = vsub.f32 %v95, %v969
  %971 = vmatmul.mubr.f32.gmra.mxu0 %v970
  %v972 = vpop.f32.mrf.mxu0
  %v973 = vadd.f32 %v697, %v972
  %v974 = vpop.f32.mrf.mxu0
  %975 = vmatprep.mubr.f32.mxu0 0.0
  %v976 = vand.u32 %v98, 4294901760
  %v977 = vsub.f32 %v98, %v976
  %978 = vmatmul.mubr.f32.gmra.mxu0 %v977
  %v979 = vpop.f32.mrf.mxu0
  %v980 = vadd.f32 %v703, %v979
  %v981 = vpop.f32.mrf.mxu0
  %982 = vmatprep.mubr.f32.mxu0 0.0
  %v983 = vand.u32 %v101, 4294901760
  %v984 = vsub.f32 %v101, %v983
  %985 = vmatmul.mubr.f32.gmra.mxu0 %v984
  %v986 = vpop.f32.mrf.mxu0
  %v987 = vadd.f32 %v709, %v986
  %v988 = vpop.f32.mrf.mxu0
  %989 = vmatprep.mubr.f32.mxu0 0.0
  %v990 = vand.u32 %v104, 4294901760
  %v991 = vsub.f32 %v104, %v990
  %992 = vmatmul.mubr.f32.gmra.mxu0 %v991
  %v993 = vpop.f32.mrf.mxu0
  %v994 = vadd.f32 %v715, %v993
  %v995 = vpop.f32.mrf.mxu0
  %996 = vmatprep.mubr.f32.mxu0 0.0
  %v997 = vand.u32 %v107, 4294901760
  %v998 = vsub.f32 %v107, %v997
  %999 = vmatmul.mubr.f32.gmra.mxu0 %v998
  %v1000 = vpop.f32.mrf.mxu0
  %v1001 = vadd.f32 %v721, %v1000
  %v1002 = vpop.f32.mrf.mxu0
  %1003 = vmatprep.mubr.f32.mxu0 0.0
  %v1004 = vand.u32 %v110, 4294901760
  %v1005 = vsub.f32 %v110, %v1004
  %1006 = vmatmul.mubr.f32.gmra.mxu0 %v1005
  %v1007 = vpop.f32.mrf.mxu0
  %v1008 = vadd.f32 %v727, %v1007
  %v1009 = vpop.f32.mrf.mxu0
  %1010 = vmatprep.mubr.f32.mxu0 0.0
  %v1011 = vand.u32 %v113, 4294901760
  %v1012 = vsub.f32 %v113, %v1011
  %1013 = vmatmul.mubr.f32.gmra.mxu0 %v1012
  %v1014 = vpop.f32.mrf.mxu0
  %v1015 = vadd.f32 %v733, %v1014
  %v1016 = vpop.f32.mrf.mxu0
  %1017 = vmatprep.mubr.f32.mxu0 0.0
  %v1018 = vand.u32 %v116, 4294901760
  %v1019 = vsub.f32 %v116, %v1018
  %1020 = vmatmul.mubr.f32.gmra.mxu0 %v1019
  %v1021 = vpop.f32.mrf.mxu0
  %v1022 = vadd.f32 %v739, %v1021
  %v1023 = vpop.f32.mrf.mxu0
  %1024 = vmatprep.mubr.f32.mxu0 0.0
  %v1025 = vand.u32 %v119, 4294901760
  %v1026 = vsub.f32 %v119, %v1025
  %1027 = vmatmul.mubr.f32.gmra.mxu0 %v1026
  %v1028 = vpop.f32.mrf.mxu0
  %v1029 = vadd.f32 %v745, %v1028
  %v1030 = vpop.f32.mrf.mxu0
  %1031 = vmatprep.mubr.f32.mxu0 0.0
  %v1032 = vand.u32 %v122, 4294901760
  %v1033 = vsub.f32 %v122, %v1032
  %1034 = vmatmul.mubr.f32.gmra.mxu0 %v1033
  %v1035 = vpop.f32.mrf.mxu0
  %v1036 = vadd.f32 %v751, %v1035
  %v1037 = vpop.f32.mrf.mxu0
  %1038 = vmatprep.mubr.f32.mxu0 0.0
  %v1039 = vand.u32 %v125, 4294901760
  %v1040 = vsub.f32 %v125, %v1039
  %1041 = vmatmul.mubr.f32.gmra.mxu0 %v1040
  %v1042 = vpop.f32.mrf.mxu0
  %v1043 = vadd.f32 %v757, %v1042
  %v1044 = vpop.f32.mrf.mxu0
  %1045 = vmatprep.mubr.f32.mxu0 0.0
  %v1046 = vand.u32 %v128, 4294901760
  %v1047 = vsub.f32 %v128, %v1046
  %1048 = vmatmul.mubr.f32.gmra.mxu0 %v1047
  %v1049 = vpop.f32.mrf.mxu0
  %v1050 = vadd.f32 %v763, %v1049
  %v1051 = vpop.f32.mrf.mxu0
  %1052 = vmatprep.mubr.f32.mxu0 0.0
  %v1053 = vand.u32 %v131, 4294901760
  %v1054 = vsub.f32 %v131, %v1053
  %1055 = vmatmul.mubr.f32.gmra.mxu0 %v1054
  %v1056 = vpop.f32.mrf.mxu0
  %v1057 = vadd.f32 %v769, %v1056
  %v1058 = vpop.f32.mrf.mxu0
  %1059 = vmatprep.mubr.f32.mxu0 0.0
  %v1060 = vand.u32 %v134, 4294901760
  %v1061 = vsub.f32 %v134, %v1060
  %1062 = vmatmul.mubr.f32.gmra.mxu0 %v1061
  %v1063 = vpop.f32.mrf.mxu0
  %v1064 = vadd.f32 %v775, %v1063
  %v1065 = vpop.f32.mrf.mxu0
  %1066 = vmatprep.mubr.f32.mxu0 0.0
  %v1067 = vand.u32 %v137, 4294901760
  %v1068 = vsub.f32 %v137, %v1067
  %1069 = vmatmul.mubr.f32.gmra.mxu0 %v1068
  %v1070 = vpop.f32.mrf.mxu0
  %v1071 = vadd.f32 %v781, %v1070
  %v1072 = vpop.f32.mrf.mxu0
  %1073 = vmatprep.mubr.f32.mxu0 0.0
  %v1074 = vand.u32 %v140, 4294901760
  %v1075 = vsub.f32 %v140, %v1074
  %1076 = vmatmul.mubr.f32.gmra.mxu0 %v1075
  %v1077 = vpop.f32.mrf.mxu0
  %v1078 = vadd.f32 %v787, %v1077
  %v1079 = vpop.f32.mrf.mxu0
  %1080 = vmatprep.mubr.f32.mxu0 0.0
  %v1081 = vand.u32 %v143, 4294901760
  %v1082 = vsub.f32 %v143, %v1081
  %1083 = vmatmul.mubr.f32.gmra.mxu0 %v1082
  %v1084 = vpop.f32.mrf.mxu0
  %v1085 = vadd.f32 %v793, %v1084
  %v1086 = vpop.f32.mrf.mxu0
  %1087 = vmatprep.mubr.f32.mxu0 0.0
  %v1088 = vand.u32 %v146, 4294901760
  %v1089 = vsub.f32 %v146, %v1088
  %1090 = vmatmul.mubr.f32.gmra.mxu0 %v1089
  %v1091 = vpop.f32.mrf.mxu0
  %v1092 = vadd.f32 %v799, %v1091
  %v1093 = vpop.f32.mrf.mxu0
  %1094 = vmatprep.mubr.f32.mxu0 0.0
  %v1095 = vand.u32 %v149, 4294901760
  %v1096 = vsub.f32 %v149, %v1095
  %1097 = vmatmul.mubr.f32.gmra.mxu0 %v1096
  %v1098 = vpop.f32.mrf.mxu0
  %v1099 = vadd.f32 %v805, %v1098
  %v1100 = vpop.f32.mrf.mxu0
  %1101 = vmatprep.mubr.f32.mxu0 0.0
  %v1102 = vand.u32 %v152, 4294901760
  %v1103 = vsub.f32 %v152, %v1102
  %1104 = vmatmul.mubr.f32.gmra.mxu0 %v1103
  %v1105 = vpop.f32.mrf.mxu0
  %v1106 = vadd.f32 %v811, %v1105
  %v1107 = vpop.f32.mrf.mxu0
  %1108 = vmatprep.mubr.f32.mxu0 0.0
  %v1109 = vand.u32 %v155, 4294901760
  %v1110 = vsub.f32 %v155, %v1109
  %1111 = vmatmul.mubr.f32.gmra.mxu0 %v1110
  %v1112 = vpop.f32.mrf.mxu0
  %v1113 = vadd.f32 %v817, %v1112
  %v1114 = vpop.f32.mrf.mxu0
  %1115 = vmatprep.mubr.f32.mxu0 0.0
  %v1116 = vand.u32 %v158, 4294901760
  %v1117 = vsub.f32 %v158, %v1116
  %1118 = vmatmul.mubr.f32.gmra.mxu0 %v1117
  %v1119 = vpop.f32.mrf.mxu0
  %v1120 = vadd.f32 %v823, %v1119
  %v1121 = vpop.f32.mrf.mxu0
  %1122 = vdwg.mxu0
  %1123 = vmatprep.subr.mxu0 0.0
  %1124 = vmatpush1.msra.mxu0 0.0
  %1125 = vmatprep.subr.mxu0 0.0
  %1126 = vmatpush1.msra.mxu0 0.0
  %1127 = vmatprep.subr.mxu0 0.0
  %1128 = vmatpush1.msra.mxu0 0.0
  %1129 = vmatprep.subr.mxu0 0.0
  %1130 = vmatpush1.msra.mxu0 0.0
  %1131 = vmatprep.subr.mxu0 0.0
  %1132 = vmatpush1.msra.mxu0 0.0
  %1133 = vmatprep.subr.mxu0 0.0
  %1134 = vmatpush1.msra.mxu0 0.0
  %1135 = vmatprep.subr.mxu0 0.0
  %1136 = vmatpush1.msra.mxu0 0.0
  %1137 = vmatprep.subr.mxu0 0.0
  %1138 = vmatpush1.msra.mxu0 0.0
  %1139 = vmatprep.subr.mxu0 0.0
  %1140 = vmatpush1.msra.mxu0 0.0
  %1141 = vmatprep.subr.mxu0 0.0
  %1142 = vmatpush1.msra.mxu0 0.0
  %1143 = vmatprep.subr.mxu0 0.0
  %1144 = vmatpush1.msra.mxu0 0.0
  %1145 = vmatprep.subr.mxu0 0.0
  %1146 = vmatpush1.msra.mxu0 0.0
  %1147 = vmatprep.subr.mxu0 0.0
  %v1148 = vand.u32 %v55, 4294901760
  %1149 = vmatpush1.msra.mxu0 %v1148
  %1150 = vmatprep.subr.mxu0 0.0
  %v1151 = vand.u32 %v54, 4294901760
  %1152 = vmatpush1.msra.mxu0 %v1151
  %1153 = vmatprep.subr.mxu0 0.0
  %v1154 = vand.u32 %v53, 4294901760
  %1155 = vmatpush1.msra.mxu0 %v1154
  %1156 = vmatprep.subr.mxu0 0.0
  %v1157 = vand.u32 %v52, 4294901760
  %1158 = vmatpush1.msra.mxu0 %v1157
  %1159 = vmatprep.subr.mxu0 0.0
  %1160 = vmatpush2.msra.mxu0 0.0
  %1161 = vmatprep.subr.mxu0 0.0
  %1162 = vmatpush2.msra.mxu0 0.0
  %1163 = vmatprep.subr.mxu0 0.0
  %1164 = vmatpush2.msra.mxu0 0.0
  %1165 = vmatprep.subr.mxu0 0.0
  %1166 = vmatpush2.msra.mxu0 0.0
  %1167 = vmatprep.subr.mxu0 0.0
  %1168 = vmatpush2.msra.mxu0 0.0
  %1169 = vmatprep.subr.mxu0 0.0
  %1170 = vmatpush2.msra.mxu0 0.0
  %1171 = vmatprep.subr.mxu0 0.0
  %1172 = vmatpush2.msra.mxu0 0.0
  %1173 = vmatprep.subr.mxu0 0.0
  %1174 = vmatpush2.msra.mxu0 0.0
  %1175 = vmatprep.subr.mxu0 0.0
  %1176 = vmatpush2.msra.mxu0 0.0
  %1177 = vmatprep.subr.mxu0 0.0
  %1178 = vmatpush2.msra.mxu0 0.0
  %1179 = vmatprep.subr.mxu0 0.0
  %1180 = vmatpush2.msra.mxu0 0.0
  %1181 = vmatprep.subr.mxu0 0.0
  %1182 = vmatpush2.msra.mxu0 0.0
  %1183 = vmatprep.subr.mxu0 0.0
  %1184 = vmatpush2.msra.mxu0 0.0
  %1185 = vmatprep.subr.mxu0 0.0
  %1186 = vmatpush2.msra.mxu0 0.0
  %1187 = vmatprep.subr.mxu0 0.0
  %1188 = vmatpush2.msra.mxu0 0.0
  %1189 = vmatprep.subr.mxu0 0.0
  %1190 = vmatpush2.msra.mxu0 0.0
  %1191 = vmatprep.mubr.f32.mxu0 0.0
  %v1192 = vand.u32 %v65, 4294901760
  %v1193 = vsub.f32 %v65, %v1192
  %v1194 = vand.u32 %v1193, 4294901760
  %1195 = vmatmul.mubr.f32.gmra.mxu0 %v1194
  %v1196 = vpop.f32.mrf.mxu0
  %v1197 = vadd.f32 %v903, %v1196
  %v1198 = vpop.f32.mrf.mxu0
  %1199 = vmatprep.mubr.f32.mxu0 0.0
  %v1200 = vand.u32 %v68, 4294901760
  %v1201 = vsub.f32 %v68, %v1200
  %v1202 = vand.u32 %v1201, 4294901760
  %1203 = vmatmul.mubr.f32.gmra.mxu0 %v1202
  %v1204 = vpop.f32.mrf.mxu0
  %v1205 = vadd.f32 %v910, %v1204
  %v1206 = vpop.f32.mrf.mxu0
  %1207 = vmatprep.mubr.f32.mxu0 0.0
  %v1208 = vand.u32 %v71, 4294901760
  %v1209 = vsub.f32 %v71, %v1208
  %v1210 = vand.u32 %v1209, 4294901760
  %1211 = vmatmul.mubr.f32.gmra.mxu0 %v1210
  %v1212 = vpop.f32.mrf.mxu0
  %v1213 = vadd.f32 %v917, %v1212
  %v1214 = vpop.f32.mrf.mxu0
  %1215 = vmatprep.mubr.f32.mxu0 0.0
  %v1216 = vand.u32 %v74, 4294901760
  %v1217 = vsub.f32 %v74, %v1216
  %v1218 = vand.u32 %v1217, 4294901760
  %1219 = vmatmul.mubr.f32.gmra.mxu0 %v1218
  %v1220 = vpop.f32.mrf.mxu0
  %v1221 = vadd.f32 %v924, %v1220
  %v1222 = vpop.f32.mrf.mxu0
  %1223 = vmatprep.mubr.f32.mxu0 0.0
  %v1224 = vand.u32 %v77, 4294901760
  %v1225 = vsub.f32 %v77, %v1224
  %v1226 = vand.u32 %v1225, 4294901760
  %1227 = vmatmul.mubr.f32.gmra.mxu0 %v1226
  %v1228 = vpop.f32.mrf.mxu0
  %v1229 = vadd.f32 %v931, %v1228
  %v1230 = vpop.f32.mrf.mxu0
  %1231 = vmatprep.mubr.f32.mxu0 0.0
  %v1232 = vand.u32 %v80, 4294901760
  %v1233 = vsub.f32 %v80, %v1232
  %v1234 = vand.u32 %v1233, 4294901760
  %1235 = vmatmul.mubr.f32.gmra.mxu0 %v1234
  %v1236 = vpop.f32.mrf.mxu0
  %v1237 = vadd.f32 %v938, %v1236
  %v1238 = vpop.f32.mrf.mxu0
  %1239 = vmatprep.mubr.f32.mxu0 0.0
  %v1240 = vand.u32 %v83, 4294901760
  %v1241 = vsub.f32 %v83, %v1240
  %v1242 = vand.u32 %v1241, 4294901760
  %1243 = vmatmul.mubr.f32.gmra.mxu0 %v1242
  %v1244 = vpop.f32.mrf.mxu0
  %v1245 = vadd.f32 %v945, %v1244
  %v1246 = vpop.f32.mrf.mxu0
  %1247 = vmatprep.mubr.f32.mxu0 0.0
  %v1248 = vand.u32 %v86, 4294901760
  %v1249 = vsub.f32 %v86, %v1248
  %v1250 = vand.u32 %v1249, 4294901760
  %1251 = vmatmul.mubr.f32.gmra.mxu0 %v1250
  %v1252 = vpop.f32.mrf.mxu0
  %v1253 = vadd.f32 %v952, %v1252
  %v1254 = vpop.f32.mrf.mxu0
  %1255 = vmatprep.mubr.f32.mxu0 0.0
  %v1256 = vand.u32 %v89, 4294901760
  %v1257 = vsub.f32 %v89, %v1256
  %v1258 = vand.u32 %v1257, 4294901760
  %1259 = vmatmul.mubr.f32.gmra.mxu0 %v1258
  %v1260 = vpop.f32.mrf.mxu0
  %v1261 = vadd.f32 %v959, %v1260
  %v1262 = vpop.f32.mrf.mxu0
  %1263 = vmatprep.mubr.f32.mxu0 0.0
  %v1264 = vand.u32 %v92, 4294901760
  %v1265 = vsub.f32 %v92, %v1264
  %v1266 = vand.u32 %v1265, 4294901760
  %1267 = vmatmul.mubr.f32.gmra.mxu0 %v1266
  %v1268 = vpop.f32.mrf.mxu0
  %v1269 = vadd.f32 %v966, %v1268
  %v1270 = vpop.f32.mrf.mxu0
  %1271 = vmatprep.mubr.f32.mxu0 0.0
  %v1272 = vand.u32 %v95, 4294901760
  %v1273 = vsub.f32 %v95, %v1272
  %v1274 = vand.u32 %v1273, 4294901760
  %1275 = vmatmul.mubr.f32.gmra.mxu0 %v1274
  %v1276 = vpop.f32.mrf.mxu0
  %v1277 = vadd.f32 %v973, %v1276
  %v1278 = vpop.f32.mrf.mxu0
  %1279 = vmatprep.mubr.f32.mxu0 0.0
  %v1280 = vand.u32 %v98, 4294901760
  %v1281 = vsub.f32 %v98, %v1280
  %v1282 = vand.u32 %v1281, 4294901760
  %1283 = vmatmul.mubr.f32.gmra.mxu0 %v1282
  %v1284 = vpop.f32.mrf.mxu0
  %v1285 = vadd.f32 %v980, %v1284
  %v1286 = vpop.f32.mrf.mxu0
  %1287 = vmatprep.mubr.f32.mxu0 0.0
  %v1288 = vand.u32 %v101, 4294901760
  %v1289 = vsub.f32 %v101, %v1288
  %v1290 = vand.u32 %v1289, 4294901760
  %1291 = vmatmul.mubr.f32.gmra.mxu0 %v1290
  %v1292 = vpop.f32.mrf.mxu0
  %v1293 = vadd.f32 %v987, %v1292
  %v1294 = vpop.f32.mrf.mxu0
  %1295 = vmatprep.mubr.f32.mxu0 0.0
  %v1296 = vand.u32 %v104, 4294901760
  %v1297 = vsub.f32 %v104, %v1296
  %v1298 = vand.u32 %v1297, 4294901760
  %1299 = vmatmul.mubr.f32.gmra.mxu0 %v1298
  %v1300 = vpop.f32.mrf.mxu0
  %v1301 = vadd.f32 %v994, %v1300
  %v1302 = vpop.f32.mrf.mxu0
  %1303 = vmatprep.mubr.f32.mxu0 0.0
  %v1304 = vand.u32 %v107, 4294901760
  %v1305 = vsub.f32 %v107, %v1304
  %v1306 = vand.u32 %v1305, 4294901760
  %1307 = vmatmul.mubr.f32.gmra.mxu0 %v1306
  %v1308 = vpop.f32.mrf.mxu0
  %v1309 = vadd.f32 %v1001, %v1308
  %v1310 = vpop.f32.mrf.mxu0
  %1311 = vmatprep.mubr.f32.mxu0 0.0
  %v1312 = vand.u32 %v110, 4294901760
  %v1313 = vsub.f32 %v110, %v1312
  %v1314 = vand.u32 %v1313, 4294901760
  %1315 = vmatmul.mubr.f32.gmra.mxu0 %v1314
  %v1316 = vpop.f32.mrf.mxu0
  %v1317 = vadd.f32 %v1008, %v1316
  %v1318 = vpop.f32.mrf.mxu0
  %1319 = vmatprep.mubr.f32.mxu0 0.0
  %v1320 = vand.u32 %v113, 4294901760
  %v1321 = vsub.f32 %v113, %v1320
  %v1322 = vand.u32 %v1321, 4294901760
  %1323 = vmatmul.mubr.f32.gmra.mxu0 %v1322
  %v1324 = vpop.f32.mrf.mxu0
  %v1325 = vadd.f32 %v1015, %v1324
  %v1326 = vpop.f32.mrf.mxu0
  %1327 = vmatprep.mubr.f32.mxu0 0.0
  %v1328 = vand.u32 %v116, 4294901760
  %v1329 = vsub.f32 %v116, %v1328
  %v1330 = vand.u32 %v1329, 4294901760
  %1331 = vmatmul.mubr.f32.gmra.mxu0 %v1330
  %v1332 = vpop.f32.mrf.mxu0
  %v1333 = vadd.f32 %v1022, %v1332
  %v1334 = vpop.f32.mrf.mxu0
  %1335 = vmatprep.mubr.f32.mxu0 0.0
  %v1336 = vand.u32 %v119, 4294901760
  %v1337 = vsub.f32 %v119, %v1336
  %v1338 = vand.u32 %v1337, 4294901760
  %1339 = vmatmul.mubr.f32.gmra.mxu0 %v1338
  %v1340 = vpop.f32.mrf.mxu0
  %v1341 = vadd.f32 %v1029, %v1340
  %v1342 = vpop.f32.mrf.mxu0
  %1343 = vmatprep.mubr.f32.mxu0 0.0
  %v1344 = vand.u32 %v122, 4294901760
  %v1345 = vsub.f32 %v122, %v1344
  %v1346 = vand.u32 %v1345, 4294901760
  %1347 = vmatmul.mubr.f32.gmra.mxu0 %v1346
  %v1348 = vpop.f32.mrf.mxu0
  %v1349 = vadd.f32 %v1036, %v1348
  %v1350 = vpop.f32.mrf.mxu0
  %1351 = vmatprep.mubr.f32.mxu0 0.0
  %v1352 = vand.u32 %v125, 4294901760
  %v1353 = vsub.f32 %v125, %v1352
  %v1354 = vand.u32 %v1353, 4294901760
  %1355 = vmatmul.mubr.f32.gmra.mxu0 %v1354
  %v1356 = vpop.f32.mrf.mxu0
  %v1357 = vadd.f32 %v1043, %v1356
  %v1358 = vpop.f32.mrf.mxu0
  %1359 = vmatprep.mubr.f32.mxu0 0.0
  %v1360 = vand.u32 %v128, 4294901760
  %v1361 = vsub.f32 %v128, %v1360
  %v1362 = vand.u32 %v1361, 4294901760
  %1363 = vmatmul.mubr.f32.gmra.mxu0 %v1362
  %v1364 = vpop.f32.mrf.mxu0
  %v1365 = vadd.f32 %v1050, %v1364
  %v1366 = vpop.f32.mrf.mxu0
  %1367 = vmatprep.mubr.f32.mxu0 0.0
  %v1368 = vand.u32 %v131, 4294901760
  %v1369 = vsub.f32 %v131, %v1368
  %v1370 = vand.u32 %v1369, 4294901760
  %1371 = vmatmul.mubr.f32.gmra.mxu0 %v1370
  %v1372 = vpop.f32.mrf.mxu0
  %v1373 = vadd.f32 %v1057, %v1372
  %v1374 = vpop.f32.mrf.mxu0
  %1375 = vmatprep.mubr.f32.mxu0 0.0
  %v1376 = vand.u32 %v134, 4294901760
  %v1377 = vsub.f32 %v134, %v1376
  %v1378 = vand.u32 %v1377, 4294901760
  %1379 = vmatmul.mubr.f32.gmra.mxu0 %v1378
  %v1380 = vpop.f32.mrf.mxu0
  %v1381 = vadd.f32 %v1064, %v1380
  %v1382 = vpop.f32.mrf.mxu0
  %1383 = vmatprep.mubr.f32.mxu0 0.0
  %v1384 = vand.u32 %v137, 4294901760
  %v1385 = vsub.f32 %v137, %v1384
  %v1386 = vand.u32 %v1385, 4294901760
  %1387 = vmatmul.mubr.f32.gmra.mxu0 %v1386
  %v1388 = vpop.f32.mrf.mxu0
  %v1389 = vadd.f32 %v1071, %v1388
  %v1390 = vpop.f32.mrf.mxu0
  %1391 = vmatprep.mubr.f32.mxu0 0.0
  %v1392 = vand.u32 %v140, 4294901760
  %v1393 = vsub.f32 %v140, %v1392
  %v1394 = vand.u32 %v1393, 4294901760
  %1395 = vmatmul.mubr.f32.gmra.mxu0 %v1394
  %v1396 = vpop.f32.mrf.mxu0
  %v1397 = vadd.f32 %v1078, %v1396
  %v1398 = vpop.f32.mrf.mxu0
  %1399 = vmatprep.mubr.f32.mxu0 0.0
  %v1400 = vand.u32 %v143, 4294901760
  %v1401 = vsub.f32 %v143, %v1400
  %v1402 = vand.u32 %v1401, 4294901760
  %1403 = vmatmul.mubr.f32.gmra.mxu0 %v1402
  %v1404 = vpop.f32.mrf.mxu0
  %v1405 = vadd.f32 %v1085, %v1404
  %v1406 = vpop.f32.mrf.mxu0
  %1407 = vmatprep.mubr.f32.mxu0 0.0
  %v1408 = vand.u32 %v146, 4294901760
  %v1409 = vsub.f32 %v146, %v1408
  %v1410 = vand.u32 %v1409, 4294901760
  %1411 = vmatmul.mubr.f32.gmra.mxu0 %v1410
  %v1412 = vpop.f32.mrf.mxu0
  %v1413 = vadd.f32 %v1092, %v1412
  %v1414 = vpop.f32.mrf.mxu0
  %1415 = vmatprep.mubr.f32.mxu0 0.0
  %v1416 = vand.u32 %v149, 4294901760
  %v1417 = vsub.f32 %v149, %v1416
  %v1418 = vand.u32 %v1417, 4294901760
  %1419 = vmatmul.mubr.f32.gmra.mxu0 %v1418
  %v1420 = vpop.f32.mrf.mxu0
  %v1421 = vadd.f32 %v1099, %v1420
  %v1422 = vpop.f32.mrf.mxu0
  %1423 = vmatprep.mubr.f32.mxu0 0.0
  %v1424 = vand.u32 %v152, 4294901760
  %v1425 = vsub.f32 %v152, %v1424
  %v1426 = vand.u32 %v1425, 4294901760
  %1427 = vmatmul.mubr.f32.gmra.mxu0 %v1426
  %v1428 = vpop.f32.mrf.mxu0
  %v1429 = vadd.f32 %v1106, %v1428
  %v1430 = vpop.f32.mrf.mxu0
  %1431 = vmatprep.mubr.f32.mxu0 0.0
  %v1432 = vand.u32 %v155, 4294901760
  %v1433 = vsub.f32 %v155, %v1432
  %v1434 = vand.u32 %v1433, 4294901760
  %1435 = vmatmul.mubr.f32.gmra.mxu0 %v1434
  %v1436 = vpop.f32.mrf.mxu0
  %v1437 = vadd.f32 %v1113, %v1436
  %v1438 = vpop.f32.mrf.mxu0
  %1439 = vmatprep.mubr.f32.mxu0 0.0
  %v1440 = vand.u32 %v158, 4294901760
  %v1441 = vsub.f32 %v158, %v1440
  %v1442 = vand.u32 %v1441, 4294901760
  %1443 = vmatmul.mubr.f32.gmra.mxu0 %v1442
  %v1444 = vpop.f32.mrf.mxu0
  %v1445 = vadd.f32 %v1120, %v1444
  %v1446 = vpop.f32.mrf.mxu0
  %1447 = vdwg.mxu0
  %1448 = vmatprep.subr.mxu0 0.0
  %1449 = vmatpush1.msra.mxu0 0.0
  %1450 = vmatprep.subr.mxu0 0.0
  %1451 = vmatpush1.msra.mxu0 0.0
  %1452 = vmatprep.subr.mxu0 0.0
  %1453 = vmatpush1.msra.mxu0 0.0
  %1454 = vmatprep.subr.mxu0 0.0
  %1455 = vmatpush1.msra.mxu0 0.0
  %1456 = vmatprep.subr.mxu0 0.0
  %1457 = vmatpush1.msra.mxu0 0.0
  %1458 = vmatprep.subr.mxu0 0.0
  %1459 = vmatpush1.msra.mxu0 0.0
  %1460 = vmatprep.subr.mxu0 0.0
  %1461 = vmatpush1.msra.mxu0 0.0
  %1462 = vmatprep.subr.mxu0 0.0
  %1463 = vmatpush1.msra.mxu0 0.0
  %1464 = vmatprep.subr.mxu0 0.0
  %1465 = vmatpush1.msra.mxu0 0.0
  %1466 = vmatprep.subr.mxu0 0.0
  %1467 = vmatpush1.msra.mxu0 0.0
  %1468 = vmatprep.subr.mxu0 0.0
  %1469 = vmatpush1.msra.mxu0 0.0
  %1470 = vmatprep.subr.mxu0 0.0
  %1471 = vmatpush1.msra.mxu0 0.0
  %1472 = vmatprep.subr.mxu0 0.0
  %v1473 = vand.u32 %v55, 4294901760
  %v1474 = vsub.f32 %v55, %v1473
  %v1475 = vand.u32 %v1474, 4294901760
  %1476 = vmatpush1.msra.mxu0 %v1475
  %1477 = vmatprep.subr.mxu0 0.0
  %v1478 = vand.u32 %v54, 4294901760
  %v1479 = vsub.f32 %v54, %v1478
  %v1480 = vand.u32 %v1479, 4294901760
  %1481 = vmatpush1.msra.mxu0 %v1480
  %1482 = vmatprep.subr.mxu0 0.0
  %v1483 = vand.u32 %v53, 4294901760
  %v1484 = vsub.f32 %v53, %v1483
  %v1485 = vand.u32 %v1484, 4294901760
  %1486 = vmatpush1.msra.mxu0 %v1485
  %1487 = vmatprep.subr.mxu0 0.0
  %v1488 = vand.u32 %v52, 4294901760
  %v1489 = vsub.f32 %v52, %v1488
  %v1490 = vand.u32 %v1489, 4294901760
  %1491 = vmatpush1.msra.mxu0 %v1490
  %1492 = vmatprep.subr.mxu0 0.0
  %1493 = vmatpush2.msra.mxu0 0.0
  %1494 = vmatprep.subr.mxu0 0.0
  %1495 = vmatpush2.msra.mxu0 0.0
  %1496 = vmatprep.subr.mxu0 0.0
  %1497 = vmatpush2.msra.mxu0 0.0
  %1498 = vmatprep.subr.mxu0 0.0
  %1499 = vmatpush2.msra.mxu0 0.0
  %1500 = vmatprep.subr.mxu0 0.0
  %1501 = vmatpush2.msra.mxu0 0.0
  %1502 = vmatprep.subr.mxu0 0.0
  %1503 = vmatpush2.msra.mxu0 0.0
  %1504 = vmatprep.subr.mxu0 0.0
  %1505 = vmatpush2.msra.mxu0 0.0
  %1506 = vmatprep.subr.mxu0 0.0
  %1507 = vmatpush2.msra.mxu0 0.0
  %1508 = vmatprep.subr.mxu0 0.0
  %1509 = vmatpush2.msra.mxu0 0.0
  %1510 = vmatprep.subr.mxu0 0.0
  %1511 = vmatpush2.msra.mxu0 0.0
  %1512 = vmatprep.subr.mxu0 0.0
  %1513 = vmatpush2.msra.mxu0 0.0
  %1514 = vmatprep.subr.mxu0 0.0
  %1515 = vmatpush2.msra.mxu0 0.0
  %1516 = vmatprep.subr.mxu0 0.0
  %1517 = vmatpush2.msra.mxu0 0.0
  %1518 = vmatprep.subr.mxu0 0.0
  %1519 = vmatpush2.msra.mxu0 0.0
  %1520 = vmatprep.subr.mxu0 0.0
  %1521 = vmatpush2.msra.mxu0 0.0
  %1522 = vmatprep.subr.mxu0 0.0
  %1523 = vmatpush2.msra.mxu0 0.0
  %1524 = vmatprep.mubr.f32.mxu0 0.0
  %v1525 = vand.u32 %v65, 4294901760
  %1526 = vmatmul.mubr.f32.gmra.mxu0 %v1525
  %v1527 = vpop.f32.mrf.mxu0
  %v1528 = vadd.f32 %v1197, %v1527
  %v1529 = vpop.f32.mrf.mxu0
  %1530 = vmatprep.mubr.f32.mxu0 0.0
  %v1531 = vand.u32 %v68, 4294901760
  %1532 = vmatmul.mubr.f32.gmra.mxu0 %v1531
  %v1533 = vpop.f32.mrf.mxu0
  %v1534 = vadd.f32 %v1205, %v1533
  %v1535 = vpop.f32.mrf.mxu0
  %1536 = vmatprep.mubr.f32.mxu0 0.0
  %v1537 = vand.u32 %v71, 4294901760
  %1538 = vmatmul.mubr.f32.gmra.mxu0 %v1537
  %v1539 = vpop.f32.mrf.mxu0
  %v1540 = vadd.f32 %v1213, %v1539
  %v1541 = vpop.f32.mrf.mxu0
  %1542 = vmatprep.mubr.f32.mxu0 0.0
  %v1543 = vand.u32 %v74, 4294901760
  %1544 = vmatmul.mubr.f32.gmra.mxu0 %v1543
  %v1545 = vpop.f32.mrf.mxu0
  %v1546 = vadd.f32 %v1221, %v1545
  %v1547 = vpop.f32.mrf.mxu0
  %1548 = vmatprep.mubr.f32.mxu0 0.0
  %v1549 = vand.u32 %v77, 4294901760
  %1550 = vmatmul.mubr.f32.gmra.mxu0 %v1549
  %v1551 = vpop.f32.mrf.mxu0
  %v1552 = vadd.f32 %v1229, %v1551
  %v1553 = vpop.f32.mrf.mxu0
  %1554 = vmatprep.mubr.f32.mxu0 0.0
  %v1555 = vand.u32 %v80, 4294901760
  %1556 = vmatmul.mubr.f32.gmra.mxu0 %v1555
  %v1557 = vpop.f32.mrf.mxu0
  %v1558 = vadd.f32 %v1237, %v1557
  %v1559 = vpop.f32.mrf.mxu0
  %1560 = vmatprep.mubr.f32.mxu0 0.0
  %v1561 = vand.u32 %v83, 4294901760
  %1562 = vmatmul.mubr.f32.gmra.mxu0 %v1561
  %v1563 = vpop.f32.mrf.mxu0
  %v1564 = vadd.f32 %v1245, %v1563
  %v1565 = vpop.f32.mrf.mxu0
  %1566 = vmatprep.mubr.f32.mxu0 0.0
  %v1567 = vand.u32 %v86, 4294901760
  %1568 = vmatmul.mubr.f32.gmra.mxu0 %v1567
  %v1569 = vpop.f32.mrf.mxu0
  %v1570 = vadd.f32 %v1253, %v1569
  %v1571 = vpop.f32.mrf.mxu0
  %1572 = vmatprep.mubr.f32.mxu0 0.0
  %v1573 = vand.u32 %v89, 4294901760
  %1574 = vmatmul.mubr.f32.gmra.mxu0 %v1573
  %v1575 = vpop.f32.mrf.mxu0
  %v1576 = vadd.f32 %v1261, %v1575
  %v1577 = vpop.f32.mrf.mxu0
  %1578 = vmatprep.mubr.f32.mxu0 0.0
  %v1579 = vand.u32 %v92, 4294901760
  %1580 = vmatmul.mubr.f32.gmra.mxu0 %v1579
  %v1581 = vpop.f32.mrf.mxu0
  %v1582 = vadd.f32 %v1269, %v1581
  %v1583 = vpop.f32.mrf.mxu0
  %1584 = vmatprep.mubr.f32.mxu0 0.0
  %v1585 = vand.u32 %v95, 4294901760
  %1586 = vmatmul.mubr.f32.gmra.mxu0 %v1585
  %v1587 = vpop.f32.mrf.mxu0
  %v1588 = vadd.f32 %v1277, %v1587
  %v1589 = vpop.f32.mrf.mxu0
  %1590 = vmatprep.mubr.f32.mxu0 0.0
  %v1591 = vand.u32 %v98, 4294901760
  %1592 = vmatmul.mubr.f32.gmra.mxu0 %v1591
  %v1593 = vpop.f32.mrf.mxu0
  %v1594 = vadd.f32 %v1285, %v1593
  %v1595 = vpop.f32.mrf.mxu0
  %1596 = vmatprep.mubr.f32.mxu0 0.0
  %v1597 = vand.u32 %v101, 4294901760
  %1598 = vmatmul.mubr.f32.gmra.mxu0 %v1597
  %v1599 = vpop.f32.mrf.mxu0
  %v1600 = vadd.f32 %v1293, %v1599
  %v1601 = vpop.f32.mrf.mxu0
  %1602 = vmatprep.mubr.f32.mxu0 0.0
  %v1603 = vand.u32 %v104, 4294901760
  %1604 = vmatmul.mubr.f32.gmra.mxu0 %v1603
  %v1605 = vpop.f32.mrf.mxu0
  %v1606 = vadd.f32 %v1301, %v1605
  %v1607 = vpop.f32.mrf.mxu0
  %1608 = vmatprep.mubr.f32.mxu0 0.0
  %v1609 = vand.u32 %v107, 4294901760
  %1610 = vmatmul.mubr.f32.gmra.mxu0 %v1609
  %v1611 = vpop.f32.mrf.mxu0
  %v1612 = vadd.f32 %v1309, %v1611
  %v1613 = vpop.f32.mrf.mxu0
  %1614 = vmatprep.mubr.f32.mxu0 0.0
  %v1615 = vand.u32 %v110, 4294901760
  %1616 = vmatmul.mubr.f32.gmra.mxu0 %v1615
  %v1617 = vpop.f32.mrf.mxu0
  %v1618 = vadd.f32 %v1317, %v1617
  %v1619 = vpop.f32.mrf.mxu0
  %1620 = vmatprep.mubr.f32.mxu0 0.0
  %v1621 = vand.u32 %v113, 4294901760
  %1622 = vmatmul.mubr.f32.gmra.mxu0 %v1621
  %v1623 = vpop.f32.mrf.mxu0
  %v1624 = vadd.f32 %v1325, %v1623
  %v1625 = vpop.f32.mrf.mxu0
  %1626 = vmatprep.mubr.f32.mxu0 0.0
  %v1627 = vand.u32 %v116, 4294901760
  %1628 = vmatmul.mubr.f32.gmra.mxu0 %v1627
  %v1629 = vpop.f32.mrf.mxu0
  %v1630 = vadd.f32 %v1333, %v1629
  %v1631 = vpop.f32.mrf.mxu0
  %1632 = vmatprep.mubr.f32.mxu0 0.0
  %v1633 = vand.u32 %v119, 4294901760
  %1634 = vmatmul.mubr.f32.gmra.mxu0 %v1633
  %v1635 = vpop.f32.mrf.mxu0
  %v1636 = vadd.f32 %v1341, %v1635
  %v1637 = vpop.f32.mrf.mxu0
  %1638 = vmatprep.mubr.f32.mxu0 0.0
  %v1639 = vand.u32 %v122, 4294901760
  %1640 = vmatmul.mubr.f32.gmra.mxu0 %v1639
  %v1641 = vpop.f32.mrf.mxu0
  %v1642 = vadd.f32 %v1349, %v1641
  %v1643 = vpop.f32.mrf.mxu0
  %1644 = vmatprep.mubr.f32.mxu0 0.0
  %v1645 = vand.u32 %v125, 4294901760
  %1646 = vmatmul.mubr.f32.gmra.mxu0 %v1645
  %v1647 = vpop.f32.mrf.mxu0
  %v1648 = vadd.f32 %v1357, %v1647
  %v1649 = vpop.f32.mrf.mxu0
  %1650 = vmatprep.mubr.f32.mxu0 0.0
  %v1651 = vand.u32 %v128, 4294901760
  %1652 = vmatmul.mubr.f32.gmra.mxu0 %v1651
  %v1653 = vpop.f32.mrf.mxu0
  %v1654 = vadd.f32 %v1365, %v1653
  %v1655 = vpop.f32.mrf.mxu0
  %1656 = vmatprep.mubr.f32.mxu0 0.0
  %v1657 = vand.u32 %v131, 4294901760
  %1658 = vmatmul.mubr.f32.gmra.mxu0 %v1657
  %v1659 = vpop.f32.mrf.mxu0
  %v1660 = vadd.f32 %v1373, %v1659
  %v1661 = vpop.f32.mrf.mxu0
  %1662 = vmatprep.mubr.f32.mxu0 0.0
  %v1663 = vand.u32 %v134, 4294901760
  %1664 = vmatmul.mubr.f32.gmra.mxu0 %v1663
  %v1665 = vpop.f32.mrf.mxu0
  %v1666 = vadd.f32 %v1381, %v1665
  %v1667 = vpop.f32.mrf.mxu0
  %1668 = vmatprep.mubr.f32.mxu0 0.0
  %v1669 = vand.u32 %v137, 4294901760
  %1670 = vmatmul.mubr.f32.gmra.mxu0 %v1669
  %v1671 = vpop.f32.mrf.mxu0
  %v1672 = vadd.f32 %v1389, %v1671
  %v1673 = vpop.f32.mrf.mxu0
  %1674 = vmatprep.mubr.f32.mxu0 0.0
  %v1675 = vand.u32 %v140, 4294901760
  %1676 = vmatmul.mubr.f32.gmra.mxu0 %v1675
  %v1677 = vpop.f32.mrf.mxu0
  %v1678 = vadd.f32 %v1397, %v1677
  %v1679 = vpop.f32.mrf.mxu0
  %1680 = vmatprep.mubr.f32.mxu0 0.0
  %v1681 = vand.u32 %v143, 4294901760
  %1682 = vmatmul.mubr.f32.gmra.mxu0 %v1681
  %v1683 = vpop.f32.mrf.mxu0
  %v1684 = vadd.f32 %v1405, %v1683
  %v1685 = vpop.f32.mrf.mxu0
  %1686 = vmatprep.mubr.f32.mxu0 0.0
  %v1687 = vand.u32 %v146, 4294901760
  %1688 = vmatmul.mubr.f32.gmra.mxu0 %v1687
  %v1689 = vpop.f32.mrf.mxu0
  %v1690 = vadd.f32 %v1413, %v1689
  %v1691 = vpop.f32.mrf.mxu0
  %1692 = vmatprep.mubr.f32.mxu0 0.0
  %v1693 = vand.u32 %v149, 4294901760
  %1694 = vmatmul.mubr.f32.gmra.mxu0 %v1693
  %v1695 = vpop.f32.mrf.mxu0
  %v1696 = vadd.f32 %v1421, %v1695
  %v1697 = vpop.f32.mrf.mxu0
  %1698 = vmatprep.mubr.f32.mxu0 0.0
  %v1699 = vand.u32 %v152, 4294901760
  %1700 = vmatmul.mubr.f32.gmra.mxu0 %v1699
  %v1701 = vpop.f32.mrf.mxu0
  %v1702 = vadd.f32 %v1429, %v1701
  %v1703 = vpop.f32.mrf.mxu0
  %1704 = vmatprep.mubr.f32.mxu0 0.0
  %v1705 = vand.u32 %v155, 4294901760
  %1706 = vmatmul.mubr.f32.gmra.mxu0 %v1705
  %v1707 = vpop.f32.mrf.mxu0
  %v1708 = vadd.f32 %v1437, %v1707
  %v1709 = vpop.f32.mrf.mxu0
  %1710 = vmatprep.mubr.f32.mxu0 0.0
  %v1711 = vand.u32 %v158, 4294901760
  %1712 = vmatmul.mubr.f32.gmra.mxu0 %v1711
  %v1713 = vpop.f32.mrf.mxu0
  %v1714 = vadd.f32 %v1445, %v1713
  %v1715 = vpop.f32.mrf.mxu0
  %1716 = vdwg.mxu0
  %1717 = vmatprep.subr.mxu0 0.0
  %1718 = vmatpush1.msra.mxu0 0.0
  %1719 = vmatprep.subr.mxu0 0.0
  %1720 = vmatpush1.msra.mxu0 0.0
  %1721 = vmatprep.subr.mxu0 0.0
  %1722 = vmatpush1.msra.mxu0 0.0
  %1723 = vmatprep.subr.mxu0 0.0
  %1724 = vmatpush1.msra.mxu0 0.0
  %1725 = vmatprep.subr.mxu0 0.0
  %1726 = vmatpush1.msra.mxu0 0.0
  %1727 = vmatprep.subr.mxu0 0.0
  %1728 = vmatpush1.msra.mxu0 0.0
  %1729 = vmatprep.subr.mxu0 0.0
  %1730 = vmatpush1.msra.mxu0 0.0
  %1731 = vmatprep.subr.mxu0 0.0
  %1732 = vmatpush1.msra.mxu0 0.0
  %1733 = vmatprep.subr.mxu0 0.0
  %1734 = vmatpush1.msra.mxu0 0.0
  %1735 = vmatprep.subr.mxu0 0.0
  %1736 = vmatpush1.msra.mxu0 0.0
  %1737 = vmatprep.subr.mxu0 0.0
  %1738 = vmatpush1.msra.mxu0 0.0
  %1739 = vmatprep.subr.mxu0 0.0
  %1740 = vmatpush1.msra.mxu0 0.0
  %1741 = vmatprep.subr.mxu0 0.0
  %v1742 = vand.u32 %v55, 4294901760
  %1743 = vmatpush1.msra.mxu0 %v1742
  %1744 = vmatprep.subr.mxu0 0.0
  %v1745 = vand.u32 %v54, 4294901760
  %1746 = vmatpush1.msra.mxu0 %v1745
  %1747 = vmatprep.subr.mxu0 0.0
  %v1748 = vand.u32 %v53, 4294901760
  %1749 = vmatpush1.msra.mxu0 %v1748
  %1750 = vmatprep.subr.mxu0 0.0
  %v1751 = vand.u32 %v52, 4294901760
  %1752 = vmatpush1.msra.mxu0 %v1751
  %1753 = vmatprep.subr.mxu0 0.0
  %1754 = vmatpush2.msra.mxu0 0.0
  %1755 = vmatprep.subr.mxu0 0.0
  %1756 = vmatpush2.msra.mxu0 0.0
  %1757 = vmatprep.subr.mxu0 0.0
  %1758 = vmatpush2.msra.mxu0 0.0
  %1759 = vmatprep.subr.mxu0 0.0
  %1760 = vmatpush2.msra.mxu0 0.0
  %1761 = vmatprep.subr.mxu0 0.0
  %1762 = vmatpush2.msra.mxu0 0.0
  %1763 = vmatprep.subr.mxu0 0.0
  %1764 = vmatpush2.msra.mxu0 0.0
  %1765 = vmatprep.subr.mxu0 0.0
  %1766 = vmatpush2.msra.mxu0 0.0
  %1767 = vmatprep.subr.mxu0 0.0
  %1768 = vmatpush2.msra.mxu0 0.0
  %1769 = vmatprep.subr.mxu0 0.0
  %1770 = vmatpush2.msra.mxu0 0.0
  %1771 = vmatprep.subr.mxu0 0.0
  %1772 = vmatpush2.msra.mxu0 0.0
  %1773 = vmatprep.subr.mxu0 0.0
  %1774 = vmatpush2.msra.mxu0 0.0
  %1775 = vmatprep.subr.mxu0 0.0
  %1776 = vmatpush2.msra.mxu0 0.0
  %1777 = vmatprep.subr.mxu0 0.0
  %1778 = vmatpush2.msra.mxu0 0.0
  %1779 = vmatprep.subr.mxu0 0.0
  %1780 = vmatpush2.msra.mxu0 0.0
  %1781 = vmatprep.subr.mxu0 0.0
  %1782 = vmatpush2.msra.mxu0 0.0
  %1783 = vmatprep.subr.mxu0 0.0
  %1784 = vmatpush2.msra.mxu0 0.0
  %1785 = vmatprep.mubr.f32.mxu0 0.0
  %v1786 = vand.u32 %v65, 4294901760
  %1787 = vmatmul.mubr.f32.gmra.mxu0 %v1786
  %v1788 = vpop.f32.mrf.mxu0
  %v1789 = vadd.f32 %v1528, %v1788
  %v1790 = vpop.f32.mrf.mxu0
  %1791 = vmatprep.mubr.f32.mxu0 0.0
  %v1792 = vand.u32 %v68, 4294901760
  %1793 = vmatmul.mubr.f32.gmra.mxu0 %v1792
  %v1794 = vpop.f32.mrf.mxu0
  %v1795 = vadd.f32 %v1534, %v1794
  %v1796 = vpop.f32.mrf.mxu0
  %1797 = vmatprep.mubr.f32.mxu0 0.0
  %v1798 = vand.u32 %v71, 4294901760
  %1799 = vmatmul.mubr.f32.gmra.mxu0 %v1798
  %v1800 = vpop.f32.mrf.mxu0
  %v1801 = vadd.f32 %v1540, %v1800
  %v1802 = vpop.f32.mrf.mxu0
  %1803 = vmatprep.mubr.f32.mxu0 0.0
  %v1804 = vand.u32 %v74, 4294901760
  %1805 = vmatmul.mubr.f32.gmra.mxu0 %v1804
  %v1806 = vpop.f32.mrf.mxu0
  %v1807 = vadd.f32 %v1546, %v1806
  %v1808 = vpop.f32.mrf.mxu0
  %1809 = vmatprep.mubr.f32.mxu0 0.0
  %v1810 = vand.u32 %v77, 4294901760
  %1811 = vmatmul.mubr.f32.gmra.mxu0 %v1810
  %v1812 = vpop.f32.mrf.mxu0
  %v1813 = vadd.f32 %v1552, %v1812
  %v1814 = vpop.f32.mrf.mxu0
  %1815 = vmatprep.mubr.f32.mxu0 0.0
  %v1816 = vand.u32 %v80, 4294901760
  %1817 = vmatmul.mubr.f32.gmra.mxu0 %v1816
  %v1818 = vpop.f32.mrf.mxu0
  %v1819 = vadd.f32 %v1558, %v1818
  %v1820 = vpop.f32.mrf.mxu0
  %1821 = vmatprep.mubr.f32.mxu0 0.0
  %v1822 = vand.u32 %v83, 4294901760
  %1823 = vmatmul.mubr.f32.gmra.mxu0 %v1822
  %v1824 = vpop.f32.mrf.mxu0
  %v1825 = vadd.f32 %v1564, %v1824
  %v1826 = vpop.f32.mrf.mxu0
  %1827 = vmatprep.mubr.f32.mxu0 0.0
  %v1828 = vand.u32 %v86, 4294901760
  %1829 = vmatmul.mubr.f32.gmra.mxu0 %v1828
  %v1830 = vpop.f32.mrf.mxu0
  %v1831 = vadd.f32 %v1570, %v1830
  %v1832 = vpop.f32.mrf.mxu0
  %1833 = vmatprep.mubr.f32.mxu0 0.0
  %v1834 = vand.u32 %v89, 4294901760
  %1835 = vmatmul.mubr.f32.gmra.mxu0 %v1834
  %v1836 = vpop.f32.mrf.mxu0
  %v1837 = vadd.f32 %v1576, %v1836
  %v1838 = vpop.f32.mrf.mxu0
  %1839 = vmatprep.mubr.f32.mxu0 0.0
  %v1840 = vand.u32 %v92, 4294901760
  %1841 = vmatmul.mubr.f32.gmra.mxu0 %v1840
  %v1842 = vpop.f32.mrf.mxu0
  %v1843 = vadd.f32 %v1582, %v1842
  %v1844 = vpop.f32.mrf.mxu0
  %1845 = vmatprep.mubr.f32.mxu0 0.0
  %v1846 = vand.u32 %v95, 4294901760
  %1847 = vmatmul.mubr.f32.gmra.mxu0 %v1846
  %v1848 = vpop.f32.mrf.mxu0
  %v1849 = vadd.f32 %v1588, %v1848
  %v1850 = vpop.f32.mrf.mxu0
  %1851 = vmatprep.mubr.f32.mxu0 0.0
  %v1852 = vand.u32 %v98, 4294901760
  %1853 = vmatmul.mubr.f32.gmra.mxu0 %v1852
  %v1854 = vpop.f32.mrf.mxu0
  %v1855 = vadd.f32 %v1594, %v1854
  %v1856 = vpop.f32.mrf.mxu0
  %1857 = vmatprep.mubr.f32.mxu0 0.0
  %v1858 = vand.u32 %v101, 4294901760
  %1859 = vmatmul.mubr.f32.gmra.mxu0 %v1858
  %v1860 = vpop.f32.mrf.mxu0
  %v1861 = vadd.f32 %v1600, %v1860
  %v1862 = vpop.f32.mrf.mxu0
  %1863 = vmatprep.mubr.f32.mxu0 0.0
  %v1864 = vand.u32 %v104, 4294901760
  %1865 = vmatmul.mubr.f32.gmra.mxu0 %v1864
  %v1866 = vpop.f32.mrf.mxu0
  %v1867 = vadd.f32 %v1606, %v1866
  %v1868 = vpop.f32.mrf.mxu0
  %1869 = vmatprep.mubr.f32.mxu0 0.0
  %v1870 = vand.u32 %v107, 4294901760
  %1871 = vmatmul.mubr.f32.gmra.mxu0 %v1870
  %v1872 = vpop.f32.mrf.mxu0
  %v1873 = vadd.f32 %v1612, %v1872
  %v1874 = vpop.f32.mrf.mxu0
  %1875 = vmatprep.mubr.f32.mxu0 0.0
  %v1876 = vand.u32 %v110, 4294901760
  %1877 = vmatmul.mubr.f32.gmra.mxu0 %v1876
  %v1878 = vpop.f32.mrf.mxu0
  %v1879 = vadd.f32 %v1618, %v1878
  %v1880 = vpop.f32.mrf.mxu0
  %1881 = vmatprep.mubr.f32.mxu0 0.0
  %v1882 = vand.u32 %v113, 4294901760
  %1883 = vmatmul.mubr.f32.gmra.mxu0 %v1882
  %v1884 = vpop.f32.mrf.mxu0
  %v1885 = vadd.f32 %v1624, %v1884
  %v1886 = vpop.f32.mrf.mxu0
  %1887 = vmatprep.mubr.f32.mxu0 0.0
  %v1888 = vand.u32 %v116, 4294901760
  %1889 = vmatmul.mubr.f32.gmra.mxu0 %v1888
  %v1890 = vpop.f32.mrf.mxu0
  %v1891 = vadd.f32 %v1630, %v1890
  %v1892 = vpop.f32.mrf.mxu0
  %1893 = vmatprep.mubr.f32.mxu0 0.0
  %v1894 = vand.u32 %v119, 4294901760
  %1895 = vmatmul.mubr.f32.gmra.mxu0 %v1894
  %v1896 = vpop.f32.mrf.mxu0
  %v1897 = vadd.f32 %v1636, %v1896
  %v1898 = vpop.f32.mrf.mxu0
  %1899 = vmatprep.mubr.f32.mxu0 0.0
  %v1900 = vand.u32 %v122, 4294901760
  %1901 = vmatmul.mubr.f32.gmra.mxu0 %v1900
  %v1902 = vpop.f32.mrf.mxu0
  %v1903 = vadd.f32 %v1642, %v1902
  %v1904 = vpop.f32.mrf.mxu0
  %1905 = vmatprep.mubr.f32.mxu0 0.0
  %v1906 = vand.u32 %v125, 4294901760
  %1907 = vmatmul.mubr.f32.gmra.mxu0 %v1906
  %v1908 = vpop.f32.mrf.mxu0
  %v1909 = vadd.f32 %v1648, %v1908
  %v1910 = vpop.f32.mrf.mxu0
  %1911 = vmatprep.mubr.f32.mxu0 0.0
  %v1912 = vand.u32 %v128, 4294901760
  %1913 = vmatmul.mubr.f32.gmra.mxu0 %v1912
  %v1914 = vpop.f32.mrf.mxu0
  %v1915 = vadd.f32 %v1654, %v1914
  %v1916 = vpop.f32.mrf.mxu0
  %1917 = vmatprep.mubr.f32.mxu0 0.0
  %v1918 = vand.u32 %v131, 4294901760
  %1919 = vmatmul.mubr.f32.gmra.mxu0 %v1918
  %v1920 = vpop.f32.mrf.mxu0
  %v1921 = vadd.f32 %v1660, %v1920
  %v1922 = vpop.f32.mrf.mxu0
  %1923 = vmatprep.mubr.f32.mxu0 0.0
  %v1924 = vand.u32 %v134, 4294901760
  %1925 = vmatmul.mubr.f32.gmra.mxu0 %v1924
  %v1926 = vpop.f32.mrf.mxu0
  %v1927 = vadd.f32 %v1666, %v1926
  %v1928 = vpop.f32.mrf.mxu0
  %1929 = vmatprep.mubr.f32.mxu0 0.0
  %v1930 = vand.u32 %v137, 4294901760
  %1931 = vmatmul.mubr.f32.gmra.mxu0 %v1930
  %v1932 = vpop.f32.mrf.mxu0
  %v1933 = vadd.f32 %v1672, %v1932
  %v1934 = vpop.f32.mrf.mxu0
  %1935 = vmatprep.mubr.f32.mxu0 0.0
  %v1936 = vand.u32 %v140, 4294901760
  %1937 = vmatmul.mubr.f32.gmra.mxu0 %v1936
  %v1938 = vpop.f32.mrf.mxu0
  %v1939 = vadd.f32 %v1678, %v1938
  %v1940 = vpop.f32.mrf.mxu0
  %1941 = vmatprep.mubr.f32.mxu0 0.0
  %v1942 = vand.u32 %v143, 4294901760
  %1943 = vmatmul.mubr.f32.gmra.mxu0 %v1942
  %v1944 = vpop.f32.mrf.mxu0
  %v1945 = vadd.f32 %v1684, %v1944
  %v1946 = vpop.f32.mrf.mxu0
  %1947 = vmatprep.mubr.f32.mxu0 0.0
  %v1948 = vand.u32 %v146, 4294901760
  %1949 = vmatmul.mubr.f32.gmra.mxu0 %v1948
  %v1950 = vpop.f32.mrf.mxu0
  %v1951 = vadd.f32 %v1690, %v1950
  %v1952 = vpop.f32.mrf.mxu0
  %1953 = vmatprep.mubr.f32.mxu0 0.0
  %v1954 = vand.u32 %v149, 4294901760
  %1955 = vmatmul.mubr.f32.gmra.mxu0 %v1954
  %v1956 = vpop.f32.mrf.mxu0
  %v1957 = vadd.f32 %v1696, %v1956
  %v1958 = vpop.f32.mrf.mxu0
  %1959 = vmatprep.mubr.f32.mxu0 0.0
  %v1960 = vand.u32 %v152, 4294901760
  %1961 = vmatmul.mubr.f32.gmra.mxu0 %v1960
  %v1962 = vpop.f32.mrf.mxu0
  %v1963 = vadd.f32 %v1702, %v1962
  %v1964 = vpop.f32.mrf.mxu0
  %1965 = vmatprep.mubr.f32.mxu0 0.0
  %v1966 = vand.u32 %v155, 4294901760
  %1967 = vmatmul.mubr.f32.gmra.mxu0 %v1966
  %v1968 = vpop.f32.mrf.mxu0
  %v1969 = vadd.f32 %v1708, %v1968
  %v1970 = vpop.f32.mrf.mxu0
  %1971 = vmatprep.mubr.f32.mxu0 0.0
  %v1972 = vand.u32 %v158, 4294901760
  %1973 = vmatmul.mubr.f32.gmra.mxu0 %v1972
  %v1974 = vpop.f32.mrf.mxu0
  %v1975 = vadd.f32 %v1714, %v1974
  %v1976 = vpop.f32.mrf.mxu0
  %1977 = vdwg.mxu0
  %v1978 = vmax.f32 %v1789, 0.0
  %v1979 = vmax.f32 %v1795, 0.0
  %v1980 = vmax.f32 %v1801, 0.0
  %v1981 = vmax.f32 %v1807, 0.0
  %v1982 = vmax.f32 %v1813, 0.0
  %v1983 = vmax.f32 %v1819, 0.0
  %v1984 = vmax.f32 %v1825, 0.0
  %v1985 = vmax.f32 %v1831, 0.0
  %v1986 = vmax.f32 %v1837, 0.0
  %v1987 = vmax.f32 %v1843, 0.0
  %v1988 = vmax.f32 %v1849, 0.0
  %v1989 = vmax.f32 %v1855, 0.0
  %v1990 = vmax.f32 %v1861, 0.0
  %v1991 = vmax.f32 %v1867, 0.0
  %v1992 = vmax.f32 %v1873, 0.0
  %v1993 = vmax.f32 %v1879, 0.0
  %v1994 = vmax.f32 %v1885, 0.0
  %v1995 = vmax.f32 %v1891, 0.0
  %v1996 = vmax.f32 %v1897, 0.0
  %v1997 = vmax.f32 %v1903, 0.0
  %v1998 = vmax.f32 %v1909, 0.0
  %v1999 = vmax.f32 %v1915, 0.0
  %v2000 = vmax.f32 %v1921, 0.0
  %v2001 = vmax.f32 %v1927, 0.0
  %v2002 = vmax.f32 %v1933, 0.0
  %v2003 = vmax.f32 %v1939, 0.0
  %v2004 = vmax.f32 %v1945, 0.0
  %v2005 = vmax.f32 %v1951, 0.0
  %v2006 = vmax.f32 %v1957, 0.0
  %v2007 = vmax.f32 %v1963, 0.0
  %v2008 = vmax.f32 %v1969, 0.0
  %v2009 = vmax.f32 %v1975, 0.0
  %v2010 = vld [vmem:[%s3] sm:$0xff]
  %v2011 = vld [vmem:[%s3 + $0x8] sm:$0xff]
  %v2012 = vld [vmem:[%s3 + $0x10] sm:$0xff]
  %v2013 = vld [vmem:[%s3 + $0x18] sm:$0xff]
  %v2014 = vld [vmem:[%s3 + $0x20] sm:$0xff]
  %v2015 = vld [vmem:[%s3 + $0x28] sm:$0xff]
  %v2016 = vld [vmem:[%s3 + $0x30] sm:$0xff]
  %v2017 = vld [vmem:[%s3 + $0x38] sm:$0xff]
  %v2018 = vld [vmem:[%s3 + $0x40] sm:$0xff]
  %v2019 = vld [vmem:[%s3 + $0x48] sm:$0xff]
  %v2020 = vld [vmem:[%s3 + $0x50] sm:$0xff]
  %v2021 = vld [vmem:[%s3 + $0x58] sm:$0xff]
  %v2022 = vld [vmem:[%s3 + $0x60] sm:$0xff]
  %v2023 = vld [vmem:[%s3 + $0x68] sm:$0xff]
  %v2024 = vld [vmem:[%s3 + $0x70] sm:$0xff]
  %v2025 = vld [vmem:[%s3 + $0x78] sm:$0xff]
  %v2026 = vld [vmem:[%s4] sm:$0x1]
  %v2028 = vlaneseq
  %v2029 = vshrl.u32 %v2028, 7
  %v2030 = vsub.s32 0, %v2029
  %v2031 = vrot.slane %v2026, %v2030
  %2033 = vmatprep.subr.mxu0 0.0
  %v2034 = vand.u32 %v2025, 4294901760
  %2035 = vmatpush1.msra.mxu0 %v2034
  %2036 = vmatprep.subr.mxu0 0.0
  %v2037 = vand.u32 %v2024, 4294901760
  %2038 = vmatpush1.msra.mxu0 %v2037
  %2039 = vmatprep.subr.mxu0 0.0
  %v2040 = vand.u32 %v2023, 4294901760
  %2041 = vmatpush1.msra.mxu0 %v2040
  %2042 = vmatprep.subr.mxu0 0.0
  %v2043 = vand.u32 %v2022, 4294901760
  %2044 = vmatpush1.msra.mxu0 %v2043
  %2045 = vmatprep.subr.mxu0 0.0
  %v2046 = vand.u32 %v2021, 4294901760
  %2047 = vmatpush1.msra.mxu0 %v2046
  %2048 = vmatprep.subr.mxu0 0.0
  %v2049 = vand.u32 %v2020, 4294901760
  %2050 = vmatpush1.msra.mxu0 %v2049
  %2051 = vmatprep.subr.mxu0 0.0
  %v2052 = vand.u32 %v2019, 4294901760
  %2053 = vmatpush1.msra.mxu0 %v2052
  %2054 = vmatprep.subr.mxu0 0.0
  %v2055 = vand.u32 %v2018, 4294901760
  %2056 = vmatpush1.msra.mxu0 %v2055
  %2057 = vmatprep.subr.mxu0 0.0
  %v2058 = vand.u32 %v2017, 4294901760
  %2059 = vmatpush1.msra.mxu0 %v2058
  %2060 = vmatprep.subr.mxu0 0.0
  %v2061 = vand.u32 %v2016, 4294901760
  %2062 = vmatpush1.msra.mxu0 %v2061
  %2063 = vmatprep.subr.mxu0 0.0
  %v2064 = vand.u32 %v2015, 4294901760
  %2065 = vmatpush1.msra.mxu0 %v2064
  %2066 = vmatprep.subr.mxu0 0.0
  %v2067 = vand.u32 %v2014, 4294901760
  %2068 = vmatpush1.msra.mxu0 %v2067
  %2069 = vmatprep.subr.mxu0 0.0
  %v2070 = vand.u32 %v2013, 4294901760
  %2071 = vmatpush1.msra.mxu0 %v2070
  %2072 = vmatprep.subr.mxu0 0.0
  %v2073 = vand.u32 %v2012, 4294901760
  %2074 = vmatpush1.msra.mxu0 %v2073
  %2075 = vmatprep.subr.mxu0 0.0
  %v2076 = vand.u32 %v2011, 4294901760
  %2077 = vmatpush1.msra.mxu0 %v2076
  %2078 = vmatprep.subr.mxu0 0.0
  %v2079 = vand.u32 %v2010, 4294901760
  %2080 = vmatpush1.msra.mxu0 %v2079
  %2081 = vmatprep.subr.mxu0 0.0
  %2082 = vmatpush2.msra.mxu0 0.0
  %2083 = vmatprep.subr.mxu0 0.0
  %2084 = vmatpush2.msra.mxu0 0.0
  %2085 = vmatprep.subr.mxu0 0.0
  %2086 = vmatpush2.msra.mxu0 0.0
  %2087 = vmatprep.subr.mxu0 0.0
  %2088 = vmatpush2.msra.mxu0 0.0
  %2089 = vmatprep.subr.mxu0 0.0
  %2090 = vmatpush2.msra.mxu0 0.0
  %2091 = vmatprep.subr.mxu0 0.0
  %2092 = vmatpush2.msra.mxu0 0.0
  %2093 = vmatprep.subr.mxu0 0.0
  %2094 = vmatpush2.msra.mxu0 0.0
  %2095 = vmatprep.subr.mxu0 0.0
  %2096 = vmatpush2.msra.mxu0 0.0
  %2097 = vmatprep.subr.mxu0 0.0
  %2098 = vmatpush2.msra.mxu0 0.0
  %2099 = vmatprep.subr.mxu0 0.0
  %2100 = vmatpush2.msra.mxu0 0.0
  %2101 = vmatprep.subr.mxu0 0.0
  %2102 = vmatpush2.msra.mxu0 0.0
  %2103 = vmatprep.subr.mxu0 0.0
  %2104 = vmatpush2.msra.mxu0 0.0
  %2105 = vmatprep.subr.mxu0 0.0
  %2106 = vmatpush2.msra.mxu0 0.0
  %2107 = vmatprep.subr.mxu0 0.0
  %2108 = vmatpush2.msra.mxu0 0.0
  %2109 = vmatprep.subr.mxu0 0.0
  %2110 = vmatpush2.msra.mxu0 0.0
  %2111 = vmatprep.subr.mxu0 0.0
  %2112 = vmatpush2.msra.mxu0 0.0
  %2113 = vmatprep.mubr.f32.mxu0 0.0
  %v2114 = vand.u32 %v1978, 4294901760
  %v2115 = vsub.f32 %v1978, %v2114
  %v2116 = vand.u32 %v2115, 4294901760
  %v2117 = vsub.f32 %v2115, %v2116
  %v2118 = vand.u32 %v2117, 4294901760
  %2119 = vmatmul.mubr.f32.gmra.mxu0 %v2118
  %v2120 = vpop.f32.mrf.mxu0
  %v2121 = vadd.f32 %v2031, %v2120
  %v2122 = vpop.f32.mrf.mxu0
  %2123 = vmatprep.mubr.f32.mxu0 0.0
  %v2124 = vand.u32 %v1979, 4294901760
  %v2125 = vsub.f32 %v1979, %v2124
  %v2126 = vand.u32 %v2125, 4294901760
  %v2127 = vsub.f32 %v2125, %v2126
  %v2128 = vand.u32 %v2127, 4294901760
  %2129 = vmatmul.mubr.f32.gmra.mxu0 %v2128
  %v2130 = vpop.f32.mrf.mxu0
  %v2131 = vadd.f32 %v2031, %v2130
  %v2132 = vpop.f32.mrf.mxu0
  %2133 = vmatprep.mubr.f32.mxu0 0.0
  %v2134 = vand.u32 %v1980, 4294901760
  %v2135 = vsub.f32 %v1980, %v2134
  %v2136 = vand.u32 %v2135, 4294901760
  %v2137 = vsub.f32 %v2135, %v2136
  %v2138 = vand.u32 %v2137, 4294901760
  %2139 = vmatmul.mubr.f32.gmra.mxu0 %v2138
  %v2140 = vpop.f32.mrf.mxu0
  %v2141 = vadd.f32 %v2031, %v2140
  %v2142 = vpop.f32.mrf.mxu0
  %2143 = vmatprep.mubr.f32.mxu0 0.0
  %v2144 = vand.u32 %v1981, 4294901760
  %v2145 = vsub.f32 %v1981, %v2144
  %v2146 = vand.u32 %v2145, 4294901760
  %v2147 = vsub.f32 %v2145, %v2146
  %v2148 = vand.u32 %v2147, 4294901760
  %2149 = vmatmul.mubr.f32.gmra.mxu0 %v2148
  %v2150 = vpop.f32.mrf.mxu0
  %v2151 = vadd.f32 %v2031, %v2150
  %v2152 = vpop.f32.mrf.mxu0
  %2153 = vmatprep.mubr.f32.mxu0 0.0
  %v2154 = vand.u32 %v1982, 4294901760
  %v2155 = vsub.f32 %v1982, %v2154
  %v2156 = vand.u32 %v2155, 4294901760
  %v2157 = vsub.f32 %v2155, %v2156
  %v2158 = vand.u32 %v2157, 4294901760
  %2159 = vmatmul.mubr.f32.gmra.mxu0 %v2158
  %v2160 = vpop.f32.mrf.mxu0
  %v2161 = vadd.f32 %v2031, %v2160
  %v2162 = vpop.f32.mrf.mxu0
  %2163 = vmatprep.mubr.f32.mxu0 0.0
  %v2164 = vand.u32 %v1983, 4294901760
  %v2165 = vsub.f32 %v1983, %v2164
  %v2166 = vand.u32 %v2165, 4294901760
  %v2167 = vsub.f32 %v2165, %v2166
  %v2168 = vand.u32 %v2167, 4294901760
  %2169 = vmatmul.mubr.f32.gmra.mxu0 %v2168
  %v2170 = vpop.f32.mrf.mxu0
  %v2171 = vadd.f32 %v2031, %v2170
  %v2172 = vpop.f32.mrf.mxu0
  %2173 = vmatprep.mubr.f32.mxu0 0.0
  %v2174 = vand.u32 %v1984, 4294901760
  %v2175 = vsub.f32 %v1984, %v2174
  %v2176 = vand.u32 %v2175, 4294901760
  %v2177 = vsub.f32 %v2175, %v2176
  %v2178 = vand.u32 %v2177, 4294901760
  %2179 = vmatmul.mubr.f32.gmra.mxu0 %v2178
  %v2180 = vpop.f32.mrf.mxu0
  %v2181 = vadd.f32 %v2031, %v2180
  %v2182 = vpop.f32.mrf.mxu0
  %2183 = vmatprep.mubr.f32.mxu0 0.0
  %v2184 = vand.u32 %v1985, 4294901760
  %v2185 = vsub.f32 %v1985, %v2184
  %v2186 = vand.u32 %v2185, 4294901760
  %v2187 = vsub.f32 %v2185, %v2186
  %v2188 = vand.u32 %v2187, 4294901760
  %2189 = vmatmul.mubr.f32.gmra.mxu0 %v2188
  %v2190 = vpop.f32.mrf.mxu0
  %v2191 = vadd.f32 %v2031, %v2190
  %v2192 = vpop.f32.mrf.mxu0
  %2193 = vmatprep.mubr.f32.mxu0 0.0
  %v2194 = vand.u32 %v1986, 4294901760
  %v2195 = vsub.f32 %v1986, %v2194
  %v2196 = vand.u32 %v2195, 4294901760
  %v2197 = vsub.f32 %v2195, %v2196
  %v2198 = vand.u32 %v2197, 4294901760
  %2199 = vmatmul.mubr.f32.gmra.mxu0 %v2198
  %v2200 = vpop.f32.mrf.mxu0
  %v2201 = vadd.f32 %v2031, %v2200
  %v2202 = vpop.f32.mrf.mxu0
  %2203 = vmatprep.mubr.f32.mxu0 0.0
  %v2204 = vand.u32 %v1987, 4294901760
  %v2205 = vsub.f32 %v1987, %v2204
  %v2206 = vand.u32 %v2205, 4294901760
  %v2207 = vsub.f32 %v2205, %v2206
  %v2208 = vand.u32 %v2207, 4294901760
  %2209 = vmatmul.mubr.f32.gmra.mxu0 %v2208
  %v2210 = vpop.f32.mrf.mxu0
  %v2211 = vadd.f32 %v2031, %v2210
  %v2212 = vpop.f32.mrf.mxu0
  %2213 = vmatprep.mubr.f32.mxu0 0.0
  %v2214 = vand.u32 %v1988, 4294901760
  %v2215 = vsub.f32 %v1988, %v2214
  %v2216 = vand.u32 %v2215, 4294901760
  %v2217 = vsub.f32 %v2215, %v2216
  %v2218 = vand.u32 %v2217, 4294901760
  %2219 = vmatmul.mubr.f32.gmra.mxu0 %v2218
  %v2220 = vpop.f32.mrf.mxu0
  %v2221 = vadd.f32 %v2031, %v2220
  %v2222 = vpop.f32.mrf.mxu0
  %2223 = vmatprep.mubr.f32.mxu0 0.0
  %v2224 = vand.u32 %v1989, 4294901760
  %v2225 = vsub.f32 %v1989, %v2224
  %v2226 = vand.u32 %v2225, 4294901760
  %v2227 = vsub.f32 %v2225, %v2226
  %v2228 = vand.u32 %v2227, 4294901760
  %2229 = vmatmul.mubr.f32.gmra.mxu0 %v2228
  %v2230 = vpop.f32.mrf.mxu0
  %v2231 = vadd.f32 %v2031, %v2230
  %v2232 = vpop.f32.mrf.mxu0
  %2233 = vmatprep.mubr.f32.mxu0 0.0
  %v2234 = vand.u32 %v1990, 4294901760
  %v2235 = vsub.f32 %v1990, %v2234
  %v2236 = vand.u32 %v2235, 4294901760
  %v2237 = vsub.f32 %v2235, %v2236
  %v2238 = vand.u32 %v2237, 4294901760
  %2239 = vmatmul.mubr.f32.gmra.mxu0 %v2238
  %v2240 = vpop.f32.mrf.mxu0
  %v2241 = vadd.f32 %v2031, %v2240
  %v2242 = vpop.f32.mrf.mxu0
  %2243 = vmatprep.mubr.f32.mxu0 0.0
  %v2244 = vand.u32 %v1991, 4294901760
  %v2245 = vsub.f32 %v1991, %v2244
  %v2246 = vand.u32 %v2245, 4294901760
  %v2247 = vsub.f32 %v2245, %v2246
  %v2248 = vand.u32 %v2247, 4294901760
  %2249 = vmatmul.mubr.f32.gmra.mxu0 %v2248
  %v2250 = vpop.f32.mrf.mxu0
  %v2251 = vadd.f32 %v2031, %v2250
  %v2252 = vpop.f32.mrf.mxu0
  %2253 = vmatprep.mubr.f32.mxu0 0.0
  %v2254 = vand.u32 %v1992, 4294901760
  %v2255 = vsub.f32 %v1992, %v2254
  %v2256 = vand.u32 %v2255, 4294901760
  %v2257 = vsub.f32 %v2255, %v2256
  %v2258 = vand.u32 %v2257, 4294901760
  %2259 = vmatmul.mubr.f32.gmra.mxu0 %v2258
  %v2260 = vpop.f32.mrf.mxu0
  %v2261 = vadd.f32 %v2031, %v2260
  %v2262 = vpop.f32.mrf.mxu0
  %2263 = vmatprep.mubr.f32.mxu0 0.0
  %v2264 = vand.u32 %v1993, 4294901760
  %v2265 = vsub.f32 %v1993, %v2264
  %v2266 = vand.u32 %v2265, 4294901760
  %v2267 = vsub.f32 %v2265, %v2266
  %v2268 = vand.u32 %v2267, 4294901760
  %2269 = vmatmul.mubr.f32.gmra.mxu0 %v2268
  %v2270 = vpop.f32.mrf.mxu0
  %v2271 = vadd.f32 %v2031, %v2270
  %v2272 = vpop.f32.mrf.mxu0
  %2273 = vmatprep.mubr.f32.mxu0 0.0
  %v2274 = vand.u32 %v1994, 4294901760
  %v2275 = vsub.f32 %v1994, %v2274
  %v2276 = vand.u32 %v2275, 4294901760
  %v2277 = vsub.f32 %v2275, %v2276
  %v2278 = vand.u32 %v2277, 4294901760
  %2279 = vmatmul.mubr.f32.gmra.mxu0 %v2278
  %v2280 = vpop.f32.mrf.mxu0
  %v2281 = vadd.f32 %v2031, %v2280
  %v2282 = vpop.f32.mrf.mxu0
  %2283 = vmatprep.mubr.f32.mxu0 0.0
  %v2284 = vand.u32 %v1995, 4294901760
  %v2285 = vsub.f32 %v1995, %v2284
  %v2286 = vand.u32 %v2285, 4294901760
  %v2287 = vsub.f32 %v2285, %v2286
  %v2288 = vand.u32 %v2287, 4294901760
  %2289 = vmatmul.mubr.f32.gmra.mxu0 %v2288
  %v2290 = vpop.f32.mrf.mxu0
  %v2291 = vadd.f32 %v2031, %v2290
  %v2292 = vpop.f32.mrf.mxu0
  %2293 = vmatprep.mubr.f32.mxu0 0.0
  %v2294 = vand.u32 %v1996, 4294901760
  %v2295 = vsub.f32 %v1996, %v2294
  %v2296 = vand.u32 %v2295, 4294901760
  %v2297 = vsub.f32 %v2295, %v2296
  %v2298 = vand.u32 %v2297, 4294901760
  %2299 = vmatmul.mubr.f32.gmra.mxu0 %v2298
  %v2300 = vpop.f32.mrf.mxu0
  %v2301 = vadd.f32 %v2031, %v2300
  %v2302 = vpop.f32.mrf.mxu0
  %2303 = vmatprep.mubr.f32.mxu0 0.0
  %v2304 = vand.u32 %v1997, 4294901760
  %v2305 = vsub.f32 %v1997, %v2304
  %v2306 = vand.u32 %v2305, 4294901760
  %v2307 = vsub.f32 %v2305, %v2306
  %v2308 = vand.u32 %v2307, 4294901760
  %2309 = vmatmul.mubr.f32.gmra.mxu0 %v2308
  %v2310 = vpop.f32.mrf.mxu0
  %v2311 = vadd.f32 %v2031, %v2310
  %v2312 = vpop.f32.mrf.mxu0
  %2313 = vmatprep.mubr.f32.mxu0 0.0
  %v2314 = vand.u32 %v1998, 4294901760
  %v2315 = vsub.f32 %v1998, %v2314
  %v2316 = vand.u32 %v2315, 4294901760
  %v2317 = vsub.f32 %v2315, %v2316
  %v2318 = vand.u32 %v2317, 4294901760
  %2319 = vmatmul.mubr.f32.gmra.mxu0 %v2318
  %v2320 = vpop.f32.mrf.mxu0
  %v2321 = vadd.f32 %v2031, %v2320
  %v2322 = vpop.f32.mrf.mxu0
  %2323 = vmatprep.mubr.f32.mxu0 0.0
  %v2324 = vand.u32 %v1999, 4294901760
  %v2325 = vsub.f32 %v1999, %v2324
  %v2326 = vand.u32 %v2325, 4294901760
  %v2327 = vsub.f32 %v2325, %v2326
  %v2328 = vand.u32 %v2327, 4294901760
  %2329 = vmatmul.mubr.f32.gmra.mxu0 %v2328
  %v2330 = vpop.f32.mrf.mxu0
  %v2331 = vadd.f32 %v2031, %v2330
  %v2332 = vpop.f32.mrf.mxu0
  %2333 = vmatprep.mubr.f32.mxu0 0.0
  %v2334 = vand.u32 %v2000, 4294901760
  %v2335 = vsub.f32 %v2000, %v2334
  %v2336 = vand.u32 %v2335, 4294901760
  %v2337 = vsub.f32 %v2335, %v2336
  %v2338 = vand.u32 %v2337, 4294901760
  %2339 = vmatmul.mubr.f32.gmra.mxu0 %v2338
  %v2340 = vpop.f32.mrf.mxu0
  %v2341 = vadd.f32 %v2031, %v2340
  %v2342 = vpop.f32.mrf.mxu0
  %2343 = vmatprep.mubr.f32.mxu0 0.0
  %v2344 = vand.u32 %v2001, 4294901760
  %v2345 = vsub.f32 %v2001, %v2344
  %v2346 = vand.u32 %v2345, 4294901760
  %v2347 = vsub.f32 %v2345, %v2346
  %v2348 = vand.u32 %v2347, 4294901760
  %2349 = vmatmul.mubr.f32.gmra.mxu0 %v2348
  %v2350 = vpop.f32.mrf.mxu0
  %v2351 = vadd.f32 %v2031, %v2350
  %v2352 = vpop.f32.mrf.mxu0
  %2353 = vmatprep.mubr.f32.mxu0 0.0
  %v2354 = vand.u32 %v2002, 4294901760
  %v2355 = vsub.f32 %v2002, %v2354
  %v2356 = vand.u32 %v2355, 4294901760
  %v2357 = vsub.f32 %v2355, %v2356
  %v2358 = vand.u32 %v2357, 4294901760
  %2359 = vmatmul.mubr.f32.gmra.mxu0 %v2358
  %v2360 = vpop.f32.mrf.mxu0
  %v2361 = vadd.f32 %v2031, %v2360
  %v2362 = vpop.f32.mrf.mxu0
  %2363 = vmatprep.mubr.f32.mxu0 0.0
  %v2364 = vand.u32 %v2003, 4294901760
  %v2365 = vsub.f32 %v2003, %v2364
  %v2366 = vand.u32 %v2365, 4294901760
  %v2367 = vsub.f32 %v2365, %v2366
  %v2368 = vand.u32 %v2367, 4294901760
  %2369 = vmatmul.mubr.f32.gmra.mxu0 %v2368
  %v2370 = vpop.f32.mrf.mxu0
  %v2371 = vadd.f32 %v2031, %v2370
  %v2372 = vpop.f32.mrf.mxu0
  %2373 = vmatprep.mubr.f32.mxu0 0.0
  %v2374 = vand.u32 %v2004, 4294901760
  %v2375 = vsub.f32 %v2004, %v2374
  %v2376 = vand.u32 %v2375, 4294901760
  %v2377 = vsub.f32 %v2375, %v2376
  %v2378 = vand.u32 %v2377, 4294901760
  %2379 = vmatmul.mubr.f32.gmra.mxu0 %v2378
  %v2380 = vpop.f32.mrf.mxu0
  %v2381 = vadd.f32 %v2031, %v2380
  %v2382 = vpop.f32.mrf.mxu0
  %2383 = vmatprep.mubr.f32.mxu0 0.0
  %v2384 = vand.u32 %v2005, 4294901760
  %v2385 = vsub.f32 %v2005, %v2384
  %v2386 = vand.u32 %v2385, 4294901760
  %v2387 = vsub.f32 %v2385, %v2386
  %v2388 = vand.u32 %v2387, 4294901760
  %2389 = vmatmul.mubr.f32.gmra.mxu0 %v2388
  %v2390 = vpop.f32.mrf.mxu0
  %v2391 = vadd.f32 %v2031, %v2390
  %v2392 = vpop.f32.mrf.mxu0
  %2393 = vmatprep.mubr.f32.mxu0 0.0
  %v2394 = vand.u32 %v2006, 4294901760
  %v2395 = vsub.f32 %v2006, %v2394
  %v2396 = vand.u32 %v2395, 4294901760
  %v2397 = vsub.f32 %v2395, %v2396
  %v2398 = vand.u32 %v2397, 4294901760
  %2399 = vmatmul.mubr.f32.gmra.mxu0 %v2398
  %v2400 = vpop.f32.mrf.mxu0
  %v2401 = vadd.f32 %v2031, %v2400
  %v2402 = vpop.f32.mrf.mxu0
  %2403 = vmatprep.mubr.f32.mxu0 0.0
  %v2404 = vand.u32 %v2007, 4294901760
  %v2405 = vsub.f32 %v2007, %v2404
  %v2406 = vand.u32 %v2405, 4294901760
  %v2407 = vsub.f32 %v2405, %v2406
  %v2408 = vand.u32 %v2407, 4294901760
  %2409 = vmatmul.mubr.f32.gmra.mxu0 %v2408
  %v2410 = vpop.f32.mrf.mxu0
  %v2411 = vadd.f32 %v2031, %v2410
  %v2412 = vpop.f32.mrf.mxu0
  %2413 = vmatprep.mubr.f32.mxu0 0.0
  %v2414 = vand.u32 %v2008, 4294901760
  %v2415 = vsub.f32 %v2008, %v2414
  %v2416 = vand.u32 %v2415, 4294901760
  %v2417 = vsub.f32 %v2415, %v2416
  %v2418 = vand.u32 %v2417, 4294901760
  %2419 = vmatmul.mubr.f32.gmra.mxu0 %v2418
  %v2420 = vpop.f32.mrf.mxu0
  %v2421 = vadd.f32 %v2031, %v2420
  %v2422 = vpop.f32.mrf.mxu0
  %2423 = vmatprep.mubr.f32.mxu0 0.0
  %v2424 = vand.u32 %v2009, 4294901760
  %v2425 = vsub.f32 %v2009, %v2424
  %v2426 = vand.u32 %v2425, 4294901760
  %v2427 = vsub.f32 %v2425, %v2426
  %v2428 = vand.u32 %v2427, 4294901760
  %2429 = vmatmul.mubr.f32.gmra.mxu0 %v2428
  %v2430 = vpop.f32.mrf.mxu0
  %v2431 = vadd.f32 %v2031, %v2430
  %v2432 = vpop.f32.mrf.mxu0
  %2433 = vdwg.mxu0
  %2434 = vmatprep.subr.mxu0 0.0
  %v2435 = vand.u32 %v2025, 4294901760
  %v2436 = vsub.f32 %v2025, %v2435
  %v2437 = vand.u32 %v2436, 4294901760
  %v2438 = vsub.f32 %v2436, %v2437
  %v2439 = vand.u32 %v2438, 4294901760
  %2440 = vmatpush1.msra.mxu0 %v2439
  %2441 = vmatprep.subr.mxu0 0.0
  %v2442 = vand.u32 %v2024, 4294901760
  %v2443 = vsub.f32 %v2024, %v2442
  %v2444 = vand.u32 %v2443, 4294901760
  %v2445 = vsub.f32 %v2443, %v2444
  %v2446 = vand.u32 %v2445, 4294901760
  %2447 = vmatpush1.msra.mxu0 %v2446
  %2448 = vmatprep.subr.mxu0 0.0
  %v2449 = vand.u32 %v2023, 4294901760
  %v2450 = vsub.f32 %v2023, %v2449
  %v2451 = vand.u32 %v2450, 4294901760
  %v2452 = vsub.f32 %v2450, %v2451
  %v2453 = vand.u32 %v2452, 4294901760
  %2454 = vmatpush1.msra.mxu0 %v2453
  %2455 = vmatprep.subr.mxu0 0.0
  %v2456 = vand.u32 %v2022, 4294901760
  %v2457 = vsub.f32 %v2022, %v2456
  %v2458 = vand.u32 %v2457, 4294901760
  %v2459 = vsub.f32 %v2457, %v2458
  %v2460 = vand.u32 %v2459, 4294901760
  %2461 = vmatpush1.msra.mxu0 %v2460
  %2462 = vmatprep.subr.mxu0 0.0
  %v2463 = vand.u32 %v2021, 4294901760
  %v2464 = vsub.f32 %v2021, %v2463
  %v2465 = vand.u32 %v2464, 4294901760
  %v2466 = vsub.f32 %v2464, %v2465
  %v2467 = vand.u32 %v2466, 4294901760
  %2468 = vmatpush1.msra.mxu0 %v2467
  %2469 = vmatprep.subr.mxu0 0.0
  %v2470 = vand.u32 %v2020, 4294901760
  %v2471 = vsub.f32 %v2020, %v2470
  %v2472 = vand.u32 %v2471, 4294901760
  %v2473 = vsub.f32 %v2471, %v2472
  %v2474 = vand.u32 %v2473, 4294901760
  %2475 = vmatpush1.msra.mxu0 %v2474
  %2476 = vmatprep.subr.mxu0 0.0
  %v2477 = vand.u32 %v2019, 4294901760
  %v2478 = vsub.f32 %v2019, %v2477
  %v2479 = vand.u32 %v2478, 4294901760
  %v2480 = vsub.f32 %v2478, %v2479
  %v2481 = vand.u32 %v2480, 4294901760
  %2482 = vmatpush1.msra.mxu0 %v2481
  %2483 = vmatprep.subr.mxu0 0.0
  %v2484 = vand.u32 %v2018, 4294901760
  %v2485 = vsub.f32 %v2018, %v2484
  %v2486 = vand.u32 %v2485, 4294901760
  %v2487 = vsub.f32 %v2485, %v2486
  %v2488 = vand.u32 %v2487, 4294901760
  %2489 = vmatpush1.msra.mxu0 %v2488
  %2490 = vmatprep.subr.mxu0 0.0
  %v2491 = vand.u32 %v2017, 4294901760
  %v2492 = vsub.f32 %v2017, %v2491
  %v2493 = vand.u32 %v2492, 4294901760
  %v2494 = vsub.f32 %v2492, %v2493
  %v2495 = vand.u32 %v2494, 4294901760
  %2496 = vmatpush1.msra.mxu0 %v2495
  %2497 = vmatprep.subr.mxu0 0.0
  %v2498 = vand.u32 %v2016, 4294901760
  %v2499 = vsub.f32 %v2016, %v2498
  %v2500 = vand.u32 %v2499, 4294901760
  %v2501 = vsub.f32 %v2499, %v2500
  %v2502 = vand.u32 %v2501, 4294901760
  %2503 = vmatpush1.msra.mxu0 %v2502
  %2504 = vmatprep.subr.mxu0 0.0
  %v2505 = vand.u32 %v2015, 4294901760
  %v2506 = vsub.f32 %v2015, %v2505
  %v2507 = vand.u32 %v2506, 4294901760
  %v2508 = vsub.f32 %v2506, %v2507
  %v2509 = vand.u32 %v2508, 4294901760
  %2510 = vmatpush1.msra.mxu0 %v2509
  %2511 = vmatprep.subr.mxu0 0.0
  %v2512 = vand.u32 %v2014, 4294901760
  %v2513 = vsub.f32 %v2014, %v2512
  %v2514 = vand.u32 %v2513, 4294901760
  %v2515 = vsub.f32 %v2513, %v2514
  %v2516 = vand.u32 %v2515, 4294901760
  %2517 = vmatpush1.msra.mxu0 %v2516
  %2518 = vmatprep.subr.mxu0 0.0
  %v2519 = vand.u32 %v2013, 4294901760
  %v2520 = vsub.f32 %v2013, %v2519
  %v2521 = vand.u32 %v2520, 4294901760
  %v2522 = vsub.f32 %v2520, %v2521
  %v2523 = vand.u32 %v2522, 4294901760
  %2524 = vmatpush1.msra.mxu0 %v2523
  %2525 = vmatprep.subr.mxu0 0.0
  %v2526 = vand.u32 %v2012, 4294901760
  %v2527 = vsub.f32 %v2012, %v2526
  %v2528 = vand.u32 %v2527, 4294901760
  %v2529 = vsub.f32 %v2527, %v2528
  %v2530 = vand.u32 %v2529, 4294901760
  %2531 = vmatpush1.msra.mxu0 %v2530
  %2532 = vmatprep.subr.mxu0 0.0
  %v2533 = vand.u32 %v2011, 4294901760
  %v2534 = vsub.f32 %v2011, %v2533
  %v2535 = vand.u32 %v2534, 4294901760
  %v2536 = vsub.f32 %v2534, %v2535
  %v2537 = vand.u32 %v2536, 4294901760
  %2538 = vmatpush1.msra.mxu0 %v2537
  %2539 = vmatprep.subr.mxu0 0.0
  %v2540 = vand.u32 %v2010, 4294901760
  %v2541 = vsub.f32 %v2010, %v2540
  %v2542 = vand.u32 %v2541, 4294901760
  %v2543 = vsub.f32 %v2541, %v2542
  %v2544 = vand.u32 %v2543, 4294901760
  %2545 = vmatpush1.msra.mxu0 %v2544
  %2546 = vmatprep.subr.mxu0 0.0
  %2547 = vmatpush2.msra.mxu0 0.0
  %2548 = vmatprep.subr.mxu0 0.0
  %2549 = vmatpush2.msra.mxu0 0.0
  %2550 = vmatprep.subr.mxu0 0.0
  %2551 = vmatpush2.msra.mxu0 0.0
  %2552 = vmatprep.subr.mxu0 0.0
  %2553 = vmatpush2.msra.mxu0 0.0
  %2554 = vmatprep.subr.mxu0 0.0
  %2555 = vmatpush2.msra.mxu0 0.0
  %2556 = vmatprep.subr.mxu0 0.0
  %2557 = vmatpush2.msra.mxu0 0.0
  %2558 = vmatprep.subr.mxu0 0.0
  %2559 = vmatpush2.msra.mxu0 0.0
  %2560 = vmatprep.subr.mxu0 0.0
  %2561 = vmatpush2.msra.mxu0 0.0
  %2562 = vmatprep.subr.mxu0 0.0
  %2563 = vmatpush2.msra.mxu0 0.0
  %2564 = vmatprep.subr.mxu0 0.0
  %2565 = vmatpush2.msra.mxu0 0.0
  %2566 = vmatprep.subr.mxu0 0.0
  %2567 = vmatpush2.msra.mxu0 0.0
  %2568 = vmatprep.subr.mxu0 0.0
  %2569 = vmatpush2.msra.mxu0 0.0
  %2570 = vmatprep.subr.mxu0 0.0
  %2571 = vmatpush2.msra.mxu0 0.0
  %2572 = vmatprep.subr.mxu0 0.0
  %2573 = vmatpush2.msra.mxu0 0.0
  %2574 = vmatprep.subr.mxu0 0.0
  %2575 = vmatpush2.msra.mxu0 0.0
  %2576 = vmatprep.subr.mxu0 0.0
  %2577 = vmatpush2.msra.mxu0 0.0
  %2578 = vmatprep.mubr.f32.mxu0 0.0
  %v2579 = vand.u32 %v1978, 4294901760
  %2580 = vmatmul.mubr.f32.gmra.mxu0 %v2579
  %v2581 = vpop.f32.mrf.mxu0
  %v2582 = vadd.f32 %v2121, %v2581
  %v2583 = vpop.f32.mrf.mxu0
  %2584 = vmatprep.mubr.f32.mxu0 0.0
  %v2585 = vand.u32 %v1979, 4294901760
  %2586 = vmatmul.mubr.f32.gmra.mxu0 %v2585
  %v2587 = vpop.f32.mrf.mxu0
  %v2588 = vadd.f32 %v2131, %v2587
  %v2589 = vpop.f32.mrf.mxu0
  %2590 = vmatprep.mubr.f32.mxu0 0.0
  %v2591 = vand.u32 %v1980, 4294901760
  %2592 = vmatmul.mubr.f32.gmra.mxu0 %v2591
  %v2593 = vpop.f32.mrf.mxu0
  %v2594 = vadd.f32 %v2141, %v2593
  %v2595 = vpop.f32.mrf.mxu0
  %2596 = vmatprep.mubr.f32.mxu0 0.0
  %v2597 = vand.u32 %v1981, 4294901760
  %2598 = vmatmul.mubr.f32.gmra.mxu0 %v2597
  %v2599 = vpop.f32.mrf.mxu0
  %v2600 = vadd.f32 %v2151, %v2599
  %v2601 = vpop.f32.mrf.mxu0
  %2602 = vmatprep.mubr.f32.mxu0 0.0
  %v2603 = vand.u32 %v1982, 4294901760
  %2604 = vmatmul.mubr.f32.gmra.mxu0 %v2603
  %v2605 = vpop.f32.mrf.mxu0
  %v2606 = vadd.f32 %v2161, %v2605
  %v2607 = vpop.f32.mrf.mxu0
  %2608 = vmatprep.mubr.f32.mxu0 0.0
  %v2609 = vand.u32 %v1983, 4294901760
  %2610 = vmatmul.mubr.f32.gmra.mxu0 %v2609
  %v2611 = vpop.f32.mrf.mxu0
  %v2612 = vadd.f32 %v2171, %v2611
  %v2613 = vpop.f32.mrf.mxu0
  %2614 = vmatprep.mubr.f32.mxu0 0.0
  %v2615 = vand.u32 %v1984, 4294901760
  %2616 = vmatmul.mubr.f32.gmra.mxu0 %v2615
  %v2617 = vpop.f32.mrf.mxu0
  %v2618 = vadd.f32 %v2181, %v2617
  %v2619 = vpop.f32.mrf.mxu0
  %2620 = vmatprep.mubr.f32.mxu0 0.0
  %v2621 = vand.u32 %v1985, 4294901760
  %2622 = vmatmul.mubr.f32.gmra.mxu0 %v2621
  %v2623 = vpop.f32.mrf.mxu0
  %v2624 = vadd.f32 %v2191, %v2623
  %v2625 = vpop.f32.mrf.mxu0
  %2626 = vmatprep.mubr.f32.mxu0 0.0
  %v2627 = vand.u32 %v1986, 4294901760
  %2628 = vmatmul.mubr.f32.gmra.mxu0 %v2627
  %v2629 = vpop.f32.mrf.mxu0
  %v2630 = vadd.f32 %v2201, %v2629
  %v2631 = vpop.f32.mrf.mxu0
  %2632 = vmatprep.mubr.f32.mxu0 0.0
  %v2633 = vand.u32 %v1987, 4294901760
  %2634 = vmatmul.mubr.f32.gmra.mxu0 %v2633
  %v2635 = vpop.f32.mrf.mxu0
  %v2636 = vadd.f32 %v2211, %v2635
  %v2637 = vpop.f32.mrf.mxu0
  %2638 = vmatprep.mubr.f32.mxu0 0.0
  %v2639 = vand.u32 %v1988, 4294901760
  %2640 = vmatmul.mubr.f32.gmra.mxu0 %v2639
  %v2641 = vpop.f32.mrf.mxu0
  %v2642 = vadd.f32 %v2221, %v2641
  %v2643 = vpop.f32.mrf.mxu0
  %2644 = vmatprep.mubr.f32.mxu0 0.0
  %v2645 = vand.u32 %v1989, 4294901760
  %2646 = vmatmul.mubr.f32.gmra.mxu0 %v2645
  %v2647 = vpop.f32.mrf.mxu0
  %v2648 = vadd.f32 %v2231, %v2647
  %v2649 = vpop.f32.mrf.mxu0
  %2650 = vmatprep.mubr.f32.mxu0 0.0
  %v2651 = vand.u32 %v1990, 4294901760
  %2652 = vmatmul.mubr.f32.gmra.mxu0 %v2651
  %v2653 = vpop.f32.mrf.mxu0
  %v2654 = vadd.f32 %v2241, %v2653
  %v2655 = vpop.f32.mrf.mxu0
  %2656 = vmatprep.mubr.f32.mxu0 0.0
  %v2657 = vand.u32 %v1991, 4294901760
  %2658 = vmatmul.mubr.f32.gmra.mxu0 %v2657
  %v2659 = vpop.f32.mrf.mxu0
  %v2660 = vadd.f32 %v2251, %v2659
  %v2661 = vpop.f32.mrf.mxu0
  %2662 = vmatprep.mubr.f32.mxu0 0.0
  %v2663 = vand.u32 %v1992, 4294901760
  %2664 = vmatmul.mubr.f32.gmra.mxu0 %v2663
  %v2665 = vpop.f32.mrf.mxu0
  %v2666 = vadd.f32 %v2261, %v2665
  %v2667 = vpop.f32.mrf.mxu0
  %2668 = vmatprep.mubr.f32.mxu0 0.0
  %v2669 = vand.u32 %v1993, 4294901760
  %2670 = vmatmul.mubr.f32.gmra.mxu0 %v2669
  %v2671 = vpop.f32.mrf.mxu0
  %v2672 = vadd.f32 %v2271, %v2671
  %v2673 = vpop.f32.mrf.mxu0
  %2674 = vmatprep.mubr.f32.mxu0 0.0
  %v2675 = vand.u32 %v1994, 4294901760
  %2676 = vmatmul.mubr.f32.gmra.mxu0 %v2675
  %v2677 = vpop.f32.mrf.mxu0
  %v2678 = vadd.f32 %v2281, %v2677
  %v2679 = vpop.f32.mrf.mxu0
  %2680 = vmatprep.mubr.f32.mxu0 0.0
  %v2681 = vand.u32 %v1995, 4294901760
  %2682 = vmatmul.mubr.f32.gmra.mxu0 %v2681
  %v2683 = vpop.f32.mrf.mxu0
  %v2684 = vadd.f32 %v2291, %v2683
  %v2685 = vpop.f32.mrf.mxu0
  %2686 = vmatprep.mubr.f32.mxu0 0.0
  %v2687 = vand.u32 %v1996, 4294901760
  %2688 = vmatmul.mubr.f32.gmra.mxu0 %v2687
  %v2689 = vpop.f32.mrf.mxu0
  %v2690 = vadd.f32 %v2301, %v2689
  %v2691 = vpop.f32.mrf.mxu0
  %2692 = vmatprep.mubr.f32.mxu0 0.0
  %v2693 = vand.u32 %v1997, 4294901760
  %2694 = vmatmul.mubr.f32.gmra.mxu0 %v2693
  %v2695 = vpop.f32.mrf.mxu0
  %v2696 = vadd.f32 %v2311, %v2695
  %v2697 = vpop.f32.mrf.mxu0
  %2698 = vmatprep.mubr.f32.mxu0 0.0
  %v2699 = vand.u32 %v1998, 4294901760
  %2700 = vmatmul.mubr.f32.gmra.mxu0 %v2699
  %v2701 = vpop.f32.mrf.mxu0
  %v2702 = vadd.f32 %v2321, %v2701
  %v2703 = vpop.f32.mrf.mxu0
  %2704 = vmatprep.mubr.f32.mxu0 0.0
  %v2705 = vand.u32 %v1999, 4294901760
  %2706 = vmatmul.mubr.f32.gmra.mxu0 %v2705
  %v2707 = vpop.f32.mrf.mxu0
  %v2708 = vadd.f32 %v2331, %v2707
  %v2709 = vpop.f32.mrf.mxu0
  %2710 = vmatprep.mubr.f32.mxu0 0.0
  %v2711 = vand.u32 %v2000, 4294901760
  %2712 = vmatmul.mubr.f32.gmra.mxu0 %v2711
  %v2713 = vpop.f32.mrf.mxu0
  %v2714 = vadd.f32 %v2341, %v2713
  %v2715 = vpop.f32.mrf.mxu0
  %2716 = vmatprep.mubr.f32.mxu0 0.0
  %v2717 = vand.u32 %v2001, 4294901760
  %2718 = vmatmul.mubr.f32.gmra.mxu0 %v2717
  %v2719 = vpop.f32.mrf.mxu0
  %v2720 = vadd.f32 %v2351, %v2719
  %v2721 = vpop.f32.mrf.mxu0
  %2722 = vmatprep.mubr.f32.mxu0 0.0
  %v2723 = vand.u32 %v2002, 4294901760
  %2724 = vmatmul.mubr.f32.gmra.mxu0 %v2723
  %v2725 = vpop.f32.mrf.mxu0
  %v2726 = vadd.f32 %v2361, %v2725
  %v2727 = vpop.f32.mrf.mxu0
  %2728 = vmatprep.mubr.f32.mxu0 0.0
  %v2729 = vand.u32 %v2003, 4294901760
  %2730 = vmatmul.mubr.f32.gmra.mxu0 %v2729
  %v2731 = vpop.f32.mrf.mxu0
  %v2732 = vadd.f32 %v2371, %v2731
  %v2733 = vpop.f32.mrf.mxu0
  %2734 = vmatprep.mubr.f32.mxu0 0.0
  %v2735 = vand.u32 %v2004, 4294901760
  %2736 = vmatmul.mubr.f32.gmra.mxu0 %v2735
  %v2737 = vpop.f32.mrf.mxu0
  %v2738 = vadd.f32 %v2381, %v2737
  %v2739 = vpop.f32.mrf.mxu0
  %2740 = vmatprep.mubr.f32.mxu0 0.0
  %v2741 = vand.u32 %v2005, 4294901760
  %2742 = vmatmul.mubr.f32.gmra.mxu0 %v2741
  %v2743 = vpop.f32.mrf.mxu0
  %v2744 = vadd.f32 %v2391, %v2743
  %v2745 = vpop.f32.mrf.mxu0
  %2746 = vmatprep.mubr.f32.mxu0 0.0
  %v2747 = vand.u32 %v2006, 4294901760
  %2748 = vmatmul.mubr.f32.gmra.mxu0 %v2747
  %v2749 = vpop.f32.mrf.mxu0
  %v2750 = vadd.f32 %v2401, %v2749
  %v2751 = vpop.f32.mrf.mxu0
  %2752 = vmatprep.mubr.f32.mxu0 0.0
  %v2753 = vand.u32 %v2007, 4294901760
  %2754 = vmatmul.mubr.f32.gmra.mxu0 %v2753
  %v2755 = vpop.f32.mrf.mxu0
  %v2756 = vadd.f32 %v2411, %v2755
  %v2757 = vpop.f32.mrf.mxu0
  %2758 = vmatprep.mubr.f32.mxu0 0.0
  %v2759 = vand.u32 %v2008, 4294901760
  %2760 = vmatmul.mubr.f32.gmra.mxu0 %v2759
  %v2761 = vpop.f32.mrf.mxu0
  %v2762 = vadd.f32 %v2421, %v2761
  %v2763 = vpop.f32.mrf.mxu0
  %2764 = vmatprep.mubr.f32.mxu0 0.0
  %v2765 = vand.u32 %v2009, 4294901760
  %2766 = vmatmul.mubr.f32.gmra.mxu0 %v2765
  %v2767 = vpop.f32.mrf.mxu0
  %v2768 = vadd.f32 %v2431, %v2767
  %v2769 = vpop.f32.mrf.mxu0
  %2770 = vdwg.mxu0
  %2771 = vmatprep.subr.mxu0 0.0
  %v2772 = vand.u32 %v2025, 4294901760
  %v2773 = vsub.f32 %v2025, %v2772
  %2774 = vmatpush1.msra.mxu0 %v2773
  %2775 = vmatprep.subr.mxu0 0.0
  %v2776 = vand.u32 %v2024, 4294901760
  %v2777 = vsub.f32 %v2024, %v2776
  %2778 = vmatpush1.msra.mxu0 %v2777
  %2779 = vmatprep.subr.mxu0 0.0
  %v2780 = vand.u32 %v2023, 4294901760
  %v2781 = vsub.f32 %v2023, %v2780
  %2782 = vmatpush1.msra.mxu0 %v2781
  %2783 = vmatprep.subr.mxu0 0.0
  %v2784 = vand.u32 %v2022, 4294901760
  %v2785 = vsub.f32 %v2022, %v2784
  %2786 = vmatpush1.msra.mxu0 %v2785
  %2787 = vmatprep.subr.mxu0 0.0
  %v2788 = vand.u32 %v2021, 4294901760
  %v2789 = vsub.f32 %v2021, %v2788
  %2790 = vmatpush1.msra.mxu0 %v2789
  %2791 = vmatprep.subr.mxu0 0.0
  %v2792 = vand.u32 %v2020, 4294901760
  %v2793 = vsub.f32 %v2020, %v2792
  %2794 = vmatpush1.msra.mxu0 %v2793
  %2795 = vmatprep.subr.mxu0 0.0
  %v2796 = vand.u32 %v2019, 4294901760
  %v2797 = vsub.f32 %v2019, %v2796
  %2798 = vmatpush1.msra.mxu0 %v2797
  %2799 = vmatprep.subr.mxu0 0.0
  %v2800 = vand.u32 %v2018, 4294901760
  %v2801 = vsub.f32 %v2018, %v2800
  %2802 = vmatpush1.msra.mxu0 %v2801
  %2803 = vmatprep.subr.mxu0 0.0
  %v2804 = vand.u32 %v2017, 4294901760
  %v2805 = vsub.f32 %v2017, %v2804
  %2806 = vmatpush1.msra.mxu0 %v2805
  %2807 = vmatprep.subr.mxu0 0.0
  %v2808 = vand.u32 %v2016, 4294901760
  %v2809 = vsub.f32 %v2016, %v2808
  %2810 = vmatpush1.msra.mxu0 %v2809
  %2811 = vmatprep.subr.mxu0 0.0
  %v2812 = vand.u32 %v2015, 4294901760
  %v2813 = vsub.f32 %v2015, %v2812
  %2814 = vmatpush1.msra.mxu0 %v2813
  %2815 = vmatprep.subr.mxu0 0.0
  %v2816 = vand.u32 %v2014, 4294901760
  %v2817 = vsub.f32 %v2014, %v2816
  %2818 = vmatpush1.msra.mxu0 %v2817
  %2819 = vmatprep.subr.mxu0 0.0
  %v2820 = vand.u32 %v2013, 4294901760
  %v2821 = vsub.f32 %v2013, %v2820
  %2822 = vmatpush1.msra.mxu0 %v2821
  %2823 = vmatprep.subr.mxu0 0.0
  %v2824 = vand.u32 %v2012, 4294901760
  %v2825 = vsub.f32 %v2012, %v2824
  %2826 = vmatpush1.msra.mxu0 %v2825
  %2827 = vmatprep.subr.mxu0 0.0
  %v2828 = vand.u32 %v2011, 4294901760
  %v2829 = vsub.f32 %v2011, %v2828
  %2830 = vmatpush1.msra.mxu0 %v2829
  %2831 = vmatprep.subr.mxu0 0.0
  %v2832 = vand.u32 %v2010, 4294901760
  %v2833 = vsub.f32 %v2010, %v2832
  %2834 = vmatpush1.msra.mxu0 %v2833
  %2835 = vmatprep.subr.mxu0 0.0
  %2836 = vmatpush2.msra.mxu0 0.0
  %2837 = vmatprep.subr.mxu0 0.0
  %2838 = vmatpush2.msra.mxu0 0.0
  %2839 = vmatprep.subr.mxu0 0.0
  %2840 = vmatpush2.msra.mxu0 0.0
  %2841 = vmatprep.subr.mxu0 0.0
  %2842 = vmatpush2.msra.mxu0 0.0
  %2843 = vmatprep.subr.mxu0 0.0
  %2844 = vmatpush2.msra.mxu0 0.0
  %2845 = vmatprep.subr.mxu0 0.0
  %2846 = vmatpush2.msra.mxu0 0.0
  %2847 = vmatprep.subr.mxu0 0.0
  %2848 = vmatpush2.msra.mxu0 0.0
  %2849 = vmatprep.subr.mxu0 0.0
  %2850 = vmatpush2.msra.mxu0 0.0
  %2851 = vmatprep.subr.mxu0 0.0
  %2852 = vmatpush2.msra.mxu0 0.0
  %2853 = vmatprep.subr.mxu0 0.0
  %2854 = vmatpush2.msra.mxu0 0.0
  %2855 = vmatprep.subr.mxu0 0.0
  %2856 = vmatpush2.msra.mxu0 0.0
  %2857 = vmatprep.subr.mxu0 0.0
  %2858 = vmatpush2.msra.mxu0 0.0
  %2859 = vmatprep.subr.mxu0 0.0
  %2860 = vmatpush2.msra.mxu0 0.0
  %2861 = vmatprep.subr.mxu0 0.0
  %2862 = vmatpush2.msra.mxu0 0.0
  %2863 = vmatprep.subr.mxu0 0.0
  %2864 = vmatpush2.msra.mxu0 0.0
  %2865 = vmatprep.subr.mxu0 0.0
  %2866 = vmatpush2.msra.mxu0 0.0
  %2867 = vmatprep.mubr.f32.mxu0 0.0
  %v2868 = vand.u32 %v1978, 4294901760
  %v2869 = vsub.f32 %v1978, %v2868
  %2870 = vmatmul.mubr.f32.gmra.mxu0 %v2869
  %v2871 = vpop.f32.mrf.mxu0
  %v2872 = vadd.f32 %v2582, %v2871
  %v2873 = vpop.f32.mrf.mxu0
  %2874 = vmatprep.mubr.f32.mxu0 0.0
  %v2875 = vand.u32 %v1979, 4294901760
  %v2876 = vsub.f32 %v1979, %v2875
  %2877 = vmatmul.mubr.f32.gmra.mxu0 %v2876
  %v2878 = vpop.f32.mrf.mxu0
  %v2879 = vadd.f32 %v2588, %v2878
  %v2880 = vpop.f32.mrf.mxu0
  %2881 = vmatprep.mubr.f32.mxu0 0.0
  %v2882 = vand.u32 %v1980, 4294901760
  %v2883 = vsub.f32 %v1980, %v2882
  %2884 = vmatmul.mubr.f32.gmra.mxu0 %v2883
  %v2885 = vpop.f32.mrf.mxu0
  %v2886 = vadd.f32 %v2594, %v2885
  %v2887 = vpop.f32.mrf.mxu0
  %2888 = vmatprep.mubr.f32.mxu0 0.0
  %v2889 = vand.u32 %v1981, 4294901760
  %v2890 = vsub.f32 %v1981, %v2889
  %2891 = vmatmul.mubr.f32.gmra.mxu0 %v2890
  %v2892 = vpop.f32.mrf.mxu0
  %v2893 = vadd.f32 %v2600, %v2892
  %v2894 = vpop.f32.mrf.mxu0
  %2895 = vmatprep.mubr.f32.mxu0 0.0
  %v2896 = vand.u32 %v1982, 4294901760
  %v2897 = vsub.f32 %v1982, %v2896
  %2898 = vmatmul.mubr.f32.gmra.mxu0 %v2897
  %v2899 = vpop.f32.mrf.mxu0
  %v2900 = vadd.f32 %v2606, %v2899
  %v2901 = vpop.f32.mrf.mxu0
  %2902 = vmatprep.mubr.f32.mxu0 0.0
  %v2903 = vand.u32 %v1983, 4294901760
  %v2904 = vsub.f32 %v1983, %v2903
  %2905 = vmatmul.mubr.f32.gmra.mxu0 %v2904
  %v2906 = vpop.f32.mrf.mxu0
  %v2907 = vadd.f32 %v2612, %v2906
  %v2908 = vpop.f32.mrf.mxu0
  %2909 = vmatprep.mubr.f32.mxu0 0.0
  %v2910 = vand.u32 %v1984, 4294901760
  %v2911 = vsub.f32 %v1984, %v2910
  %2912 = vmatmul.mubr.f32.gmra.mxu0 %v2911
  %v2913 = vpop.f32.mrf.mxu0
  %v2914 = vadd.f32 %v2618, %v2913
  %v2915 = vpop.f32.mrf.mxu0
  %2916 = vmatprep.mubr.f32.mxu0 0.0
  %v2917 = vand.u32 %v1985, 4294901760
  %v2918 = vsub.f32 %v1985, %v2917
  %2919 = vmatmul.mubr.f32.gmra.mxu0 %v2918
  %v2920 = vpop.f32.mrf.mxu0
  %v2921 = vadd.f32 %v2624, %v2920
  %v2922 = vpop.f32.mrf.mxu0
  %2923 = vmatprep.mubr.f32.mxu0 0.0
  %v2924 = vand.u32 %v1986, 4294901760
  %v2925 = vsub.f32 %v1986, %v2924
  %2926 = vmatmul.mubr.f32.gmra.mxu0 %v2925
  %v2927 = vpop.f32.mrf.mxu0
  %v2928 = vadd.f32 %v2630, %v2927
  %v2929 = vpop.f32.mrf.mxu0
  %2930 = vmatprep.mubr.f32.mxu0 0.0
  %v2931 = vand.u32 %v1987, 4294901760
  %v2932 = vsub.f32 %v1987, %v2931
  %2933 = vmatmul.mubr.f32.gmra.mxu0 %v2932
  %v2934 = vpop.f32.mrf.mxu0
  %v2935 = vadd.f32 %v2636, %v2934
  %v2936 = vpop.f32.mrf.mxu0
  %2937 = vmatprep.mubr.f32.mxu0 0.0
  %v2938 = vand.u32 %v1988, 4294901760
  %v2939 = vsub.f32 %v1988, %v2938
  %2940 = vmatmul.mubr.f32.gmra.mxu0 %v2939
  %v2941 = vpop.f32.mrf.mxu0
  %v2942 = vadd.f32 %v2642, %v2941
  %v2943 = vpop.f32.mrf.mxu0
  %2944 = vmatprep.mubr.f32.mxu0 0.0
  %v2945 = vand.u32 %v1989, 4294901760
  %v2946 = vsub.f32 %v1989, %v2945
  %2947 = vmatmul.mubr.f32.gmra.mxu0 %v2946
  %v2948 = vpop.f32.mrf.mxu0
  %v2949 = vadd.f32 %v2648, %v2948
  %v2950 = vpop.f32.mrf.mxu0
  %2951 = vmatprep.mubr.f32.mxu0 0.0
  %v2952 = vand.u32 %v1990, 4294901760
  %v2953 = vsub.f32 %v1990, %v2952
  %2954 = vmatmul.mubr.f32.gmra.mxu0 %v2953
  %v2955 = vpop.f32.mrf.mxu0
  %v2956 = vadd.f32 %v2654, %v2955
  %v2957 = vpop.f32.mrf.mxu0
  %2958 = vmatprep.mubr.f32.mxu0 0.0
  %v2959 = vand.u32 %v1991, 4294901760
  %v2960 = vsub.f32 %v1991, %v2959
  %2961 = vmatmul.mubr.f32.gmra.mxu0 %v2960
  %v2962 = vpop.f32.mrf.mxu0
  %v2963 = vadd.f32 %v2660, %v2962
  %v2964 = vpop.f32.mrf.mxu0
  %2965 = vmatprep.mubr.f32.mxu0 0.0
  %v2966 = vand.u32 %v1992, 4294901760
  %v2967 = vsub.f32 %v1992, %v2966
  %2968 = vmatmul.mubr.f32.gmra.mxu0 %v2967
  %v2969 = vpop.f32.mrf.mxu0
  %v2970 = vadd.f32 %v2666, %v2969
  %v2971 = vpop.f32.mrf.mxu0
  %2972 = vmatprep.mubr.f32.mxu0 0.0
  %v2973 = vand.u32 %v1993, 4294901760
  %v2974 = vsub.f32 %v1993, %v2973
  %2975 = vmatmul.mubr.f32.gmra.mxu0 %v2974
  %v2976 = vpop.f32.mrf.mxu0
  %v2977 = vadd.f32 %v2672, %v2976
  %v2978 = vpop.f32.mrf.mxu0
  %2979 = vmatprep.mubr.f32.mxu0 0.0
  %v2980 = vand.u32 %v1994, 4294901760
  %v2981 = vsub.f32 %v1994, %v2980
  %2982 = vmatmul.mubr.f32.gmra.mxu0 %v2981
  %v2983 = vpop.f32.mrf.mxu0
  %v2984 = vadd.f32 %v2678, %v2983
  %v2985 = vpop.f32.mrf.mxu0
  %2986 = vmatprep.mubr.f32.mxu0 0.0
  %v2987 = vand.u32 %v1995, 4294901760
  %v2988 = vsub.f32 %v1995, %v2987
  %2989 = vmatmul.mubr.f32.gmra.mxu0 %v2988
  %v2990 = vpop.f32.mrf.mxu0
  %v2991 = vadd.f32 %v2684, %v2990
  %v2992 = vpop.f32.mrf.mxu0
  %2993 = vmatprep.mubr.f32.mxu0 0.0
  %v2994 = vand.u32 %v1996, 4294901760
  %v2995 = vsub.f32 %v1996, %v2994
  %2996 = vmatmul.mubr.f32.gmra.mxu0 %v2995
  %v2997 = vpop.f32.mrf.mxu0
  %v2998 = vadd.f32 %v2690, %v2997
  %v2999 = vpop.f32.mrf.mxu0
  %3000 = vmatprep.mubr.f32.mxu0 0.0
  %v3001 = vand.u32 %v1997, 4294901760
  %v3002 = vsub.f32 %v1997, %v3001
  %3003 = vmatmul.mubr.f32.gmra.mxu0 %v3002
  %v3004 = vpop.f32.mrf.mxu0
  %v3005 = vadd.f32 %v2696, %v3004
  %v3006 = vpop.f32.mrf.mxu0
  %3007 = vmatprep.mubr.f32.mxu0 0.0
  %v3008 = vand.u32 %v1998, 4294901760
  %v3009 = vsub.f32 %v1998, %v3008
  %3010 = vmatmul.mubr.f32.gmra.mxu0 %v3009
  %v3011 = vpop.f32.mrf.mxu0
  %v3012 = vadd.f32 %v2702, %v3011
  %v3013 = vpop.f32.mrf.mxu0
  %3014 = vmatprep.mubr.f32.mxu0 0.0
  %v3015 = vand.u32 %v1999, 4294901760
  %v3016 = vsub.f32 %v1999, %v3015
  %3017 = vmatmul.mubr.f32.gmra.mxu0 %v3016
  %v3018 = vpop.f32.mrf.mxu0
  %v3019 = vadd.f32 %v2708, %v3018
  %v3020 = vpop.f32.mrf.mxu0
  %3021 = vmatprep.mubr.f32.mxu0 0.0
  %v3022 = vand.u32 %v2000, 4294901760
  %v3023 = vsub.f32 %v2000, %v3022
  %3024 = vmatmul.mubr.f32.gmra.mxu0 %v3023
  %v3025 = vpop.f32.mrf.mxu0
  %v3026 = vadd.f32 %v2714, %v3025
  %v3027 = vpop.f32.mrf.mxu0
  %3028 = vmatprep.mubr.f32.mxu0 0.0
  %v3029 = vand.u32 %v2001, 4294901760
  %v3030 = vsub.f32 %v2001, %v3029
  %3031 = vmatmul.mubr.f32.gmra.mxu0 %v3030
  %v3032 = vpop.f32.mrf.mxu0
  %v3033 = vadd.f32 %v2720, %v3032
  %v3034 = vpop.f32.mrf.mxu0
  %3035 = vmatprep.mubr.f32.mxu0 0.0
  %v3036 = vand.u32 %v2002, 4294901760
  %v3037 = vsub.f32 %v2002, %v3036
  %3038 = vmatmul.mubr.f32.gmra.mxu0 %v3037
  %v3039 = vpop.f32.mrf.mxu0
  %v3040 = vadd.f32 %v2726, %v3039
  %v3041 = vpop.f32.mrf.mxu0
  %3042 = vmatprep.mubr.f32.mxu0 0.0
  %v3043 = vand.u32 %v2003, 4294901760
  %v3044 = vsub.f32 %v2003, %v3043
  %3045 = vmatmul.mubr.f32.gmra.mxu0 %v3044
  %v3046 = vpop.f32.mrf.mxu0
  %v3047 = vadd.f32 %v2732, %v3046
  %v3048 = vpop.f32.mrf.mxu0
  %3049 = vmatprep.mubr.f32.mxu0 0.0
  %v3050 = vand.u32 %v2004, 4294901760
  %v3051 = vsub.f32 %v2004, %v3050
  %3052 = vmatmul.mubr.f32.gmra.mxu0 %v3051
  %v3053 = vpop.f32.mrf.mxu0
  %v3054 = vadd.f32 %v2738, %v3053
  %v3055 = vpop.f32.mrf.mxu0
  %3056 = vmatprep.mubr.f32.mxu0 0.0
  %v3057 = vand.u32 %v2005, 4294901760
  %v3058 = vsub.f32 %v2005, %v3057
  %3059 = vmatmul.mubr.f32.gmra.mxu0 %v3058
  %v3060 = vpop.f32.mrf.mxu0
  %v3061 = vadd.f32 %v2744, %v3060
  %v3062 = vpop.f32.mrf.mxu0
  %3063 = vmatprep.mubr.f32.mxu0 0.0
  %v3064 = vand.u32 %v2006, 4294901760
  %v3065 = vsub.f32 %v2006, %v3064
  %3066 = vmatmul.mubr.f32.gmra.mxu0 %v3065
  %v3067 = vpop.f32.mrf.mxu0
  %v3068 = vadd.f32 %v2750, %v3067
  %v3069 = vpop.f32.mrf.mxu0
  %3070 = vmatprep.mubr.f32.mxu0 0.0
  %v3071 = vand.u32 %v2007, 4294901760
  %v3072 = vsub.f32 %v2007, %v3071
  %3073 = vmatmul.mubr.f32.gmra.mxu0 %v3072
  %v3074 = vpop.f32.mrf.mxu0
  %v3075 = vadd.f32 %v2756, %v3074
  %v3076 = vpop.f32.mrf.mxu0
  %3077 = vmatprep.mubr.f32.mxu0 0.0
  %v3078 = vand.u32 %v2008, 4294901760
  %v3079 = vsub.f32 %v2008, %v3078
  %3080 = vmatmul.mubr.f32.gmra.mxu0 %v3079
  %v3081 = vpop.f32.mrf.mxu0
  %v3082 = vadd.f32 %v2762, %v3081
  %v3083 = vpop.f32.mrf.mxu0
  %3084 = vmatprep.mubr.f32.mxu0 0.0
  %v3085 = vand.u32 %v2009, 4294901760
  %v3086 = vsub.f32 %v2009, %v3085
  %3087 = vmatmul.mubr.f32.gmra.mxu0 %v3086
  %v3088 = vpop.f32.mrf.mxu0
  %v3089 = vadd.f32 %v2768, %v3088
  %v3090 = vpop.f32.mrf.mxu0
  %3091 = vdwg.mxu0
  %3092 = vmatprep.subr.mxu0 0.0
  %v3093 = vand.u32 %v2025, 4294901760
  %3094 = vmatpush1.msra.mxu0 %v3093
  %3095 = vmatprep.subr.mxu0 0.0
  %v3096 = vand.u32 %v2024, 4294901760
  %3097 = vmatpush1.msra.mxu0 %v3096
  %3098 = vmatprep.subr.mxu0 0.0
  %v3099 = vand.u32 %v2023, 4294901760
  %3100 = vmatpush1.msra.mxu0 %v3099
  %3101 = vmatprep.subr.mxu0 0.0
  %v3102 = vand.u32 %v2022, 4294901760
  %3103 = vmatpush1.msra.mxu0 %v3102
  %3104 = vmatprep.subr.mxu0 0.0
  %v3105 = vand.u32 %v2021, 4294901760
  %3106 = vmatpush1.msra.mxu0 %v3105
  %3107 = vmatprep.subr.mxu0 0.0
  %v3108 = vand.u32 %v2020, 4294901760
  %3109 = vmatpush1.msra.mxu0 %v3108
  %3110 = vmatprep.subr.mxu0 0.0
  %v3111 = vand.u32 %v2019, 4294901760
  %3112 = vmatpush1.msra.mxu0 %v3111
  %3113 = vmatprep.subr.mxu0 0.0
  %v3114 = vand.u32 %v2018, 4294901760
  %3115 = vmatpush1.msra.mxu0 %v3114
  %3116 = vmatprep.subr.mxu0 0.0
  %v3117 = vand.u32 %v2017, 4294901760
  %3118 = vmatpush1.msra.mxu0 %v3117
  %3119 = vmatprep.subr.mxu0 0.0
  %v3120 = vand.u32 %v2016, 4294901760
  %3121 = vmatpush1.msra.mxu0 %v3120
  %3122 = vmatprep.subr.mxu0 0.0
  %v3123 = vand.u32 %v2015, 4294901760
  %3124 = vmatpush1.msra.mxu0 %v3123
  %3125 = vmatprep.subr.mxu0 0.0
  %v3126 = vand.u32 %v2014, 4294901760
  %3127 = vmatpush1.msra.mxu0 %v3126
  %3128 = vmatprep.subr.mxu0 0.0
  %v3129 = vand.u32 %v2013, 4294901760
  %3130 = vmatpush1.msra.mxu0 %v3129
  %3131 = vmatprep.subr.mxu0 0.0
  %v3132 = vand.u32 %v2012, 4294901760
  %3133 = vmatpush1.msra.mxu0 %v3132
  %3134 = vmatprep.subr.mxu0 0.0
  %v3135 = vand.u32 %v2011, 4294901760
  %3136 = vmatpush1.msra.mxu0 %v3135
  %3137 = vmatprep.subr.mxu0 0.0
  %v3138 = vand.u32 %v2010, 4294901760
  %3139 = vmatpush1.msra.mxu0 %v3138
  %3140 = vmatprep.subr.mxu0 0.0
  %3141 = vmatpush2.msra.mxu0 0.0
  %3142 = vmatprep.subr.mxu0 0.0
  %3143 = vmatpush2.msra.mxu0 0.0
  %3144 = vmatprep.subr.mxu0 0.0
  %3145 = vmatpush2.msra.mxu0 0.0
  %3146 = vmatprep.subr.mxu0 0.0
  %3147 = vmatpush2.msra.mxu0 0.0
  %3148 = vmatprep.subr.mxu0 0.0
  %3149 = vmatpush2.msra.mxu0 0.0
  %3150 = vmatprep.subr.mxu0 0.0
  %3151 = vmatpush2.msra.mxu0 0.0
  %3152 = vmatprep.subr.mxu0 0.0
  %3153 = vmatpush2.msra.mxu0 0.0
  %3154 = vmatprep.subr.mxu0 0.0
  %3155 = vmatpush2.msra.mxu0 0.0
  %3156 = vmatprep.subr.mxu0 0.0
  %3157 = vmatpush2.msra.mxu0 0.0
  %3158 = vmatprep.subr.mxu0 0.0
  %3159 = vmatpush2.msra.mxu0 0.0
  %3160 = vmatprep.subr.mxu0 0.0
  %3161 = vmatpush2.msra.mxu0 0.0
  %3162 = vmatprep.subr.mxu0 0.0
  %3163 = vmatpush2.msra.mxu0 0.0
  %3164 = vmatprep.subr.mxu0 0.0
  %3165 = vmatpush2.msra.mxu0 0.0
  %3166 = vmatprep.subr.mxu0 0.0
  %3167 = vmatpush2.msra.mxu0 0.0
  %3168 = vmatprep.subr.mxu0 0.0
  %3169 = vmatpush2.msra.mxu0 0.0
  %3170 = vmatprep.subr.mxu0 0.0
  %3171 = vmatpush2.msra.mxu0 0.0
  %3172 = vmatprep.mubr.f32.mxu0 0.0
  %v3173 = vand.u32 %v1978, 4294901760
  %v3174 = vsub.f32 %v1978, %v3173
  %v3175 = vand.u32 %v3174, 4294901760
  %3176 = vmatmul.mubr.f32.gmra.mxu0 %v3175
  %v3177 = vpop.f32.mrf.mxu0
  %v3178 = vadd.f32 %v2872, %v3177
  %v3179 = vpop.f32.mrf.mxu0
  %3180 = vmatprep.mubr.f32.mxu0 0.0
  %v3181 = vand.u32 %v1979, 4294901760
  %v3182 = vsub.f32 %v1979, %v3181
  %v3183 = vand.u32 %v3182, 4294901760
  %3184 = vmatmul.mubr.f32.gmra.mxu0 %v3183
  %v3185 = vpop.f32.mrf.mxu0
  %v3186 = vadd.f32 %v2879, %v3185
  %v3187 = vpop.f32.mrf.mxu0
  %3188 = vmatprep.mubr.f32.mxu0 0.0
  %v3189 = vand.u32 %v1980, 4294901760
  %v3190 = vsub.f32 %v1980, %v3189
  %v3191 = vand.u32 %v3190, 4294901760
  %3192 = vmatmul.mubr.f32.gmra.mxu0 %v3191
  %v3193 = vpop.f32.mrf.mxu0
  %v3194 = vadd.f32 %v2886, %v3193
  %v3195 = vpop.f32.mrf.mxu0
  %3196 = vmatprep.mubr.f32.mxu0 0.0
  %v3197 = vand.u32 %v1981, 4294901760
  %v3198 = vsub.f32 %v1981, %v3197
  %v3199 = vand.u32 %v3198, 4294901760
  %3200 = vmatmul.mubr.f32.gmra.mxu0 %v3199
  %v3201 = vpop.f32.mrf.mxu0
  %v3202 = vadd.f32 %v2893, %v3201
  %v3203 = vpop.f32.mrf.mxu0
  %3204 = vmatprep.mubr.f32.mxu0 0.0
  %v3205 = vand.u32 %v1982, 4294901760
  %v3206 = vsub.f32 %v1982, %v3205
  %v3207 = vand.u32 %v3206, 4294901760
  %3208 = vmatmul.mubr.f32.gmra.mxu0 %v3207
  %v3209 = vpop.f32.mrf.mxu0
  %v3210 = vadd.f32 %v2900, %v3209
  %v3211 = vpop.f32.mrf.mxu0
  %3212 = vmatprep.mubr.f32.mxu0 0.0
  %v3213 = vand.u32 %v1983, 4294901760
  %v3214 = vsub.f32 %v1983, %v3213
  %v3215 = vand.u32 %v3214, 4294901760
  %3216 = vmatmul.mubr.f32.gmra.mxu0 %v3215
  %v3217 = vpop.f32.mrf.mxu0
  %v3218 = vadd.f32 %v2907, %v3217
  %v3219 = vpop.f32.mrf.mxu0
  %3220 = vmatprep.mubr.f32.mxu0 0.0
  %v3221 = vand.u32 %v1984, 4294901760
  %v3222 = vsub.f32 %v1984, %v3221
  %v3223 = vand.u32 %v3222, 4294901760
  %3224 = vmatmul.mubr.f32.gmra.mxu0 %v3223
  %v3225 = vpop.f32.mrf.mxu0
  %v3226 = vadd.f32 %v2914, %v3225
  %v3227 = vpop.f32.mrf.mxu0
  %3228 = vmatprep.mubr.f32.mxu0 0.0
  %v3229 = vand.u32 %v1985, 4294901760
  %v3230 = vsub.f32 %v1985, %v3229
  %v3231 = vand.u32 %v3230, 4294901760
  %3232 = vmatmul.mubr.f32.gmra.mxu0 %v3231
  %v3233 = vpop.f32.mrf.mxu0
  %v3234 = vadd.f32 %v2921, %v3233
  %v3235 = vpop.f32.mrf.mxu0
  %3236 = vmatprep.mubr.f32.mxu0 0.0
  %v3237 = vand.u32 %v1986, 4294901760
  %v3238 = vsub.f32 %v1986, %v3237
  %v3239 = vand.u32 %v3238, 4294901760
  %3240 = vmatmul.mubr.f32.gmra.mxu0 %v3239
  %v3241 = vpop.f32.mrf.mxu0
  %v3242 = vadd.f32 %v2928, %v3241
  %v3243 = vpop.f32.mrf.mxu0
  %3244 = vmatprep.mubr.f32.mxu0 0.0
  %v3245 = vand.u32 %v1987, 4294901760
  %v3246 = vsub.f32 %v1987, %v3245
  %v3247 = vand.u32 %v3246, 4294901760
  %3248 = vmatmul.mubr.f32.gmra.mxu0 %v3247
  %v3249 = vpop.f32.mrf.mxu0
  %v3250 = vadd.f32 %v2935, %v3249
  %v3251 = vpop.f32.mrf.mxu0
  %3252 = vmatprep.mubr.f32.mxu0 0.0
  %v3253 = vand.u32 %v1988, 4294901760
  %v3254 = vsub.f32 %v1988, %v3253
  %v3255 = vand.u32 %v3254, 4294901760
  %3256 = vmatmul.mubr.f32.gmra.mxu0 %v3255
  %v3257 = vpop.f32.mrf.mxu0
  %v3258 = vadd.f32 %v2942, %v3257
  %v3259 = vpop.f32.mrf.mxu0
  %3260 = vmatprep.mubr.f32.mxu0 0.0
  %v3261 = vand.u32 %v1989, 4294901760
  %v3262 = vsub.f32 %v1989, %v3261
  %v3263 = vand.u32 %v3262, 4294901760
  %3264 = vmatmul.mubr.f32.gmra.mxu0 %v3263
  %v3265 = vpop.f32.mrf.mxu0
  %v3266 = vadd.f32 %v2949, %v3265
  %v3267 = vpop.f32.mrf.mxu0
  %3268 = vmatprep.mubr.f32.mxu0 0.0
  %v3269 = vand.u32 %v1990, 4294901760
  %v3270 = vsub.f32 %v1990, %v3269
  %v3271 = vand.u32 %v3270, 4294901760
  %3272 = vmatmul.mubr.f32.gmra.mxu0 %v3271
  %v3273 = vpop.f32.mrf.mxu0
  %v3274 = vadd.f32 %v2956, %v3273
  %v3275 = vpop.f32.mrf.mxu0
  %3276 = vmatprep.mubr.f32.mxu0 0.0
  %v3277 = vand.u32 %v1991, 4294901760
  %v3278 = vsub.f32 %v1991, %v3277
  %v3279 = vand.u32 %v3278, 4294901760
  %3280 = vmatmul.mubr.f32.gmra.mxu0 %v3279
  %v3281 = vpop.f32.mrf.mxu0
  %v3282 = vadd.f32 %v2963, %v3281
  %v3283 = vpop.f32.mrf.mxu0
  %3284 = vmatprep.mubr.f32.mxu0 0.0
  %v3285 = vand.u32 %v1992, 4294901760
  %v3286 = vsub.f32 %v1992, %v3285
  %v3287 = vand.u32 %v3286, 4294901760
  %3288 = vmatmul.mubr.f32.gmra.mxu0 %v3287
  %v3289 = vpop.f32.mrf.mxu0
  %v3290 = vadd.f32 %v2970, %v3289
  %v3291 = vpop.f32.mrf.mxu0
  %3292 = vmatprep.mubr.f32.mxu0 0.0
  %v3293 = vand.u32 %v1993, 4294901760
  %v3294 = vsub.f32 %v1993, %v3293
  %v3295 = vand.u32 %v3294, 4294901760
  %3296 = vmatmul.mubr.f32.gmra.mxu0 %v3295
  %v3297 = vpop.f32.mrf.mxu0
  %v3298 = vadd.f32 %v2977, %v3297
  %v3299 = vpop.f32.mrf.mxu0
  %3300 = vmatprep.mubr.f32.mxu0 0.0
  %v3301 = vand.u32 %v1994, 4294901760
  %v3302 = vsub.f32 %v1994, %v3301
  %v3303 = vand.u32 %v3302, 4294901760
  %3304 = vmatmul.mubr.f32.gmra.mxu0 %v3303
  %v3305 = vpop.f32.mrf.mxu0
  %v3306 = vadd.f32 %v2984, %v3305
  %v3307 = vpop.f32.mrf.mxu0
  %3308 = vmatprep.mubr.f32.mxu0 0.0
  %v3309 = vand.u32 %v1995, 4294901760
  %v3310 = vsub.f32 %v1995, %v3309
  %v3311 = vand.u32 %v3310, 4294901760
  %3312 = vmatmul.mubr.f32.gmra.mxu0 %v3311
  %v3313 = vpop.f32.mrf.mxu0
  %v3314 = vadd.f32 %v2991, %v3313
  %v3315 = vpop.f32.mrf.mxu0
  %3316 = vmatprep.mubr.f32.mxu0 0.0
  %v3317 = vand.u32 %v1996, 4294901760
  %v3318 = vsub.f32 %v1996, %v3317
  %v3319 = vand.u32 %v3318, 4294901760
  %3320 = vmatmul.mubr.f32.gmra.mxu0 %v3319
  %v3321 = vpop.f32.mrf.mxu0
  %v3322 = vadd.f32 %v2998, %v3321
  %v3323 = vpop.f32.mrf.mxu0
  %3324 = vmatprep.mubr.f32.mxu0 0.0
  %v3325 = vand.u32 %v1997, 4294901760
  %v3326 = vsub.f32 %v1997, %v3325
  %v3327 = vand.u32 %v3326, 4294901760
  %3328 = vmatmul.mubr.f32.gmra.mxu0 %v3327
  %v3329 = vpop.f32.mrf.mxu0
  %v3330 = vadd.f32 %v3005, %v3329
  %v3331 = vpop.f32.mrf.mxu0
  %3332 = vmatprep.mubr.f32.mxu0 0.0
  %v3333 = vand.u32 %v1998, 4294901760
  %v3334 = vsub.f32 %v1998, %v3333
  %v3335 = vand.u32 %v3334, 4294901760
  %3336 = vmatmul.mubr.f32.gmra.mxu0 %v3335
  %v3337 = vpop.f32.mrf.mxu0
  %v3338 = vadd.f32 %v3012, %v3337
  %v3339 = vpop.f32.mrf.mxu0
  %3340 = vmatprep.mubr.f32.mxu0 0.0
  %v3341 = vand.u32 %v1999, 4294901760
  %v3342 = vsub.f32 %v1999, %v3341
  %v3343 = vand.u32 %v3342, 4294901760
  %3344 = vmatmul.mubr.f32.gmra.mxu0 %v3343
  %v3345 = vpop.f32.mrf.mxu0
  %v3346 = vadd.f32 %v3019, %v3345
  %v3347 = vpop.f32.mrf.mxu0
  %3348 = vmatprep.mubr.f32.mxu0 0.0
  %v3349 = vand.u32 %v2000, 4294901760
  %v3350 = vsub.f32 %v2000, %v3349
  %v3351 = vand.u32 %v3350, 4294901760
  %3352 = vmatmul.mubr.f32.gmra.mxu0 %v3351
  %v3353 = vpop.f32.mrf.mxu0
  %v3354 = vadd.f32 %v3026, %v3353
  %v3355 = vpop.f32.mrf.mxu0
  %3356 = vmatprep.mubr.f32.mxu0 0.0
  %v3357 = vand.u32 %v2001, 4294901760
  %v3358 = vsub.f32 %v2001, %v3357
  %v3359 = vand.u32 %v3358, 4294901760
  %3360 = vmatmul.mubr.f32.gmra.mxu0 %v3359
  %v3361 = vpop.f32.mrf.mxu0
  %v3362 = vadd.f32 %v3033, %v3361
  %v3363 = vpop.f32.mrf.mxu0
  %3364 = vmatprep.mubr.f32.mxu0 0.0
  %v3365 = vand.u32 %v2002, 4294901760
  %v3366 = vsub.f32 %v2002, %v3365
  %v3367 = vand.u32 %v3366, 4294901760
  %3368 = vmatmul.mubr.f32.gmra.mxu0 %v3367
  %v3369 = vpop.f32.mrf.mxu0
  %v3370 = vadd.f32 %v3040, %v3369
  %v3371 = vpop.f32.mrf.mxu0
  %3372 = vmatprep.mubr.f32.mxu0 0.0
  %v3373 = vand.u32 %v2003, 4294901760
  %v3374 = vsub.f32 %v2003, %v3373
  %v3375 = vand.u32 %v3374, 4294901760
  %3376 = vmatmul.mubr.f32.gmra.mxu0 %v3375
  %v3377 = vpop.f32.mrf.mxu0
  %v3378 = vadd.f32 %v3047, %v3377
  %v3379 = vpop.f32.mrf.mxu0
  %3380 = vmatprep.mubr.f32.mxu0 0.0
  %v3381 = vand.u32 %v2004, 4294901760
  %v3382 = vsub.f32 %v2004, %v3381
  %v3383 = vand.u32 %v3382, 4294901760
  %3384 = vmatmul.mubr.f32.gmra.mxu0 %v3383
  %v3385 = vpop.f32.mrf.mxu0
  %v3386 = vadd.f32 %v3054, %v3385
  %v3387 = vpop.f32.mrf.mxu0
  %3388 = vmatprep.mubr.f32.mxu0 0.0
  %v3389 = vand.u32 %v2005, 4294901760
  %v3390 = vsub.f32 %v2005, %v3389
  %v3391 = vand.u32 %v3390, 4294901760
  %3392 = vmatmul.mubr.f32.gmra.mxu0 %v3391
  %v3393 = vpop.f32.mrf.mxu0
  %v3394 = vadd.f32 %v3061, %v3393
  %v3395 = vpop.f32.mrf.mxu0
  %3396 = vmatprep.mubr.f32.mxu0 0.0
  %v3397 = vand.u32 %v2006, 4294901760
  %v3398 = vsub.f32 %v2006, %v3397
  %v3399 = vand.u32 %v3398, 4294901760
  %3400 = vmatmul.mubr.f32.gmra.mxu0 %v3399
  %v3401 = vpop.f32.mrf.mxu0
  %v3402 = vadd.f32 %v3068, %v3401
  %v3403 = vpop.f32.mrf.mxu0
  %3404 = vmatprep.mubr.f32.mxu0 0.0
  %v3405 = vand.u32 %v2007, 4294901760
  %v3406 = vsub.f32 %v2007, %v3405
  %v3407 = vand.u32 %v3406, 4294901760
  %3408 = vmatmul.mubr.f32.gmra.mxu0 %v3407
  %v3409 = vpop.f32.mrf.mxu0
  %v3410 = vadd.f32 %v3075, %v3409
  %v3411 = vpop.f32.mrf.mxu0
  %3412 = vmatprep.mubr.f32.mxu0 0.0
  %v3413 = vand.u32 %v2008, 4294901760
  %v3414 = vsub.f32 %v2008, %v3413
  %v3415 = vand.u32 %v3414, 4294901760
  %3416 = vmatmul.mubr.f32.gmra.mxu0 %v3415
  %v3417 = vpop.f32.mrf.mxu0
  %v3418 = vadd.f32 %v3082, %v3417
  %v3419 = vpop.f32.mrf.mxu0
  %3420 = vmatprep.mubr.f32.mxu0 0.0
  %v3421 = vand.u32 %v2009, 4294901760
  %v3422 = vsub.f32 %v2009, %v3421
  %v3423 = vand.u32 %v3422, 4294901760
  %3424 = vmatmul.mubr.f32.gmra.mxu0 %v3423
  %v3425 = vpop.f32.mrf.mxu0
  %v3426 = vadd.f32 %v3089, %v3425
  %v3427 = vpop.f32.mrf.mxu0
  %3428 = vdwg.mxu0
  %3429 = vmatprep.subr.mxu0 0.0
  %v3430 = vand.u32 %v2025, 4294901760
  %v3431 = vsub.f32 %v2025, %v3430
  %v3432 = vand.u32 %v3431, 4294901760
  %3433 = vmatpush1.msra.mxu0 %v3432
  %3434 = vmatprep.subr.mxu0 0.0
  %v3435 = vand.u32 %v2024, 4294901760
  %v3436 = vsub.f32 %v2024, %v3435
  %v3437 = vand.u32 %v3436, 4294901760
  %3438 = vmatpush1.msra.mxu0 %v3437
  %3439 = vmatprep.subr.mxu0 0.0
  %v3440 = vand.u32 %v2023, 4294901760
  %v3441 = vsub.f32 %v2023, %v3440
  %v3442 = vand.u32 %v3441, 4294901760
  %3443 = vmatpush1.msra.mxu0 %v3442
  %3444 = vmatprep.subr.mxu0 0.0
  %v3445 = vand.u32 %v2022, 4294901760
  %v3446 = vsub.f32 %v2022, %v3445
  %v3447 = vand.u32 %v3446, 4294901760
  %3448 = vmatpush1.msra.mxu0 %v3447
  %3449 = vmatprep.subr.mxu0 0.0
  %v3450 = vand.u32 %v2021, 4294901760
  %v3451 = vsub.f32 %v2021, %v3450
  %v3452 = vand.u32 %v3451, 4294901760
  %3453 = vmatpush1.msra.mxu0 %v3452
  %3454 = vmatprep.subr.mxu0 0.0
  %v3455 = vand.u32 %v2020, 4294901760
  %v3456 = vsub.f32 %v2020, %v3455
  %v3457 = vand.u32 %v3456, 4294901760
  %3458 = vmatpush1.msra.mxu0 %v3457
  %3459 = vmatprep.subr.mxu0 0.0
  %v3460 = vand.u32 %v2019, 4294901760
  %v3461 = vsub.f32 %v2019, %v3460
  %v3462 = vand.u32 %v3461, 4294901760
  %3463 = vmatpush1.msra.mxu0 %v3462
  %3464 = vmatprep.subr.mxu0 0.0
  %v3465 = vand.u32 %v2018, 4294901760
  %v3466 = vsub.f32 %v2018, %v3465
  %v3467 = vand.u32 %v3466, 4294901760
  %3468 = vmatpush1.msra.mxu0 %v3467
  %3469 = vmatprep.subr.mxu0 0.0
  %v3470 = vand.u32 %v2017, 4294901760
  %v3471 = vsub.f32 %v2017, %v3470
  %v3472 = vand.u32 %v3471, 4294901760
  %3473 = vmatpush1.msra.mxu0 %v3472
  %3474 = vmatprep.subr.mxu0 0.0
  %v3475 = vand.u32 %v2016, 4294901760
  %v3476 = vsub.f32 %v2016, %v3475
  %v3477 = vand.u32 %v3476, 4294901760
  %3478 = vmatpush1.msra.mxu0 %v3477
  %3479 = vmatprep.subr.mxu0 0.0
  %v3480 = vand.u32 %v2015, 4294901760
  %v3481 = vsub.f32 %v2015, %v3480
  %v3482 = vand.u32 %v3481, 4294901760
  %3483 = vmatpush1.msra.mxu0 %v3482
  %3484 = vmatprep.subr.mxu0 0.0
  %v3485 = vand.u32 %v2014, 4294901760
  %v3486 = vsub.f32 %v2014, %v3485
  %v3487 = vand.u32 %v3486, 4294901760
  %3488 = vmatpush1.msra.mxu0 %v3487
  %3489 = vmatprep.subr.mxu0 0.0
  %v3490 = vand.u32 %v2013, 4294901760
  %v3491 = vsub.f32 %v2013, %v3490
  %v3492 = vand.u32 %v3491, 4294901760
  %3493 = vmatpush1.msra.mxu0 %v3492
  %3494 = vmatprep.subr.mxu0 0.0
  %v3495 = vand.u32 %v2012, 4294901760
  %v3496 = vsub.f32 %v2012, %v3495
  %v3497 = vand.u32 %v3496, 4294901760
  %3498 = vmatpush1.msra.mxu0 %v3497
  %3499 = vmatprep.subr.mxu0 0.0
  %v3500 = vand.u32 %v2011, 4294901760
  %v3501 = vsub.f32 %v2011, %v3500
  %v3502 = vand.u32 %v3501, 4294901760
  %3503 = vmatpush1.msra.mxu0 %v3502
  %3504 = vmatprep.subr.mxu0 0.0
  %v3505 = vand.u32 %v2010, 4294901760
  %v3506 = vsub.f32 %v2010, %v3505
  %v3507 = vand.u32 %v3506, 4294901760
  %3508 = vmatpush1.msra.mxu0 %v3507
  %3509 = vmatprep.subr.mxu0 0.0
  %3510 = vmatpush2.msra.mxu0 0.0
  %3511 = vmatprep.subr.mxu0 0.0
  %3512 = vmatpush2.msra.mxu0 0.0
  %3513 = vmatprep.subr.mxu0 0.0
  %3514 = vmatpush2.msra.mxu0 0.0
  %3515 = vmatprep.subr.mxu0 0.0
  %3516 = vmatpush2.msra.mxu0 0.0
  %3517 = vmatprep.subr.mxu0 0.0
  %3518 = vmatpush2.msra.mxu0 0.0
  %3519 = vmatprep.subr.mxu0 0.0
  %3520 = vmatpush2.msra.mxu0 0.0
  %3521 = vmatprep.subr.mxu0 0.0
  %3522 = vmatpush2.msra.mxu0 0.0
  %3523 = vmatprep.subr.mxu0 0.0
  %3524 = vmatpush2.msra.mxu0 0.0
  %3525 = vmatprep.subr.mxu0 0.0
  %3526 = vmatpush2.msra.mxu0 0.0
  %3527 = vmatprep.subr.mxu0 0.0
  %3528 = vmatpush2.msra.mxu0 0.0
  %3529 = vmatprep.subr.mxu0 0.0
  %3530 = vmatpush2.msra.mxu0 0.0
  %3531 = vmatprep.subr.mxu0 0.0
  %3532 = vmatpush2.msra.mxu0 0.0
  %3533 = vmatprep.subr.mxu0 0.0
  %3534 = vmatpush2.msra.mxu0 0.0
  %3535 = vmatprep.subr.mxu0 0.0
  %3536 = vmatpush2.msra.mxu0 0.0
  %3537 = vmatprep.subr.mxu0 0.0
  %3538 = vmatpush2.msra.mxu0 0.0
  %3539 = vmatprep.subr.mxu0 0.0
  %3540 = vmatpush2.msra.mxu0 0.0
  %3541 = vmatprep.mubr.f32.mxu0 0.0
  %v3542 = vand.u32 %v1978, 4294901760
  %3543 = vmatmul.mubr.f32.gmra.mxu0 %v3542
  %v3544 = vpop.f32.mrf.mxu0
  %v3545 = vadd.f32 %v3178, %v3544
  %v3546 = vpop.f32.mrf.mxu0
  %3547 = vmatprep.mubr.f32.mxu0 0.0
  %v3548 = vand.u32 %v1979, 4294901760
  %3549 = vmatmul.mubr.f32.gmra.mxu0 %v3548
  %v3550 = vpop.f32.mrf.mxu0
  %v3551 = vadd.f32 %v3186, %v3550
  %v3552 = vpop.f32.mrf.mxu0
  %3553 = vmatprep.mubr.f32.mxu0 0.0
  %v3554 = vand.u32 %v1980, 4294901760
  %3555 = vmatmul.mubr.f32.gmra.mxu0 %v3554
  %v3556 = vpop.f32.mrf.mxu0
  %v3557 = vadd.f32 %v3194, %v3556
  %v3558 = vpop.f32.mrf.mxu0
  %3559 = vmatprep.mubr.f32.mxu0 0.0
  %v3560 = vand.u32 %v1981, 4294901760
  %3561 = vmatmul.mubr.f32.gmra.mxu0 %v3560
  %v3562 = vpop.f32.mrf.mxu0
  %v3563 = vadd.f32 %v3202, %v3562
  %v3564 = vpop.f32.mrf.mxu0
  %3565 = vmatprep.mubr.f32.mxu0 0.0
  %v3566 = vand.u32 %v1982, 4294901760
  %3567 = vmatmul.mubr.f32.gmra.mxu0 %v3566
  %v3568 = vpop.f32.mrf.mxu0
  %v3569 = vadd.f32 %v3210, %v3568
  %v3570 = vpop.f32.mrf.mxu0
  %3571 = vmatprep.mubr.f32.mxu0 0.0
  %v3572 = vand.u32 %v1983, 4294901760
  %3573 = vmatmul.mubr.f32.gmra.mxu0 %v3572
  %v3574 = vpop.f32.mrf.mxu0
  %v3575 = vadd.f32 %v3218, %v3574
  %v3576 = vpop.f32.mrf.mxu0
  %3577 = vmatprep.mubr.f32.mxu0 0.0
  %v3578 = vand.u32 %v1984, 4294901760
  %3579 = vmatmul.mubr.f32.gmra.mxu0 %v3578
  %v3580 = vpop.f32.mrf.mxu0
  %v3581 = vadd.f32 %v3226, %v3580
  %v3582 = vpop.f32.mrf.mxu0
  %3583 = vmatprep.mubr.f32.mxu0 0.0
  %v3584 = vand.u32 %v1985, 4294901760
  %3585 = vmatmul.mubr.f32.gmra.mxu0 %v3584
  %v3586 = vpop.f32.mrf.mxu0
  %v3587 = vadd.f32 %v3234, %v3586
  %v3588 = vpop.f32.mrf.mxu0
  %3589 = vmatprep.mubr.f32.mxu0 0.0
  %v3590 = vand.u32 %v1986, 4294901760
  %3591 = vmatmul.mubr.f32.gmra.mxu0 %v3590
  %v3592 = vpop.f32.mrf.mxu0
  %v3593 = vadd.f32 %v3242, %v3592
  %v3594 = vpop.f32.mrf.mxu0
  %3595 = vmatprep.mubr.f32.mxu0 0.0
  %v3596 = vand.u32 %v1987, 4294901760
  %3597 = vmatmul.mubr.f32.gmra.mxu0 %v3596
  %v3598 = vpop.f32.mrf.mxu0
  %v3599 = vadd.f32 %v3250, %v3598
  %v3600 = vpop.f32.mrf.mxu0
  %3601 = vmatprep.mubr.f32.mxu0 0.0
  %v3602 = vand.u32 %v1988, 4294901760
  %3603 = vmatmul.mubr.f32.gmra.mxu0 %v3602
  %v3604 = vpop.f32.mrf.mxu0
  %v3605 = vadd.f32 %v3258, %v3604
  %v3606 = vpop.f32.mrf.mxu0
  %3607 = vmatprep.mubr.f32.mxu0 0.0
  %v3608 = vand.u32 %v1989, 4294901760
  %3609 = vmatmul.mubr.f32.gmra.mxu0 %v3608
  %v3610 = vpop.f32.mrf.mxu0
  %v3611 = vadd.f32 %v3266, %v3610
  %v3612 = vpop.f32.mrf.mxu0
  %3613 = vmatprep.mubr.f32.mxu0 0.0
  %v3614 = vand.u32 %v1990, 4294901760
  %3615 = vmatmul.mubr.f32.gmra.mxu0 %v3614
  %v3616 = vpop.f32.mrf.mxu0
  %v3617 = vadd.f32 %v3274, %v3616
  %v3618 = vpop.f32.mrf.mxu0
  %3619 = vmatprep.mubr.f32.mxu0 0.0
  %v3620 = vand.u32 %v1991, 4294901760
  %3621 = vmatmul.mubr.f32.gmra.mxu0 %v3620
  %v3622 = vpop.f32.mrf.mxu0
  %v3623 = vadd.f32 %v3282, %v3622
  %v3624 = vpop.f32.mrf.mxu0
  %3625 = vmatprep.mubr.f32.mxu0 0.0
  %v3626 = vand.u32 %v1992, 4294901760
  %3627 = vmatmul.mubr.f32.gmra.mxu0 %v3626
  %v3628 = vpop.f32.mrf.mxu0
  %v3629 = vadd.f32 %v3290, %v3628
  %v3630 = vpop.f32.mrf.mxu0
  %3631 = vmatprep.mubr.f32.mxu0 0.0
  %v3632 = vand.u32 %v1993, 4294901760
  %3633 = vmatmul.mubr.f32.gmra.mxu0 %v3632
  %v3634 = vpop.f32.mrf.mxu0
  %v3635 = vadd.f32 %v3298, %v3634
  %v3636 = vpop.f32.mrf.mxu0
  %3637 = vmatprep.mubr.f32.mxu0 0.0
  %v3638 = vand.u32 %v1994, 4294901760
  %3639 = vmatmul.mubr.f32.gmra.mxu0 %v3638
  %v3640 = vpop.f32.mrf.mxu0
  %v3641 = vadd.f32 %v3306, %v3640
  %v3642 = vpop.f32.mrf.mxu0
  %3643 = vmatprep.mubr.f32.mxu0 0.0
  %v3644 = vand.u32 %v1995, 4294901760
  %3645 = vmatmul.mubr.f32.gmra.mxu0 %v3644
  %v3646 = vpop.f32.mrf.mxu0
  %v3647 = vadd.f32 %v3314, %v3646
  %v3648 = vpop.f32.mrf.mxu0
  %3649 = vmatprep.mubr.f32.mxu0 0.0
  %v3650 = vand.u32 %v1996, 4294901760
  %3651 = vmatmul.mubr.f32.gmra.mxu0 %v3650
  %v3652 = vpop.f32.mrf.mxu0
  %v3653 = vadd.f32 %v3322, %v3652
  %v3654 = vpop.f32.mrf.mxu0
  %3655 = vmatprep.mubr.f32.mxu0 0.0
  %v3656 = vand.u32 %v1997, 4294901760
  %3657 = vmatmul.mubr.f32.gmra.mxu0 %v3656
  %v3658 = vpop.f32.mrf.mxu0
  %v3659 = vadd.f32 %v3330, %v3658
  %v3660 = vpop.f32.mrf.mxu0
  %3661 = vmatprep.mubr.f32.mxu0 0.0
  %v3662 = vand.u32 %v1998, 4294901760
  %3663 = vmatmul.mubr.f32.gmra.mxu0 %v3662
  %v3664 = vpop.f32.mrf.mxu0
  %v3665 = vadd.f32 %v3338, %v3664
  %v3666 = vpop.f32.mrf.mxu0
  %3667 = vmatprep.mubr.f32.mxu0 0.0
  %v3668 = vand.u32 %v1999, 4294901760
  %3669 = vmatmul.mubr.f32.gmra.mxu0 %v3668
  %v3670 = vpop.f32.mrf.mxu0
  %v3671 = vadd.f32 %v3346, %v3670
  %v3672 = vpop.f32.mrf.mxu0
  %3673 = vmatprep.mubr.f32.mxu0 0.0
  %v3674 = vand.u32 %v2000, 4294901760
  %3675 = vmatmul.mubr.f32.gmra.mxu0 %v3674
  %v3676 = vpop.f32.mrf.mxu0
  %v3677 = vadd.f32 %v3354, %v3676
  %v3678 = vpop.f32.mrf.mxu0
  %3679 = vmatprep.mubr.f32.mxu0 0.0
  %v3680 = vand.u32 %v2001, 4294901760
  %3681 = vmatmul.mubr.f32.gmra.mxu0 %v3680
  %v3682 = vpop.f32.mrf.mxu0
  %v3683 = vadd.f32 %v3362, %v3682
  %v3684 = vpop.f32.mrf.mxu0
  %3685 = vmatprep.mubr.f32.mxu0 0.0
  %v3686 = vand.u32 %v2002, 4294901760
  %3687 = vmatmul.mubr.f32.gmra.mxu0 %v3686
  %v3688 = vpop.f32.mrf.mxu0
  %v3689 = vadd.f32 %v3370, %v3688
  %v3690 = vpop.f32.mrf.mxu0
  %3691 = vmatprep.mubr.f32.mxu0 0.0
  %v3692 = vand.u32 %v2003, 4294901760
  %3693 = vmatmul.mubr.f32.gmra.mxu0 %v3692
  %v3694 = vpop.f32.mrf.mxu0
  %v3695 = vadd.f32 %v3378, %v3694
  %v3696 = vpop.f32.mrf.mxu0
  %3697 = vmatprep.mubr.f32.mxu0 0.0
  %v3698 = vand.u32 %v2004, 4294901760
  %3699 = vmatmul.mubr.f32.gmra.mxu0 %v3698
  %v3700 = vpop.f32.mrf.mxu0
  %v3701 = vadd.f32 %v3386, %v3700
  %v3702 = vpop.f32.mrf.mxu0
  %3703 = vmatprep.mubr.f32.mxu0 0.0
  %v3704 = vand.u32 %v2005, 4294901760
  %3705 = vmatmul.mubr.f32.gmra.mxu0 %v3704
  %v3706 = vpop.f32.mrf.mxu0
  %v3707 = vadd.f32 %v3394, %v3706
  %v3708 = vpop.f32.mrf.mxu0
  %3709 = vmatprep.mubr.f32.mxu0 0.0
  %v3710 = vand.u32 %v2006, 4294901760
  %3711 = vmatmul.mubr.f32.gmra.mxu0 %v3710
  %v3712 = vpop.f32.mrf.mxu0
  %v3713 = vadd.f32 %v3402, %v3712
  %v3714 = vpop.f32.mrf.mxu0
  %3715 = vmatprep.mubr.f32.mxu0 0.0
  %v3716 = vand.u32 %v2007, 4294901760
  %3717 = vmatmul.mubr.f32.gmra.mxu0 %v3716
  %v3718 = vpop.f32.mrf.mxu0
  %v3719 = vadd.f32 %v3410, %v3718
  %v3720 = vpop.f32.mrf.mxu0
  %3721 = vmatprep.mubr.f32.mxu0 0.0
  %v3722 = vand.u32 %v2008, 4294901760
  %3723 = vmatmul.mubr.f32.gmra.mxu0 %v3722
  %v3724 = vpop.f32.mrf.mxu0
  %v3725 = vadd.f32 %v3418, %v3724
  %v3726 = vpop.f32.mrf.mxu0
  %3727 = vmatprep.mubr.f32.mxu0 0.0
  %v3728 = vand.u32 %v2009, 4294901760
  %3729 = vmatmul.mubr.f32.gmra.mxu0 %v3728
  %v3730 = vpop.f32.mrf.mxu0
  %v3731 = vadd.f32 %v3426, %v3730
  %v3732 = vpop.f32.mrf.mxu0
  %3733 = vdwg.mxu0
  %3734 = vmatprep.subr.mxu0 0.0
  %v3735 = vand.u32 %v2025, 4294901760
  %3736 = vmatpush1.msra.mxu0 %v3735
  %3737 = vmatprep.subr.mxu0 0.0
  %v3738 = vand.u32 %v2024, 4294901760
  %3739 = vmatpush1.msra.mxu0 %v3738
  %3740 = vmatprep.subr.mxu0 0.0
  %v3741 = vand.u32 %v2023, 4294901760
  %3742 = vmatpush1.msra.mxu0 %v3741
  %3743 = vmatprep.subr.mxu0 0.0
  %v3744 = vand.u32 %v2022, 4294901760
  %3745 = vmatpush1.msra.mxu0 %v3744
  %3746 = vmatprep.subr.mxu0 0.0
  %v3747 = vand.u32 %v2021, 4294901760
  %3748 = vmatpush1.msra.mxu0 %v3747
  %3749 = vmatprep.subr.mxu0 0.0
  %v3750 = vand.u32 %v2020, 4294901760
  %3751 = vmatpush1.msra.mxu0 %v3750
  %3752 = vmatprep.subr.mxu0 0.0
  %v3753 = vand.u32 %v2019, 4294901760
  %3754 = vmatpush1.msra.mxu0 %v3753
  %3755 = vmatprep.subr.mxu0 0.0
  %v3756 = vand.u32 %v2018, 4294901760
  %3757 = vmatpush1.msra.mxu0 %v3756
  %3758 = vmatprep.subr.mxu0 0.0
  %v3759 = vand.u32 %v2017, 4294901760
  %3760 = vmatpush1.msra.mxu0 %v3759
  %3761 = vmatprep.subr.mxu0 0.0
  %v3762 = vand.u32 %v2016, 4294901760
  %3763 = vmatpush1.msra.mxu0 %v3762
  %3764 = vmatprep.subr.mxu0 0.0
  %v3765 = vand.u32 %v2015, 4294901760
  %3766 = vmatpush1.msra.mxu0 %v3765
  %3767 = vmatprep.subr.mxu0 0.0
  %v3768 = vand.u32 %v2014, 4294901760
  %3769 = vmatpush1.msra.mxu0 %v3768
  %3770 = vmatprep.subr.mxu0 0.0
  %v3771 = vand.u32 %v2013, 4294901760
  %3772 = vmatpush1.msra.mxu0 %v3771
  %3773 = vmatprep.subr.mxu0 0.0
  %v3774 = vand.u32 %v2012, 4294901760
  %3775 = vmatpush1.msra.mxu0 %v3774
  %3776 = vmatprep.subr.mxu0 0.0
  %v3777 = vand.u32 %v2011, 4294901760
  %3778 = vmatpush1.msra.mxu0 %v3777
  %3779 = vmatprep.subr.mxu0 0.0
  %v3780 = vand.u32 %v2010, 4294901760
  %3781 = vmatpush1.msra.mxu0 %v3780
  %3782 = vmatprep.subr.mxu0 0.0
  %3783 = vmatpush2.msra.mxu0 0.0
  %3784 = vmatprep.subr.mxu0 0.0
  %3785 = vmatpush2.msra.mxu0 0.0
  %3786 = vmatprep.subr.mxu0 0.0
  %3787 = vmatpush2.msra.mxu0 0.0
  %3788 = vmatprep.subr.mxu0 0.0
  %3789 = vmatpush2.msra.mxu0 0.0
  %3790 = vmatprep.subr.mxu0 0.0
  %3791 = vmatpush2.msra.mxu0 0.0
  %3792 = vmatprep.subr.mxu0 0.0
  %3793 = vmatpush2.msra.mxu0 0.0
  %3794 = vmatprep.subr.mxu0 0.0
  %3795 = vmatpush2.msra.mxu0 0.0
  %3796 = vmatprep.subr.mxu0 0.0
  %3797 = vmatpush2.msra.mxu0 0.0
  %3798 = vmatprep.subr.mxu0 0.0
  %3799 = vmatpush2.msra.mxu0 0.0
  %3800 = vmatprep.subr.mxu0 0.0
  %3801 = vmatpush2.msra.mxu0 0.0
  %3802 = vmatprep.subr.mxu0 0.0
  %3803 = vmatpush2.msra.mxu0 0.0
  %3804 = vmatprep.subr.mxu0 0.0
  %3805 = vmatpush2.msra.mxu0 0.0
  %3806 = vmatprep.subr.mxu0 0.0
  %3807 = vmatpush2.msra.mxu0 0.0
  %3808 = vmatprep.subr.mxu0 0.0
  %3809 = vmatpush2.msra.mxu0 0.0
  %3810 = vmatprep.subr.mxu0 0.0
  %3811 = vmatpush2.msra.mxu0 0.0
  %3812 = vmatprep.subr.mxu0 0.0
  %3813 = vmatpush2.msra.mxu0 0.0
  %3814 = vmatprep.mubr.f32.mxu0 0.0
  %v3815 = vand.u32 %v1978, 4294901760
  %3816 = vmatmul.mubr.f32.gmra.mxu0 %v3815
  %v3817 = vpop.f32.mrf.mxu0
  %v3818 = vadd.f32 %v3545, %v3817
  %v3819 = vpop.f32.mrf.mxu0
  %3820 = vmatprep.mubr.f32.mxu0 0.0
  %v3821 = vand.u32 %v1979, 4294901760
  %3822 = vmatmul.mubr.f32.gmra.mxu0 %v3821
  %v3823 = vpop.f32.mrf.mxu0
  %v3824 = vadd.f32 %v3551, %v3823
  %v3825 = vpop.f32.mrf.mxu0
  %3826 = vmatprep.mubr.f32.mxu0 0.0
  %v3827 = vand.u32 %v1980, 4294901760
  %3828 = vmatmul.mubr.f32.gmra.mxu0 %v3827
  %v3829 = vpop.f32.mrf.mxu0
  %v3830 = vadd.f32 %v3557, %v3829
  %v3831 = vpop.f32.mrf.mxu0
  %3832 = vmatprep.mubr.f32.mxu0 0.0
  %v3833 = vand.u32 %v1981, 4294901760
  %3834 = vmatmul.mubr.f32.gmra.mxu0 %v3833
  %v3835 = vpop.f32.mrf.mxu0
  %v3836 = vadd.f32 %v3563, %v3835
  %v3837 = vpop.f32.mrf.mxu0
  %3838 = vmatprep.mubr.f32.mxu0 0.0
  %v3839 = vand.u32 %v1982, 4294901760
  %3840 = vmatmul.mubr.f32.gmra.mxu0 %v3839
  %v3841 = vpop.f32.mrf.mxu0
  %v3842 = vadd.f32 %v3569, %v3841
  %v3843 = vpop.f32.mrf.mxu0
  %3844 = vmatprep.mubr.f32.mxu0 0.0
  %v3845 = vand.u32 %v1983, 4294901760
  %3846 = vmatmul.mubr.f32.gmra.mxu0 %v3845
  %v3847 = vpop.f32.mrf.mxu0
  %v3848 = vadd.f32 %v3575, %v3847
  %v3849 = vpop.f32.mrf.mxu0
  %3850 = vmatprep.mubr.f32.mxu0 0.0
  %v3851 = vand.u32 %v1984, 4294901760
  %3852 = vmatmul.mubr.f32.gmra.mxu0 %v3851
  %v3853 = vpop.f32.mrf.mxu0
  %v3854 = vadd.f32 %v3581, %v3853
  %v3855 = vpop.f32.mrf.mxu0
  %3856 = vmatprep.mubr.f32.mxu0 0.0
  %v3857 = vand.u32 %v1985, 4294901760
  %3858 = vmatmul.mubr.f32.gmra.mxu0 %v3857
  %v3859 = vpop.f32.mrf.mxu0
  %v3860 = vadd.f32 %v3587, %v3859
  %v3861 = vpop.f32.mrf.mxu0
  %3862 = vmatprep.mubr.f32.mxu0 0.0
  %v3863 = vand.u32 %v1986, 4294901760
  %3864 = vmatmul.mubr.f32.gmra.mxu0 %v3863
  %v3865 = vpop.f32.mrf.mxu0
  %v3866 = vadd.f32 %v3593, %v3865
  %v3867 = vpop.f32.mrf.mxu0
  %3868 = vmatprep.mubr.f32.mxu0 0.0
  %v3869 = vand.u32 %v1987, 4294901760
  %3870 = vmatmul.mubr.f32.gmra.mxu0 %v3869
  %v3871 = vpop.f32.mrf.mxu0
  %v3872 = vadd.f32 %v3599, %v3871
  %v3873 = vpop.f32.mrf.mxu0
  %3874 = vmatprep.mubr.f32.mxu0 0.0
  %v3875 = vand.u32 %v1988, 4294901760
  %3876 = vmatmul.mubr.f32.gmra.mxu0 %v3875
  %v3877 = vpop.f32.mrf.mxu0
  %v3878 = vadd.f32 %v3605, %v3877
  %v3879 = vpop.f32.mrf.mxu0
  %3880 = vmatprep.mubr.f32.mxu0 0.0
  %v3881 = vand.u32 %v1989, 4294901760
  %3882 = vmatmul.mubr.f32.gmra.mxu0 %v3881
  %v3883 = vpop.f32.mrf.mxu0
  %v3884 = vadd.f32 %v3611, %v3883
  %v3885 = vpop.f32.mrf.mxu0
  %3886 = vmatprep.mubr.f32.mxu0 0.0
  %v3887 = vand.u32 %v1990, 4294901760
  %3888 = vmatmul.mubr.f32.gmra.mxu0 %v3887
  %v3889 = vpop.f32.mrf.mxu0
  %v3890 = vadd.f32 %v3617, %v3889
  %v3891 = vpop.f32.mrf.mxu0
  %3892 = vmatprep.mubr.f32.mxu0 0.0
  %v3893 = vand.u32 %v1991, 4294901760
  %3894 = vmatmul.mubr.f32.gmra.mxu0 %v3893
  %v3895 = vpop.f32.mrf.mxu0
  %v3896 = vadd.f32 %v3623, %v3895
  %v3897 = vpop.f32.mrf.mxu0
  %3898 = vmatprep.mubr.f32.mxu0 0.0
  %v3899 = vand.u32 %v1992, 4294901760
  %3900 = vmatmul.mubr.f32.gmra.mxu0 %v3899
  %v3901 = vpop.f32.mrf.mxu0
  %v3902 = vadd.f32 %v3629, %v3901
  %v3903 = vpop.f32.mrf.mxu0
  %3904 = vmatprep.mubr.f32.mxu0 0.0
  %v3905 = vand.u32 %v1993, 4294901760
  %3906 = vmatmul.mubr.f32.gmra.mxu0 %v3905
  %v3907 = vpop.f32.mrf.mxu0
  %v3908 = vadd.f32 %v3635, %v3907
  %v3909 = vpop.f32.mrf.mxu0
  %3910 = vmatprep.mubr.f32.mxu0 0.0
  %v3911 = vand.u32 %v1994, 4294901760
  %3912 = vmatmul.mubr.f32.gmra.mxu0 %v3911
  %v3913 = vpop.f32.mrf.mxu0
  %v3914 = vadd.f32 %v3641, %v3913
  %v3915 = vpop.f32.mrf.mxu0
  %3916 = vmatprep.mubr.f32.mxu0 0.0
  %v3917 = vand.u32 %v1995, 4294901760
  %3918 = vmatmul.mubr.f32.gmra.mxu0 %v3917
  %v3919 = vpop.f32.mrf.mxu0
  %v3920 = vadd.f32 %v3647, %v3919
  %v3921 = vpop.f32.mrf.mxu0
  %3922 = vmatprep.mubr.f32.mxu0 0.0
  %v3923 = vand.u32 %v1996, 4294901760
  %3924 = vmatmul.mubr.f32.gmra.mxu0 %v3923
  %v3925 = vpop.f32.mrf.mxu0
  %v3926 = vadd.f32 %v3653, %v3925
  %v3927 = vpop.f32.mrf.mxu0
  %3928 = vmatprep.mubr.f32.mxu0 0.0
  %v3929 = vand.u32 %v1997, 4294901760
  %3930 = vmatmul.mubr.f32.gmra.mxu0 %v3929
  %v3931 = vpop.f32.mrf.mxu0
  %v3932 = vadd.f32 %v3659, %v3931
  %v3933 = vpop.f32.mrf.mxu0
  %3934 = vmatprep.mubr.f32.mxu0 0.0
  %v3935 = vand.u32 %v1998, 4294901760
  %3936 = vmatmul.mubr.f32.gmra.mxu0 %v3935
  %v3937 = vpop.f32.mrf.mxu0
  %v3938 = vadd.f32 %v3665, %v3937
  %v3939 = vpop.f32.mrf.mxu0
  %3940 = vmatprep.mubr.f32.mxu0 0.0
  %v3941 = vand.u32 %v1999, 4294901760
  %3942 = vmatmul.mubr.f32.gmra.mxu0 %v3941
  %v3943 = vpop.f32.mrf.mxu0
  %v3944 = vadd.f32 %v3671, %v3943
  %v3945 = vpop.f32.mrf.mxu0
  %3946 = vmatprep.mubr.f32.mxu0 0.0
  %v3947 = vand.u32 %v2000, 4294901760
  %3948 = vmatmul.mubr.f32.gmra.mxu0 %v3947
  %v3949 = vpop.f32.mrf.mxu0
  %v3950 = vadd.f32 %v3677, %v3949
  %v3951 = vpop.f32.mrf.mxu0
  %3952 = vmatprep.mubr.f32.mxu0 0.0
  %v3953 = vand.u32 %v2001, 4294901760
  %3954 = vmatmul.mubr.f32.gmra.mxu0 %v3953
  %v3955 = vpop.f32.mrf.mxu0
  %v3956 = vadd.f32 %v3683, %v3955
  %v3957 = vpop.f32.mrf.mxu0
  %3958 = vmatprep.mubr.f32.mxu0 0.0
  %v3959 = vand.u32 %v2002, 4294901760
  %3960 = vmatmul.mubr.f32.gmra.mxu0 %v3959
  %v3961 = vpop.f32.mrf.mxu0
  %v3962 = vadd.f32 %v3689, %v3961
  %v3963 = vpop.f32.mrf.mxu0
  %3964 = vmatprep.mubr.f32.mxu0 0.0
  %v3965 = vand.u32 %v2003, 4294901760
  %3966 = vmatmul.mubr.f32.gmra.mxu0 %v3965
  %v3967 = vpop.f32.mrf.mxu0
  %v3968 = vadd.f32 %v3695, %v3967
  %v3969 = vpop.f32.mrf.mxu0
  %3970 = vmatprep.mubr.f32.mxu0 0.0
  %v3971 = vand.u32 %v2004, 4294901760
  %3972 = vmatmul.mubr.f32.gmra.mxu0 %v3971
  %v3973 = vpop.f32.mrf.mxu0
  %v3974 = vadd.f32 %v3701, %v3973
  %v3975 = vpop.f32.mrf.mxu0
  %3976 = vmatprep.mubr.f32.mxu0 0.0
  %v3977 = vand.u32 %v2005, 4294901760
  %3978 = vmatmul.mubr.f32.gmra.mxu0 %v3977
  %v3979 = vpop.f32.mrf.mxu0
  %v3980 = vadd.f32 %v3707, %v3979
  %v3981 = vpop.f32.mrf.mxu0
  %3982 = vmatprep.mubr.f32.mxu0 0.0
  %v3983 = vand.u32 %v2006, 4294901760
  %3984 = vmatmul.mubr.f32.gmra.mxu0 %v3983
  %v3985 = vpop.f32.mrf.mxu0
  %v3986 = vadd.f32 %v3713, %v3985
  %v3987 = vpop.f32.mrf.mxu0
  %3988 = vmatprep.mubr.f32.mxu0 0.0
  %v3989 = vand.u32 %v2007, 4294901760
  %3990 = vmatmul.mubr.f32.gmra.mxu0 %v3989
  %v3991 = vpop.f32.mrf.mxu0
  %v3992 = vadd.f32 %v3719, %v3991
  %v3993 = vpop.f32.mrf.mxu0
  %3994 = vmatprep.mubr.f32.mxu0 0.0
  %v3995 = vand.u32 %v2008, 4294901760
  %3996 = vmatmul.mubr.f32.gmra.mxu0 %v3995
  %v3997 = vpop.f32.mrf.mxu0
  %v3998 = vadd.f32 %v3725, %v3997
  %v3999 = vpop.f32.mrf.mxu0
  %4000 = vmatprep.mubr.f32.mxu0 0.0
  %v4001 = vand.u32 %v2009, 4294901760
  %4002 = vmatmul.mubr.f32.gmra.mxu0 %v4001
  %v4003 = vpop.f32.mrf.mxu0
  %v4004 = vadd.f32 %v3731, %v4003
  %v4005 = vpop.f32.mrf.mxu0
  %4006 = vdwg.mxu0
  %vm4007 = vcmask 130048
  %v4008 = vsel %vm4007, %v3818, -inf
  %4009 = vmax.xlane.f32.xlu0 %v4008
  %v4010 = vpop.xlane.xlu0 %4009
  %v4011 = vsel %vm4007, %v3824, -inf
  %4012 = vmax.xlane.f32.xlu0 %v4011
  %v4013 = vpop.xlane.xlu0 %4012
  %v4014 = vsel %vm4007, %v3830, -inf
  %4015 = vmax.xlane.f32.xlu0 %v4014
  %v4016 = vpop.xlane.xlu0 %4015
  %v4017 = vsel %vm4007, %v3836, -inf
  %4018 = vmax.xlane.f32.xlu0 %v4017
  %v4019 = vpop.xlane.xlu0 %4018
  %v4020 = vsel %vm4007, %v3842, -inf
  %4021 = vmax.xlane.f32.xlu0 %v4020
  %v4022 = vpop.xlane.xlu0 %4021
  %v4023 = vsel %vm4007, %v3848, -inf
  %4024 = vmax.xlane.f32.xlu0 %v4023
  %v4025 = vpop.xlane.xlu0 %4024
  %v4026 = vsel %vm4007, %v3854, -inf
  %4027 = vmax.xlane.f32.xlu0 %v4026
  %v4028 = vpop.xlane.xlu0 %4027
  %v4029 = vsel %vm4007, %v3860, -inf
  %4030 = vmax.xlane.f32.xlu0 %v4029
  %v4031 = vpop.xlane.xlu0 %4030
  %v4032 = vsel %vm4007, %v3866, -inf
  %4033 = vmax.xlane.f32.xlu0 %v4032
  %v4034 = vpop.xlane.xlu0 %4033
  %v4035 = vsel %vm4007, %v3872, -inf
  %4036 = vmax.xlane.f32.xlu0 %v4035
  %v4037 = vpop.xlane.xlu0 %4036
  %v4038 = vsel %vm4007, %v3878, -inf
  %4039 = vmax.xlane.f32.xlu0 %v4038
  %v4040 = vpop.xlane.xlu0 %4039
  %v4041 = vsel %vm4007, %v3884, -inf
  %4042 = vmax.xlane.f32.xlu0 %v4041
  %v4043 = vpop.xlane.xlu0 %4042
  %v4044 = vsel %vm4007, %v3890, -inf
  %4045 = vmax.xlane.f32.xlu0 %v4044
  %v4046 = vpop.xlane.xlu0 %4045
  %v4047 = vsel %vm4007, %v3896, -inf
  %4048 = vmax.xlane.f32.xlu0 %v4047
  %v4049 = vpop.xlane.xlu0 %4048
  %v4050 = vsel %vm4007, %v3902, -inf
  %4051 = vmax.xlane.f32.xlu0 %v4050
  %v4052 = vpop.xlane.xlu0 %4051
  %v4053 = vsel %vm4007, %v3908, -inf
  %4054 = vmax.xlane.f32.xlu0 %v4053
  %v4055 = vpop.xlane.xlu0 %4054
  %v4056 = vsel %vm4007, %v3914, -inf
  %4057 = vmax.xlane.f32.xlu0 %v4056
  %v4058 = vpop.xlane.xlu0 %4057
  %v4059 = vsel %vm4007, %v3920, -inf
  %4060 = vmax.xlane.f32.xlu0 %v4059
  %v4061 = vpop.xlane.xlu0 %4060
  %v4062 = vsel %vm4007, %v3926, -inf
  %4063 = vmax.xlane.f32.xlu0 %v4062
  %v4064 = vpop.xlane.xlu0 %4063
  %v4065 = vsel %vm4007, %v3932, -inf
  %4066 = vmax.xlane.f32.xlu0 %v4065
  %v4067 = vpop.xlane.xlu0 %4066
  %v4068 = vsel %vm4007, %v3938, -inf
  %4069 = vmax.xlane.f32.xlu0 %v4068
  %v4070 = vpop.xlane.xlu0 %4069
  %v4071 = vsel %vm4007, %v3944, -inf
  %4072 = vmax.xlane.f32.xlu0 %v4071
  %v4073 = vpop.xlane.xlu0 %4072
  %v4074 = vsel %vm4007, %v3950, -inf
  %4075 = vmax.xlane.f32.xlu0 %v4074
  %v4076 = vpop.xlane.xlu0 %4075
  %v4077 = vsel %vm4007, %v3956, -inf
  %4078 = vmax.xlane.f32.xlu0 %v4077
  %v4079 = vpop.xlane.xlu0 %4078
  %v4080 = vsel %vm4007, %v3962, -inf
  %4081 = vmax.xlane.f32.xlu0 %v4080
  %v4082 = vpop.xlane.xlu0 %4081
  %v4083 = vsel %vm4007, %v3968, -inf
  %4084 = vmax.xlane.f32.xlu0 %v4083
  %v4085 = vpop.xlane.xlu0 %4084
  %v4086 = vsel %vm4007, %v3974, -inf
  %4087 = vmax.xlane.f32.xlu0 %v4086
  %v4088 = vpop.xlane.xlu0 %4087
  %v4089 = vsel %vm4007, %v3980, -inf
  %4090 = vmax.xlane.f32.xlu0 %v4089
  %v4091 = vpop.xlane.xlu0 %4090
  %v4092 = vsel %vm4007, %v3986, -inf
  %4093 = vmax.xlane.f32.xlu0 %v4092
  %v4094 = vpop.xlane.xlu0 %4093
  %v4095 = vsel %vm4007, %v3992, -inf
  %4096 = vmax.xlane.f32.xlu0 %v4095
  %v4097 = vpop.xlane.xlu0 %4096
  %v4098 = vsel %vm4007, %v3998, -inf
  %4099 = vmax.xlane.f32.xlu0 %v4098
  %v4100 = vpop.xlane.xlu0 %4099
  %v4101 = vsel %vm4007, %v4004, -inf
  %4102 = vmax.xlane.f32.xlu0 %v4101
  %v4103 = vpop.xlane.xlu0 %4102
  %v4104 = vsub.f32 %v3818, %v4010
  %v4105 = vsub.f32 %v3824, %v4013
  %v4106 = vsub.f32 %v3830, %v4016
  %v4107 = vsub.f32 %v3836, %v4019
  %v4108 = vsub.f32 %v3842, %v4022
  %v4109 = vsub.f32 %v3848, %v4025
  %v4110 = vsub.f32 %v3854, %v4028
  %v4111 = vsub.f32 %v3860, %v4031
  %v4112 = vsub.f32 %v3866, %v4034
  %v4113 = vsub.f32 %v3872, %v4037
  %v4114 = vsub.f32 %v3878, %v4040
  %v4115 = vsub.f32 %v3884, %v4043
  %v4116 = vsub.f32 %v3890, %v4046
  %v4117 = vsub.f32 %v3896, %v4049
  %v4118 = vsub.f32 %v3902, %v4052
  %v4119 = vsub.f32 %v3908, %v4055
  %v4120 = vsub.f32 %v3914, %v4058
  %v4121 = vsub.f32 %v3920, %v4061
  %v4122 = vsub.f32 %v3926, %v4064
  %v4123 = vsub.f32 %v3932, %v4067
  %v4124 = vsub.f32 %v3938, %v4070
  %v4125 = vsub.f32 %v3944, %v4073
  %v4126 = vsub.f32 %v3950, %v4076
  %v4127 = vsub.f32 %v3956, %v4079
  %v4128 = vsub.f32 %v3962, %v4082
  %v4129 = vsub.f32 %v3968, %v4085
  %v4130 = vsub.f32 %v3974, %v4088
  %v4131 = vsub.f32 %v3980, %v4091
  %v4132 = vsub.f32 %v3986, %v4094
  %v4133 = vsub.f32 %v3992, %v4097
  %v4134 = vsub.f32 %v3998, %v4100
  %v4135 = vsub.f32 %v4004, %v4103
  %v4136 = vmul.f32 %v4104, 1.442695
  %v4137 = vpow.pop %v4136
  %v4138 = vmul.f32 %v4105, 1.442695
  %v4139 = vpow.pop %v4138
  %v4140 = vmul.f32 %v4106, 1.442695
  %v4141 = vpow.pop %v4140
  %v4142 = vmul.f32 %v4107, 1.442695
  %v4143 = vpow.pop %v4142
  %v4144 = vmul.f32 %v4108, 1.442695
  %v4145 = vpow.pop %v4144
  %v4146 = vmul.f32 %v4109, 1.442695
  %v4147 = vpow.pop %v4146
  %v4148 = vmul.f32 %v4110, 1.442695
  %v4149 = vpow.pop %v4148
  %v4150 = vmul.f32 %v4111, 1.442695
  %v4151 = vpow.pop %v4150
  %v4152 = vmul.f32 %v4112, 1.442695
  %v4153 = vpow.pop %v4152
  %v4154 = vmul.f32 %v4113, 1.442695
  %v4155 = vpow.pop %v4154
  %v4156 = vmul.f32 %v4114, 1.442695
  %v4157 = vpow.pop %v4156
  %v4158 = vmul.f32 %v4115, 1.442695
  %v4159 = vpow.pop %v4158
  %v4160 = vmul.f32 %v4116, 1.442695
  %v4161 = vpow.pop %v4160
  %v4162 = vmul.f32 %v4117, 1.442695
  %v4163 = vpow.pop %v4162
  %v4164 = vmul.f32 %v4118, 1.442695
  %v4165 = vpow.pop %v4164
  %v4166 = vmul.f32 %v4119, 1.442695
  %v4167 = vpow.pop %v4166
  %v4168 = vmul.f32 %v4120, 1.442695
  %v4169 = vpow.pop %v4168
  %v4170 = vmul.f32 %v4121, 1.442695
  %v4171 = vpow.pop %v4170
  %v4172 = vmul.f32 %v4122, 1.442695
  %v4173 = vpow.pop %v4172
  %v4174 = vmul.f32 %v4123, 1.442695
  %v4175 = vpow.pop %v4174
  %v4176 = vmul.f32 %v4124, 1.442695
  %v4177 = vpow.pop %v4176
  %v4178 = vmul.f32 %v4125, 1.442695
  %v4179 = vpow.pop %v4178
  %v4180 = vmul.f32 %v4126, 1.442695
  %v4181 = vpow.pop %v4180
  %v4182 = vmul.f32 %v4127, 1.442695
  %v4183 = vpow.pop %v4182
  %v4184 = vmul.f32 %v4128, 1.442695
  %v4185 = vpow.pop %v4184
  %v4186 = vmul.f32 %v4129, 1.442695
  %v4187 = vpow.pop %v4186
  %v4188 = vmul.f32 %v4130, 1.442695
  %v4189 = vpow.pop %v4188
  %v4190 = vmul.f32 %v4131, 1.442695
  %v4191 = vpow.pop %v4190
  %v4192 = vmul.f32 %v4132, 1.442695
  %v4193 = vpow.pop %v4192
  %v4194 = vmul.f32 %v4133, 1.442695
  %v4195 = vpow.pop %v4194
  %v4196 = vmul.f32 %v4134, 1.442695
  %v4197 = vpow.pop %v4196
  %v4198 = vmul.f32 %v4135, 1.442695
  %v4199 = vpow.pop %v4198
  %v4200 = vsel %vm4007, %v4137, 0.0
  %4201 = vadd.xlane.f32.xlu0 %v4200
  %v4202 = vpop.xlane.xlu0 %4201
  %v4203 = vsel %vm4007, %v4139, 0.0
  %4204 = vadd.xlane.f32.xlu0 %v4203
  %v4205 = vpop.xlane.xlu0 %4204
  %v4206 = vsel %vm4007, %v4141, 0.0
  %4207 = vadd.xlane.f32.xlu0 %v4206
  %v4208 = vpop.xlane.xlu0 %4207
  %v4209 = vsel %vm4007, %v4143, 0.0
  %4210 = vadd.xlane.f32.xlu0 %v4209
  %v4211 = vpop.xlane.xlu0 %4210
  %v4212 = vsel %vm4007, %v4145, 0.0
  %4213 = vadd.xlane.f32.xlu0 %v4212
  %v4214 = vpop.xlane.xlu0 %4213
  %v4215 = vsel %vm4007, %v4147, 0.0
  %4216 = vadd.xlane.f32.xlu0 %v4215
  %v4217 = vpop.xlane.xlu0 %4216
  %v4218 = vsel %vm4007, %v4149, 0.0
  %4219 = vadd.xlane.f32.xlu0 %v4218
  %v4220 = vpop.xlane.xlu0 %4219
  %v4221 = vsel %vm4007, %v4151, 0.0
  %4222 = vadd.xlane.f32.xlu0 %v4221
  %v4223 = vpop.xlane.xlu0 %4222
  %v4224 = vsel %vm4007, %v4153, 0.0
  %4225 = vadd.xlane.f32.xlu0 %v4224
  %v4226 = vpop.xlane.xlu0 %4225
  %v4227 = vsel %vm4007, %v4155, 0.0
  %4228 = vadd.xlane.f32.xlu0 %v4227
  %v4229 = vpop.xlane.xlu0 %4228
  %v4230 = vsel %vm4007, %v4157, 0.0
  %4231 = vadd.xlane.f32.xlu0 %v4230
  %v4232 = vpop.xlane.xlu0 %4231
  %v4233 = vsel %vm4007, %v4159, 0.0
  %4234 = vadd.xlane.f32.xlu0 %v4233
  %v4235 = vpop.xlane.xlu0 %4234
  %v4236 = vsel %vm4007, %v4161, 0.0
  %4237 = vadd.xlane.f32.xlu0 %v4236
  %v4238 = vpop.xlane.xlu0 %4237
  %v4239 = vsel %vm4007, %v4163, 0.0
  %4240 = vadd.xlane.f32.xlu0 %v4239
  %v4241 = vpop.xlane.xlu0 %4240
  %v4242 = vsel %vm4007, %v4165, 0.0
  %4243 = vadd.xlane.f32.xlu0 %v4242
  %v4244 = vpop.xlane.xlu0 %4243
  %v4245 = vsel %vm4007, %v4167, 0.0
  %4246 = vadd.xlane.f32.xlu0 %v4245
  %v4247 = vpop.xlane.xlu0 %4246
  %v4248 = vsel %vm4007, %v4169, 0.0
  %4249 = vadd.xlane.f32.xlu0 %v4248
  %v4250 = vpop.xlane.xlu0 %4249
  %v4251 = vsel %vm4007, %v4171, 0.0
  %4252 = vadd.xlane.f32.xlu0 %v4251
  %v4253 = vpop.xlane.xlu0 %4252
  %v4254 = vsel %vm4007, %v4173, 0.0
  %4255 = vadd.xlane.f32.xlu0 %v4254
  %v4256 = vpop.xlane.xlu0 %4255
  %v4257 = vsel %vm4007, %v4175, 0.0
  %4258 = vadd.xlane.f32.xlu0 %v4257
  %v4259 = vpop.xlane.xlu0 %4258
  %v4260 = vsel %vm4007, %v4177, 0.0
  %4261 = vadd.xlane.f32.xlu0 %v4260
  %v4262 = vpop.xlane.xlu0 %4261
  %v4263 = vsel %vm4007, %v4179, 0.0
  %4264 = vadd.xlane.f32.xlu0 %v4263
  %v4265 = vpop.xlane.xlu0 %4264
  %v4266 = vsel %vm4007, %v4181, 0.0
  %4267 = vadd.xlane.f32.xlu0 %v4266
  %v4268 = vpop.xlane.xlu0 %4267
  %v4269 = vsel %vm4007, %v4183, 0.0
  %4270 = vadd.xlane.f32.xlu0 %v4269
  %v4271 = vpop.xlane.xlu0 %4270
  %v4272 = vsel %vm4007, %v4185, 0.0
  %4273 = vadd.xlane.f32.xlu0 %v4272
  %v4274 = vpop.xlane.xlu0 %4273
  %v4275 = vsel %vm4007, %v4187, 0.0
  %4276 = vadd.xlane.f32.xlu0 %v4275
  %v4277 = vpop.xlane.xlu0 %4276
  %v4278 = vsel %vm4007, %v4189, 0.0
  %4279 = vadd.xlane.f32.xlu0 %v4278
  %v4280 = vpop.xlane.xlu0 %4279
  %v4281 = vsel %vm4007, %v4191, 0.0
  %4282 = vadd.xlane.f32.xlu0 %v4281
  %v4283 = vpop.xlane.xlu0 %4282
  %v4284 = vsel %vm4007, %v4193, 0.0
  %4285 = vadd.xlane.f32.xlu0 %v4284
  %v4286 = vpop.xlane.xlu0 %4285
  %v4287 = vsel %vm4007, %v4195, 0.0
  %4288 = vadd.xlane.f32.xlu0 %v4287
  %v4289 = vpop.xlane.xlu0 %4288
  %v4290 = vsel %vm4007, %v4197, 0.0
  %4291 = vadd.xlane.f32.xlu0 %v4290
  %v4292 = vpop.xlane.xlu0 %4291
  %v4293 = vsel %vm4007, %v4199, 0.0
  %4294 = vadd.xlane.f32.xlu0 %v4293
  %v4295 = vpop.xlane.xlu0 %4294
  %v4296 = vlog2.pop %v4202
  %v4297 = vmul.f32 %v4296, 0.6931472
  %v4298 = vlog2.pop %v4205
  %v4299 = vmul.f32 %v4298, 0.6931472
  %v4300 = vlog2.pop %v4208
  %v4301 = vmul.f32 %v4300, 0.6931472
  %v4302 = vlog2.pop %v4211
  %v4303 = vmul.f32 %v4302, 0.6931472
  %v4304 = vlog2.pop %v4214
  %v4305 = vmul.f32 %v4304, 0.6931472
  %v4306 = vlog2.pop %v4217
  %v4307 = vmul.f32 %v4306, 0.6931472
  %v4308 = vlog2.pop %v4220
  %v4309 = vmul.f32 %v4308, 0.6931472
  %v4310 = vlog2.pop %v4223
  %v4311 = vmul.f32 %v4310, 0.6931472
  %v4312 = vlog2.pop %v4226
  %v4313 = vmul.f32 %v4312, 0.6931472
  %v4314 = vlog2.pop %v4229
  %v4315 = vmul.f32 %v4314, 0.6931472
  %v4316 = vlog2.pop %v4232
  %v4317 = vmul.f32 %v4316, 0.6931472
  %v4318 = vlog2.pop %v4235
  %v4319 = vmul.f32 %v4318, 0.6931472
  %v4320 = vlog2.pop %v4238
  %v4321 = vmul.f32 %v4320, 0.6931472
  %v4322 = vlog2.pop %v4241
  %v4323 = vmul.f32 %v4322, 0.6931472
  %v4324 = vlog2.pop %v4244
  %v4325 = vmul.f32 %v4324, 0.6931472
  %v4326 = vlog2.pop %v4247
  %v4327 = vmul.f32 %v4326, 0.6931472
  %v4328 = vlog2.pop %v4250
  %v4329 = vmul.f32 %v4328, 0.6931472
  %v4330 = vlog2.pop %v4253
  %v4331 = vmul.f32 %v4330, 0.6931472
  %v4332 = vlog2.pop %v4256
  %v4333 = vmul.f32 %v4332, 0.6931472
  %v4334 = vlog2.pop %v4259
  %v4335 = vmul.f32 %v4334, 0.6931472
  %v4336 = vlog2.pop %v4262
  %v4337 = vmul.f32 %v4336, 0.6931472
  %v4338 = vlog2.pop %v4265
  %v4339 = vmul.f32 %v4338, 0.6931472
  %v4340 = vlog2.pop %v4268
  %v4341 = vmul.f32 %v4340, 0.6931472
  %v4342 = vlog2.pop %v4271
  %v4343 = vmul.f32 %v4342, 0.6931472
  %v4344 = vlog2.pop %v4274
  %v4345 = vmul.f32 %v4344, 0.6931472
  %v4346 = vlog2.pop %v4277
  %v4347 = vmul.f32 %v4346, 0.6931472
  %v4348 = vlog2.pop %v4280
  %v4349 = vmul.f32 %v4348, 0.6931472
  %v4350 = vlog2.pop %v4283
  %v4351 = vmul.f32 %v4350, 0.6931472
  %v4352 = vlog2.pop %v4286
  %v4353 = vmul.f32 %v4352, 0.6931472
  %v4354 = vlog2.pop %v4289
  %v4355 = vmul.f32 %v4354, 0.6931472
  %v4356 = vlog2.pop %v4292
  %v4357 = vmul.f32 %v4356, 0.6931472
  %v4358 = vlog2.pop %v4295
  %v4359 = vmul.f32 %v4358, 0.6931472
  %v4360 = vsub.f32 %v4104, %v4297
  %v4361 = vsub.f32 %v4105, %v4299
  %v4362 = vsub.f32 %v4106, %v4301
  %v4363 = vsub.f32 %v4107, %v4303
  %v4364 = vsub.f32 %v4108, %v4305
  %v4365 = vsub.f32 %v4109, %v4307
  %v4366 = vsub.f32 %v4110, %v4309
  %v4367 = vsub.f32 %v4111, %v4311
  %v4368 = vsub.f32 %v4112, %v4313
  %v4369 = vsub.f32 %v4113, %v4315
  %v4370 = vsub.f32 %v4114, %v4317
  %v4371 = vsub.f32 %v4115, %v4319
  %v4372 = vsub.f32 %v4116, %v4321
  %v4373 = vsub.f32 %v4117, %v4323
  %v4374 = vsub.f32 %v4118, %v4325
  %v4375 = vsub.f32 %v4119, %v4327
  %v4376 = vsub.f32 %v4120, %v4329
  %v4377 = vsub.f32 %v4121, %v4331
  %v4378 = vsub.f32 %v4122, %v4333
  %v4379 = vsub.f32 %v4123, %v4335
  %v4380 = vsub.f32 %v4124, %v4337
  %v4381 = vsub.f32 %v4125, %v4339
  %v4382 = vsub.f32 %v4126, %v4341
  %v4383 = vsub.f32 %v4127, %v4343
  %v4384 = vsub.f32 %v4128, %v4345
  %v4385 = vsub.f32 %v4129, %v4347
  %v4386 = vsub.f32 %v4130, %v4349
  %v4387 = vsub.f32 %v4131, %v4351
  %v4388 = vsub.f32 %v4132, %v4353
  %v4389 = vsub.f32 %v4133, %v4355
  %v4390 = vsub.f32 %v4134, %v4357
  %v4391 = vsub.f32 %v4135, %v4359
  %4392 = vst.msk [vmem:[%s5] sm:$0xff] %vm4007, %v4360
  %4393 = vst.msk [vmem:[%s5 + $0x8] sm:$0xff] %vm4007, %v4361
  %4394 = vst.msk [vmem:[%s5 + $0x10] sm:$0xff] %vm4007, %v4362
  %4395 = vst.msk [vmem:[%s5 + $0x18] sm:$0xff] %vm4007, %v4363
  %4396 = vst.msk [vmem:[%s5 + $0x20] sm:$0xff] %vm4007, %v4364
  %4397 = vst.msk [vmem:[%s5 + $0x28] sm:$0xff] %vm4007, %v4365
  %4398 = vst.msk [vmem:[%s5 + $0x30] sm:$0xff] %vm4007, %v4366
  %4399 = vst.msk [vmem:[%s5 + $0x38] sm:$0xff] %vm4007, %v4367
  %4400 = vst.msk [vmem:[%s5 + $0x40] sm:$0xff] %vm4007, %v4368
  %4401 = vst.msk [vmem:[%s5 + $0x48] sm:$0xff] %vm4007, %v4369
  %4402 = vst.msk [vmem:[%s5 + $0x50] sm:$0xff] %vm4007, %v4370
  %4403 = vst.msk [vmem:[%s5 + $0x58] sm:$0xff] %vm4007, %v4371
  %4404 = vst.msk [vmem:[%s5 + $0x60] sm:$0xff] %vm4007, %v4372
  %4405 = vst.msk [vmem:[%s5 + $0x68] sm:$0xff] %vm4007, %v4373
  %4406 = vst.msk [vmem:[%s5 + $0x70] sm:$0xff] %vm4007, %v4374
  %4407 = vst.msk [vmem:[%s5 + $0x78] sm:$0xff] %vm4007, %v4375
  %4408 = vst.msk [vmem:[%s5 + $0x80] sm:$0xff] %vm4007, %v4376
  %4409 = vst.msk [vmem:[%s5 + $0x88] sm:$0xff] %vm4007, %v4377
  %4410 = vst.msk [vmem:[%s5 + $0x90] sm:$0xff] %vm4007, %v4378
  %4411 = vst.msk [vmem:[%s5 + $0x98] sm:$0xff] %vm4007, %v4379
  %4412 = vst.msk [vmem:[%s5 + $0xa0] sm:$0xff] %vm4007, %v4380
  %4413 = vst.msk [vmem:[%s5 + $0xa8] sm:$0xff] %vm4007, %v4381
  %4414 = vst.msk [vmem:[%s5 + $0xb0] sm:$0xff] %vm4007, %v4382
  %4415 = vst.msk [vmem:[%s5 + $0xb8] sm:$0xff] %vm4007, %v4383
  %4416 = vst.msk [vmem:[%s5 + $0xc0] sm:$0xff] %vm4007, %v4384
  %4417 = vst.msk [vmem:[%s5 + $0xc8] sm:$0xff] %vm4007, %v4385
  %4418 = vst.msk [vmem:[%s5 + $0xd0] sm:$0xff] %vm4007, %v4386
  %4419 = vst.msk [vmem:[%s5 + $0xd8] sm:$0xff] %vm4007, %v4387
  %4420 = vst.msk [vmem:[%s5 + $0xe0] sm:$0xff] %vm4007, %v4388
  %4421 = vst.msk [vmem:[%s5 + $0xe8] sm:$0xff] %vm4007, %v4389
  %4422 = vst.msk [vmem:[%s5 + $0xf0] sm:$0xff] %vm4007, %v4390
  %4423 = vst.msk [vmem:[%s5 + $0xf8] sm:$0xff] %vm4007, %v4391
  // Predicated region
  $region22: #{tpu_custom_call.1} parent=0 // pred_check
    _
  $region23: #{tpu_custom_call.1} parent=0 // pred_check_branch
    %4425 = sbr.rel (0) target = $region25
  $region24: #{tpu_custom_call.1} parent=0 // pred_region
    _
  $region25: #{tpu_custom_call.1} parent=0 // pred_fallthru
    _
  // Predicated region
  $region26: #{tpu_custom_call.1} parent=0 // pred_check
    _
  $region27: #{tpu_custom_call.1} parent=0 // pred_check_branch
    %4427 = sbr.rel (0) target = $region29
  $region28: #{tpu_custom_call.1} parent=0 // pred_region
    _
  $region29: #{tpu_custom_call.1} parent=0 // pred_fallthru
    _

</llo_original>
